<compile_context>
chip_gen: v5e
topology: v5e:2x2
jax: 0.10.0
libtpu: 0.0.40
codegen_flags: <defaults>
</compile_context>

<pallas_src>
import jax
import jax.numpy as jnp
from jax import lax
from jax.experimental import pallas as pl
from jax.experimental.pallas import tpu as pltpu

LANE = 128
SUBLANE = 8


# ------------------------------ weight packing --------------------------------
# PyTorch LSTM weights are (4H, Din) with gate blocks (i, f, g, o) along axis 0.
# We transpose and scatter each gate's H columns into a lane-aligned Hp-wide
# slot, in slot order (i, f, o, g) so sigmoid covers one contiguous [0:3Hp)
# slice and tanh one [3Hp:4Hp) slice.  Padding rows/columns are zero, which
# makes the padded gate pre-activations exactly 0 -> padded h/c lanes stay 0.

_SLOT_SRC = (0, 1, 3, 2)   # slot k (i,f,o,g) pulls PyTorch block (i,f,o,g) = 0,1,3,2


def _pack_gate_matrix(w, d_pad, h_pad):
    four_h, d_in = w.shape
    h = four_h // 4
    out = jnp.zeros((d_pad, 4 * h_pad), w.dtype)
    for k, s in enumerate(_SLOT_SRC):
        out = out.at[:d_in, k * h_pad:k * h_pad + h].set(w[s * h:(s + 1) * h, :].T)
    return out


def _pack_gate_bias(b, h_pad):
    h = b.shape[0] // 4
    out = jnp.zeros((1, 4 * h_pad), b.dtype)
    for k, s in enumerate(_SLOT_SRC):
        out = out.at[0, k * h_pad:k * h_pad + h].set(b[s * h:(s + 1) * h])
    return out


# ------------------------------ fused kernel ----------------------------------

def make_encoder_kernel(S, Bp, V, Ep, Hp, L):
    G4 = 4 * Hp
    unroll = min(S, 8)          # bounded unroll: LLO visibility without blowup

    def kernel(*refs):
        # inputs: ids, emb_table, then per layer (W_ih packed, W_hh packed, bias)
        # outputs: hidden, cell ; scratch: gate slab, inter-layer h_seq slab
        ids_ref = refs[0]
        emb_ref = refs[1]
        w_refs = refs[2:2 + 3 * L]
        hidden_ref = refs[2 + 3 * L]
        cell_ref = refs[3 + 3 * L]
        g_sc = refs[4 + 3 * L]
        hseq_sc = refs[5 + 3 * L]

        # ---- fused embedding gather (one-hot matmul; exact for f32 table) ----
        ids = ids_ref[...]                                        # (S*Bp, 1) i32
        col = lax.broadcasted_iota(jnp.int32, (S * Bp, V), 1)     # (S*Bp, V)
        onehot = (col == ids).astype(jnp.float32)
        x2 = jnp.dot(onehot, emb_ref[...],
                     preferred_element_type=jnp.float32)          # (S*Bp, Ep)

        for l in range(L):
            wih_ref = w_refs[3 * l + 0]
            whh_ref = w_refs[3 * l + 1]
            b_ref = w_refs[3 * l + 2]

            if l > 0:
                x2 = hseq_sc[...].reshape(S * Bp, Hp)

            # Hoisted input projection: one big MXU matmul per layer (bias folded).
            g_sc[...] = (jnp.dot(x2.astype(wih_ref.dtype), wih_ref[...],
                                 preferred_element_type=jnp.float32)
                         + b_ref[...]).reshape(S, Bp, G4)

            whh = whh_ref[...]                    # (Hp, 4Hp), resident for the layer
            write_seq = (l + 1 < L)               # last layer's h_seq is unused

            def step(t, carry, whh=whh, write_seq=write_seq):
                h, c = carry
                gates = g_sc[t] + jnp.dot(h.astype(whh.dtype), whh,
                                          preferred_element_type=jnp.float32)
                sig = jax.nn.sigmoid(gates[:, :3 * Hp])      # i, f, o (lane-aligned)
                i_g = sig[:, 0:Hp]
                f_g = sig[:, Hp:2 * Hp]
                o_g = sig[:, 2 * Hp:3 * Hp]
                g_g = jnp.tanh(gates[:, 3 * Hp:])
                c = f_g * c + i_g * g_g
                h = o_g * jnp.tanh(c)
                if write_seq:
                    hseq_sc[t] = h                            # (Bp, Hp): full-vreg store
                return (h, c)

            h0 = jnp.zeros((Bp, Hp), jnp.float32)
            c0 = jnp.zeros((Bp, Hp), jnp.float32)
            h_last, c_last = lax.fori_loop(0, S, step, (h0, c0), unroll=unroll)

            hidden_ref[l] = h_last.astype(hidden_ref.dtype)
            cell_ref[l] = c_last.astype(cell_ref.dtype)

    return kernel


# ------------------------------ Encoder wrapper -------------------------------

def init_encoder_params(key, input_size, embedding_size, hidden_dims, num_layers):
    keys = jax.random.split(key, 1 + 4 * num_layers)
    emb = jax.random.normal(keys[0], (input_size, embedding_size), jnp.float32)
    k = 1.0 / float(hidden_dims) ** 0.5
    layers = []
    for l in range(num_layers):
        in_dim = embedding_size if l == 0 else hidden_dims
        kk = keys[1 + 4 * l: 1 + 4 * (l + 1)]
        w_ih = jax.random.uniform(kk[0], (4 * hidden_dims, in_dim), jnp.float32, -k, k)
        w_hh = jax.random.uniform(kk[1], (4 * hidden_dims, hidden_dims), jnp.float32, -k, k)
        b_ih = jax.random.uniform(kk[2], (4 * hidden_dims,), jnp.float32, -k, k)
        b_hh = jax.random.uniform(kk[3], (4 * hidden_dims,), jnp.float32, -k, k)
        layers.append((w_ih, w_hh, b_ih, b_hh))
    return {"embedding": emb, "lstm": layers}


def encoder_forward(params, x, *, weight_dtype=jnp.float32):
    """x: int32 (seq_len, batch). Returns (hidden, cell): (num_layers, batch, H).

    weight_dtype=jnp.bfloat16 enables half-width W_ih/W_hh (f32 accumulation)
    for v6e/v7x MXU throughput; default f32 to match the f32 reference tightly.
    """
    emb = params["embedding"]
    layers = params["lstm"]
    V, E = emb.shape
    S, B = x.shape
    H = layers[0][1].shape[1]
    L = len(layers)

    Bp = ((B + SUBLANE - 1) // SUBLANE) * SUBLANE     # sublane-pad batch
    Hp = ((H + LANE - 1) // LANE) * LANE              # lane-align each gate block
    Ep = ((E + LANE - 1) // LANE) * LANE              # lane-align embedding width

    # Pad + flatten the (tiny, int32) token ids; padded rows look up row 0 and
    # are sliced off at the end.  No float activation is padded or gathered in XLA.
    ids = jnp.zeros((S, Bp), jnp.int32).at[:, :B].set(x.astype(jnp.int32))
    ids = ids.reshape(S * Bp, 1)

    # Embedding table stays f32 so the in-kernel one-hot gather is exact.
    emb_p = jnp.zeros((V, Ep), jnp.float32).at[:, :E].set(emb)

    inputs = [ids, emb_p]
    for l, (w_ih, w_hh, b_ih, b_hh) in enumerate(layers):
        d_pad = Ep if l == 0 else Hp
        inputs += [
            _pack_gate_matrix(w_ih, d_pad, Hp).astype(weight_dtype),
            _pack_gate_matrix(w_hh, Hp, Hp).astype(weight_dtype),
            _pack_gate_bias(b_ih + b_hh, Hp),          # bias kept f32
        ]

    # Cost estimate (advisory, helps XLA schedule neighboring glue ops).
    flops = 2 * S * Bp * V * Ep                        # in-kernel gather matmul
    for l in range(L):
        d_pad = Ep if l == 0 else Hp
        flops += 2 * S * Bp * d_pad * 4 * Hp           # hoisted input projection
        flops += 2 * S * Bp * Hp * 4 * Hp              # recurrent matmuls
        flops += 10 * S * Bp * Hp                      # gate elementwise math
    transcendentals = 5 * S * Bp * Hp * L              # 3 sigmoid + 2 tanh per cell
    in_bytes = sum(int(a.size) * a.dtype.itemsize for a in inputs)
    out_bytes = 2 * L * Bp * Hp * 4
    scratch_bytes = (S * Bp * 4 * Hp + S * Bp * Hp) * 4
    vmem_limit = int(min(max(2 * (in_bytes + out_bytes + scratch_bytes), 16 * 2 ** 20),
                         64 * 2 ** 20))

    kernel = make_encoder_kernel(S, Bp, V, Ep, Hp, L)

    # No grid: everything is VMEM-resident, copied in exactly once (single-buffered),
    # and the whole time/layer recurrence runs inside one kernel invocation.
    hidden, cell = pl.pallas_call(
        kernel,
        out_shape=(jax.ShapeDtypeStruct((L, Bp, Hp), jnp.float32),
                   jax.ShapeDtypeStruct((L, Bp, Hp), jnp.float32)),
        scratch_shapes=[pltpu.VMEM((S, Bp, 4 * Hp), jnp.float32),   # hoisted gate slab
                        pltpu.VMEM((S, Bp, Hp), jnp.float32)],      # inter-layer h_seq
        compiler_params=pltpu.CompilerParams(vmem_limit_bytes=vmem_limit),
        cost_estimate=pl.CostEstimate(flops=int(flops),
                                      transcendentals=int(transcendentals),
                                      bytes_accessed=int(in_bytes + out_bytes)),
    )(*inputs)

    return hidden[:, :B, :H], cell[:, :B, :H]


# ------------------------------ pure-JAX reference ----------------------------

def lstm_layer_ref(x, w_ih, w_hh, b_ih, b_hh):
    S, B, _ = x.shape
    H = w_hh.shape[1]

    def step(carry, x_t):
        h, c = carry
        gates = x_t @ w_ih.T + h @ w_hh.T + b_ih + b_hh
        i = jax.nn.sigmoid(gates[:, :H])
        f = jax.nn.sigmoid(gates[:, H:2 * H])
        g = jnp.tanh(gates[:, 2 * H:3 * H])
        o = jax.nn.sigmoid(gates[:, 3 * H:])
        c = f * c + i * g
        h = o * jnp.tanh(c)
        return (h, c), h

    (h, c), hs = jax.lax.scan(step, (jnp.zeros((B, H)), jnp.zeros((B, H))), x)
    return hs, h, c


def encoder_forward_ref(params, x):
    emb = jnp.take(params["embedding"], x, axis=0)
    h_list, c_list = [], []
    layer_in = emb
    for (w_ih, w_hh, b_ih, b_hh) in params["lstm"]:
        hs, h, c = lstm_layer_ref(layer_in, w_ih, w_hh, b_ih, b_hh)
        h_list.append(h)
        c_list.append(c)
        layer_in = hs
    return jnp.stack(h_list, axis=0), jnp.stack(c_list, axis=0)


# ----------------------------------- main -------------------------------------

if __name__ == "__main__":
    input_size = 50        # vocab
    embedding_size = 32
    hidden_dims = 32
    num_layers = 2
    seq_len = 8
    batch = 4

    key = jax.random.PRNGKey(0)
    pkey, xkey = jax.random.split(key)
    params = init_encoder_params(pkey, input_size, embedding_size,
                                 hidden_dims, num_layers)
    x = jax.random.randint(xkey, (seq_len, batch), 0, input_size, dtype=jnp.int32)

    hidden, cell = jax.jit(encoder_forward)(params, x)
    jax.block_until_ready((hidden, cell))

    hidden_ref, cell_ref = encoder_forward_ref(params, x)
    assert hidden.shape == (num_layers, batch, hidden_dims)
    assert cell.shape == (num_layers, batch, hidden_dims)
    assert jnp.allclose(hidden, hidden_ref, rtol=1e-3, atol=1e-3)
    assert jnp.allclose(cell, cell_ref, rtol=1e-3, atol=1e-3)

    print("KERNEL_OK")
</pallas_src>

<mosaic_0001>
module attributes {stable_mosaic.version = 11 : i64} {
  func.func @kernel(%arg0: memref<64x1xi32, #tpu.memory_space<vmem>>, %arg1: memref<50x128xf32, #tpu.memory_space<vmem>>, %arg2: memref<128x512xf32, #tpu.memory_space<vmem>>, %arg3: memref<128x512xf32, #tpu.memory_space<vmem>>, %arg4: memref<1x512xf32, #tpu.memory_space<vmem>>, %arg5: memref<128x512xf32, #tpu.memory_space<vmem>>, %arg6: memref<128x512xf32, #tpu.memory_space<vmem>>, %arg7: memref<1x512xf32, #tpu.memory_space<vmem>>, %arg8: memref<2x8x128xf32, #tpu.memory_space<vmem>>, %arg9: memref<2x8x128xf32, #tpu.memory_space<vmem>>, %arg10: memref<8x8x512xf32, #tpu.memory_space<vmem>>, %arg11: memref<8x8x128xf32, #tpu.memory_space<vmem>>) attributes {dimension_semantics = [], scalar_prefetch = 0 : i64, scratch_operands = 2 : i64, tpu.core_type = #tpu.core_type<tc>} {
    %c0 = arith.constant 0 : index
    %c0_0 = arith.constant 0 : index
    %0 = vector.load %arg0[%c0, %c0_0] : memref<64x1xi32, #tpu.memory_space<vmem>>, vector<64x1xi32>
    %1 = tpu.iota {dimensions = array<i32: 1>} : vector<64x50xi32>
    %2 = vector.broadcast %0 : vector<64x1xi32> to vector<64x50xi32>
    %3 = arith.cmpi eq, %1, %2 : vector<64x50xi32>
    %4 = arith.extui %3 : vector<64x50xi1> to vector<64x50xi32>
    %5 = arith.sitofp %4 : vector<64x50xi32> to vector<64x50xf32>
    %c0_1 = arith.constant 0 : index
    %c0_2 = arith.constant 0 : index
    %6 = vector.load %arg1[%c0_1, %c0_2] : memref<50x128xf32, #tpu.memory_space<vmem>>, vector<50x128xf32>
    %cst = arith.constant dense<0.000000e+00> : vector<64x128xf32>
    %7 = tpu.matmul %5, %6, %cst {dimension_numbers = #tpu.dot_dimension_numbers<[1], [0], [0], [1], [0, 0, 1, 1], [], []>} : vector<64x50xf32>, vector<50x128xf32>, vector<64x128xf32> -> vector<64x128xf32>
    %c0_3 = arith.constant 0 : index
    %c0_4 = arith.constant 0 : index
    %8 = vector.load %arg2[%c0_3, %c0_4] : memref<128x512xf32, #tpu.memory_space<vmem>>, vector<128x512xf32>
    %cst_5 = arith.constant dense<0.000000e+00> : vector<64x512xf32>
    %9 = tpu.matmul %7, %8, %cst_5 {dimension_numbers = #tpu.dot_dimension_numbers<[1], [0], [0], [1], [0, 0, 1, 1], [], []>} : vector<64x128xf32>, vector<128x512xf32>, vector<64x512xf32> -> vector<64x512xf32>
    %c0_6 = arith.constant 0 : index
    %c0_7 = arith.constant 0 : index
    %10 = vector.load %arg4[%c0_6, %c0_7] : memref<1x512xf32, #tpu.memory_space<vmem>>, vector<1x512xf32>
    %11 = vector.broadcast %10 : vector<1x512xf32> to vector<64x512xf32>
    %12 = arith.addf %9, %11 : vector<64x512xf32>
    %13 = vector.shape_cast %12 : vector<64x512xf32> to vector<8x8x512xf32>
    %c0_8 = arith.constant 0 : index
    %c0_9 = arith.constant 0 : index
    %c0_10 = arith.constant 0 : index
    %14 = vector.load %arg10[%c0_8, %c0_9, %c0_10] : memref<8x8x512xf32, #tpu.memory_space<vmem>>, vector<8x8x512xf32>
    tpu.vector_store %arg10[%c0_8, %c0_9, %c0_10], %13 {strides = array<i32>} : memref<8x8x512xf32, #tpu.memory_space<vmem>>, vector<8x8x512xf32>,
    %c0_11 = arith.constant 0 : index
    %c0_12 = arith.constant 0 : index
    %15 = vector.load %arg3[%c0_11, %c0_12] : memref<128x512xf32, #tpu.memory_space<vmem>>, vector<128x512xf32>
    %cst_13 = arith.constant 0.000000e+00 : f32
    %16 = vector.broadcast %cst_13 : f32 to vector<8x128xf32>
    %cst_14 = arith.constant 0.000000e+00 : f32
    %17 = vector.broadcast %cst_14 : f32 to vector<8x128xf32>
    %c0_i32 = arith.constant 0 : i32
    %18 = arith.index_cast %c0_i32 : i32 to index
    %c0_15 = arith.constant 0 : index
    %c0_16 = arith.constant 0 : index
    %19 = vector.load %arg10[%18, %c0_15, %c0_16] : memref<8x8x512xf32, #tpu.memory_space<vmem>>, vector<1x8x512xf32>
    %20 = vector.shape_cast %19 : vector<1x8x512xf32> to vector<8x512xf32>
    %cst_17 = arith.constant dense<0.000000e+00> : vector<8x512xf32>
    %21 = tpu.matmul %16, %15, %cst_17 {dimension_numbers = #tpu.dot_dimension_numbers<[1], [0], [0], [1], [0, 0, 1, 1], [], []>} : vector<8x128xf32>, vector<128x512xf32>, vector<8x512xf32> -> vector<8x512xf32>
    %22 = arith.addf %20, %21 : vector<8x512xf32>
    %23 = vector.extract_strided_slice %22 {offsets = [0, 0], sizes = [8, 384], strides = [1, 1]} : vector<8x512xf32> to vector<8x384xf32>
    %24 = arith.negf %23 : vector<8x384xf32>
    %25 = math.exp %24 : vector<8x384xf32>
    %cst_18 = arith.constant 1.000000e+00 : f32
    %26 = vector.broadcast %cst_18 : f32 to vector<8x384xf32>
    %27 = arith.addf %26, %25 : vector<8x384xf32>
    %28 = arith.divf %26, %27 : vector<8x384xf32>
    %29 = vector.extract_strided_slice %28 {offsets = [0, 0], sizes = [8, 128], strides = [1, 1]} : vector<8x384xf32> to vector<8x128xf32>
    %30 = vector.extract_strided_slice %28 {offsets = [0, 128], sizes = [8, 128], strides = [1, 1]} : vector<8x384xf32> to vector<8x128xf32>
    %31 = vector.extract_strided_slice %28 {offsets = [0, 256], sizes = [8, 128], strides = [1, 1]} : vector<8x384xf32> to vector<8x128xf32>
    %32 = vector.extract_strided_slice %22 {offsets = [0, 384], sizes = [8, 128], strides = [1, 1]} : vector<8x512xf32> to vector<8x128xf32>
    %33 = math.tanh %32 : vector<8x128xf32>
    %34 = arith.mulf %30, %17 : vector<8x128xf32>
    %35 = arith.mulf %29, %33 : vector<8x128xf32>
    %36 = arith.addf %34, %35 : vector<8x128xf32>
    %37 = math.tanh %36 : vector<8x128xf32>
    %38 = arith.mulf %31, %37 : vector<8x128xf32>
    %39 = arith.index_cast %c0_i32 : i32 to index
    %c0_19 = arith.constant 0 : index
    %c0_20 = arith.constant 0 : index
    %40 = vector.load %arg11[%39, %c0_19, %c0_20] : memref<8x8x128xf32, #tpu.memory_space<vmem>>, vector<1x8x128xf32>
    %41 = vector.shape_cast %40 : vector<1x8x128xf32> to vector<8x128xf32>
    %42 = vector.shape_cast %38 : vector<8x128xf32> to vector<1x8x128xf32>
    tpu.vector_store %arg11[%39, %c0_19, %c0_20], %42 {strides = array<i32>} : memref<8x8x128xf32, #tpu.memory_space<vmem>>, vector<1x8x128xf32>,
    %c1_i32 = arith.constant 1 : i32
    %43 = arith.index_cast %c1_i32 : i32 to index
    %c0_21 = arith.constant 0 : index
    %c0_22 = arith.constant 0 : index
    %44 = vector.load %arg10[%43, %c0_21, %c0_22] : memref<8x8x512xf32, #tpu.memory_space<vmem>>, vector<1x8x512xf32>
    %45 = vector.shape_cast %44 : vector<1x8x512xf32> to vector<8x512xf32>
    %cst_23 = arith.constant dense<0.000000e+00> : vector<8x512xf32>
    %46 = tpu.matmul %38, %15, %cst_23 {dimension_numbers = #tpu.dot_dimension_numbers<[1], [0], [0], [1], [0, 0, 1, 1], [], []>} : vector<8x128xf32>, vector<128x512xf32>, vector<8x512xf32> -> vector<8x512xf32>
    %47 = arith.addf %45, %46 : vector<8x512xf32>
    %48 = vector.extract_strided_slice %47 {offsets = [0, 0], sizes = [8, 384], strides = [1, 1]} : vector<8x512xf32> to vector<8x384xf32>
    %49 = arith.negf %48 : vector<8x384xf32>
    %50 = math.exp %49 : vector<8x384xf32>
    %cst_24 = arith.constant 1.000000e+00 : f32
    %51 = vector.broadcast %cst_24 : f32 to vector<8x384xf32>
    %52 = arith.addf %51, %50 : vector<8x384xf32>
    %53 = arith.divf %51, %52 : vector<8x384xf32>
    %54 = vector.extract_strided_slice %53 {offsets = [0, 0], sizes = [8, 128], strides = [1, 1]} : vector<8x384xf32> to vector<8x128xf32>
    %55 = vector.extract_strided_slice %53 {offsets = [0, 128], sizes = [8, 128], strides = [1, 1]} : vector<8x384xf32> to vector<8x128xf32>
    %56 = vector.extract_strided_slice %53 {offsets = [0, 256], sizes = [8, 128], strides = [1, 1]} : vector<8x384xf32> to vector<8x128xf32>
    %57 = vector.extract_strided_slice %47 {offsets = [0, 384], sizes = [8, 128], strides = [1, 1]} : vector<8x512xf32> to vector<8x128xf32>
    %58 = math.tanh %57 : vector<8x128xf32>
    %59 = arith.mulf %55, %36 : vector<8x128xf32>
    %60 = arith.mulf %54, %58 : vector<8x128xf32>
    %61 = arith.addf %59, %60 : vector<8x128xf32>
    %62 = math.tanh %61 : vector<8x128xf32>
    %63 = arith.mulf %56, %62 : vector<8x128xf32>
    %64 = arith.index_cast %c1_i32 : i32 to index
    %c0_25 = arith.constant 0 : index
    %c0_26 = arith.constant 0 : index
    %65 = vector.load %arg11[%64, %c0_25, %c0_26] : memref<8x8x128xf32, #tpu.memory_space<vmem>>, vector<1x8x128xf32>
    %66 = vector.shape_cast %65 : vector<1x8x128xf32> to vector<8x128xf32>
    %67 = vector.shape_cast %63 : vector<8x128xf32> to vector<1x8x128xf32>
    tpu.vector_store %arg11[%64, %c0_25, %c0_26], %67 {strides = array<i32>} : memref<8x8x128xf32, #tpu.memory_space<vmem>>, vector<1x8x128xf32>,
    %c2_i32 = arith.constant 2 : i32
    %68 = arith.index_cast %c2_i32 : i32 to index
    %c0_27 = arith.constant 0 : index
    %c0_28 = arith.constant 0 : index
    %69 = vector.load %arg10[%68, %c0_27, %c0_28] : memref<8x8x512xf32, #tpu.memory_space<vmem>>, vector<1x8x512xf32>
    %70 = vector.shape_cast %69 : vector<1x8x512xf32> to vector<8x512xf32>
    %cst_29 = arith.constant dense<0.000000e+00> : vector<8x512xf32>
    %71 = tpu.matmul %63, %15, %cst_29 {dimension_numbers = #tpu.dot_dimension_numbers<[1], [0], [0], [1], [0, 0, 1, 1], [], []>} : vector<8x128xf32>, vector<128x512xf32>, vector<8x512xf32> -> vector<8x512xf32>
    %72 = arith.addf %70, %71 : vector<8x512xf32>
    %73 = vector.extract_strided_slice %72 {offsets = [0, 0], sizes = [8, 384], strides = [1, 1]} : vector<8x512xf32> to vector<8x384xf32>
    %74 = arith.negf %73 : vector<8x384xf32>
    %75 = math.exp %74 : vector<8x384xf32>
    %cst_30 = arith.constant 1.000000e+00 : f32
    %76 = vector.broadcast %cst_30 : f32 to vector<8x384xf32>
    %77 = arith.addf %76, %75 : vector<8x384xf32>
    %78 = arith.divf %76, %77 : vector<8x384xf32>
    %79 = vector.extract_strided_slice %78 {offsets = [0, 0], sizes = [8, 128], strides = [1, 1]} : vector<8x384xf32> to vector<8x128xf32>
    %80 = vector.extract_strided_slice %78 {offsets = [0, 128], sizes = [8, 128], strides = [1, 1]} : vector<8x384xf32> to vector<8x128xf32>
    %81 = vector.extract_strided_slice %78 {offsets = [0, 256], sizes = [8, 128], strides = [1, 1]} : vector<8x384xf32> to vector<8x128xf32>
    %82 = vector.extract_strided_slice %72 {offsets = [0, 384], sizes = [8, 128], strides = [1, 1]} : vector<8x512xf32> to vector<8x128xf32>
    %83 = math.tanh %82 : vector<8x128xf32>
    %84 = arith.mulf %80, %61 : vector<8x128xf32>
    %85 = arith.mulf %79, %83 : vector<8x128xf32>
    %86 = arith.addf %84, %85 : vector<8x128xf32>
    %87 = math.tanh %86 : vector<8x128xf32>
    %88 = arith.mulf %81, %87 : vector<8x128xf32>
    %89 = arith.index_cast %c2_i32 : i32 to index
    %c0_31 = arith.constant 0 : index
    %c0_32 = arith.constant 0 : index
    %90 = vector.load %arg11[%89, %c0_31, %c0_32] : memref<8x8x128xf32, #tpu.memory_space<vmem>>, vector<1x8x128xf32>
    %91 = vector.shape_cast %90 : vector<1x8x128xf32> to vector<8x128xf32>
    %92 = vector.shape_cast %88 : vector<8x128xf32> to vector<1x8x128xf32>
    tpu.vector_store %arg11[%89, %c0_31, %c0_32], %92 {strides = array<i32>} : memref<8x8x128xf32, #tpu.memory_space<vmem>>, vector<1x8x128xf32>,
    %c3_i32 = arith.constant 3 : i32
    %93 = arith.index_cast %c3_i32 : i32 to index
    %c0_33 = arith.constant 0 : index
    %c0_34 = arith.constant 0 : index
    %94 = vector.load %arg10[%93, %c0_33, %c0_34] : memref<8x8x512xf32, #tpu.memory_space<vmem>>, vector<1x8x512xf32>
    %95 = vector.shape_cast %94 : vector<1x8x512xf32> to vector<8x512xf32>
    %cst_35 = arith.constant dense<0.000000e+00> : vector<8x512xf32>
    %96 = tpu.matmul %88, %15, %cst_35 {dimension_numbers = #tpu.dot_dimension_numbers<[1], [0], [0], [1], [0, 0, 1, 1], [], []>} : vector<8x128xf32>, vector<128x512xf32>, vector<8x512xf32> -> vector<8x512xf32>
    %97 = arith.addf %95, %96 : vector<8x512xf32>
    %98 = vector.extract_strided_slice %97 {offsets = [0, 0], sizes = [8, 384], strides = [1, 1]} : vector<8x512xf32> to vector<8x384xf32>
    %99 = arith.negf %98 : vector<8x384xf32>
    %100 = math.exp %99 : vector<8x384xf32>
    %cst_36 = arith.constant 1.000000e+00 : f32
    %101 = vector.broadcast %cst_36 : f32 to vector<8x384xf32>
    %102 = arith.addf %101, %100 : vector<8x384xf32>
    %103 = arith.divf %101, %102 : vector<8x384xf32>
    %104 = vector.extract_strided_slice %103 {offsets = [0, 0], sizes = [8, 128], strides = [1, 1]} : vector<8x384xf32> to vector<8x128xf32>
    %105 = vector.extract_strided_slice %103 {offsets = [0, 128], sizes = [8, 128], strides = [1, 1]} : vector<8x384xf32> to vector<8x128xf32>
    %106 = vector.extract_strided_slice %103 {offsets = [0, 256], sizes = [8, 128], strides = [1, 1]} : vector<8x384xf32> to vector<8x128xf32>
    %107 = vector.extract_strided_slice %97 {offsets = [0, 384], sizes = [8, 128], strides = [1, 1]} : vector<8x512xf32> to vector<8x128xf32>
    %108 = math.tanh %107 : vector<8x128xf32>
    %109 = arith.mulf %105, %86 : vector<8x128xf32>
    %110 = arith.mulf %104, %108 : vector<8x128xf32>
    %111 = arith.addf %109, %110 : vector<8x128xf32>
    %112 = math.tanh %111 : vector<8x128xf32>
    %113 = arith.mulf %106, %112 : vector<8x128xf32>
    %114 = arith.index_cast %c3_i32 : i32 to index
    %c0_37 = arith.constant 0 : index
    %c0_38 = arith.constant 0 : index
    %115 = vector.load %arg11[%114, %c0_37, %c0_38] : memref<8x8x128xf32, #tpu.memory_space<vmem>>, vector<1x8x128xf32>
    %116 = vector.shape_cast %115 : vector<1x8x128xf32> to vector<8x128xf32>
    %117 = vector.shape_cast %113 : vector<8x128xf32> to vector<1x8x128xf32>
    tpu.vector_store %arg11[%114, %c0_37, %c0_38], %117 {strides = array<i32>} : memref<8x8x128xf32, #tpu.memory_space<vmem>>, vector<1x8x128xf32>,
    %c4_i32 = arith.constant 4 : i32
    %118 = arith.index_cast %c4_i32 : i32 to index
    %c0_39 = arith.constant 0 : index
    %c0_40 = arith.constant 0 : index
    %119 = vector.load %arg10[%118, %c0_39, %c0_40] : memref<8x8x512xf32, #tpu.memory_space<vmem>>, vector<1x8x512xf32>
    %120 = vector.shape_cast %119 : vector<1x8x512xf32> to vector<8x512xf32>
    %cst_41 = arith.constant dense<0.000000e+00> : vector<8x512xf32>
    %121 = tpu.matmul %113, %15, %cst_41 {dimension_numbers = #tpu.dot_dimension_numbers<[1], [0], [0], [1], [0, 0, 1, 1], [], []>} : vector<8x128xf32>, vector<128x512xf32>, vector<8x512xf32> -> vector<8x512xf32>
    %122 = arith.addf %120, %121 : vector<8x512xf32>
    %123 = vector.extract_strided_slice %122 {offsets = [0, 0], sizes = [8, 384], strides = [1, 1]} : vector<8x512xf32> to vector<8x384xf32>
    %124 = arith.negf %123 : vector<8x384xf32>
    %125 = math.exp %124 : vector<8x384xf32>
    %cst_42 = arith.constant 1.000000e+00 : f32
    %126 = vector.broadcast %cst_42 : f32 to vector<8x384xf32>
    %127 = arith.addf %126, %125 : vector<8x384xf32>
    %128 = arith.divf %126, %127 : vector<8x384xf32>
    %129 = vector.extract_strided_slice %128 {offsets = [0, 0], sizes = [8, 128], strides = [1, 1]} : vector<8x384xf32> to vector<8x128xf32>
    %130 = vector.extract_strided_slice %128 {offsets = [0, 128], sizes = [8, 128], strides = [1, 1]} : vector<8x384xf32> to vector<8x128xf32>
    %131 = vector.extract_strided_slice %128 {offsets = [0, 256], sizes = [8, 128], strides = [1, 1]} : vector<8x384xf32> to vector<8x128xf32>
    %132 = vector.extract_strided_slice %122 {offsets = [0, 384], sizes = [8, 128], strides = [1, 1]} : vector<8x512xf32> to vector<8x128xf32>
    %133 = math.tanh %132 : vector<8x128xf32>
    %134 = arith.mulf %130, %111 : vector<8x128xf32>
    %135 = arith.mulf %129, %133 : vector<8x128xf32>
    %136 = arith.addf %134, %135 : vector<8x128xf32>
    %137 = math.tanh %136 : vector<8x128xf32>
    %138 = arith.mulf %131, %137 : vector<8x128xf32>
    %139 = arith.index_cast %c4_i32 : i32 to index
    %c0_43 = arith.constant 0 : index
    %c0_44 = arith.constant 0 : index
    %140 = vector.load %arg11[%139, %c0_43, %c0_44] : memref<8x8x128xf32, #tpu.memory_space<vmem>>, vector<1x8x128xf32>
    %141 = vector.shape_cast %140 : vector<1x8x128xf32> to vector<8x128xf32>
    %142 = vector.shape_cast %138 : vector<8x128xf32> to vector<1x8x128xf32>
    tpu.vector_store %arg11[%139, %c0_43, %c0_44], %142 {strides = array<i32>} : memref<8x8x128xf32, #tpu.memory_space<vmem>>, vector<1x8x128xf32>,
    %c5_i32 = arith.constant 5 : i32
    %143 = arith.index_cast %c5_i32 : i32 to index
    %c0_45 = arith.constant 0 : index
    %c0_46 = arith.constant 0 : index
    %144 = vector.load %arg10[%143, %c0_45, %c0_46] : memref<8x8x512xf32, #tpu.memory_space<vmem>>, vector<1x8x512xf32>
    %145 = vector.shape_cast %144 : vector<1x8x512xf32> to vector<8x512xf32>
    %cst_47 = arith.constant dense<0.000000e+00> : vector<8x512xf32>
    %146 = tpu.matmul %138, %15, %cst_47 {dimension_numbers = #tpu.dot_dimension_numbers<[1], [0], [0], [1], [0, 0, 1, 1], [], []>} : vector<8x128xf32>, vector<128x512xf32>, vector<8x512xf32> -> vector<8x512xf32>
    %147 = arith.addf %145, %146 : vector<8x512xf32>
    %148 = vector.extract_strided_slice %147 {offsets = [0, 0], sizes = [8, 384], strides = [1, 1]} : vector<8x512xf32> to vector<8x384xf32>
    %149 = arith.negf %148 : vector<8x384xf32>
    %150 = math.exp %149 : vector<8x384xf32>
    %cst_48 = arith.constant 1.000000e+00 : f32
    %151 = vector.broadcast %cst_48 : f32 to vector<8x384xf32>
    %152 = arith.addf %151, %150 : vector<8x384xf32>
    %153 = arith.divf %151, %152 : vector<8x384xf32>
    %154 = vector.extract_strided_slice %153 {offsets = [0, 0], sizes = [8, 128], strides = [1, 1]} : vector<8x384xf32> to vector<8x128xf32>
    %155 = vector.extract_strided_slice %153 {offsets = [0, 128], sizes = [8, 128], strides = [1, 1]} : vector<8x384xf32> to vector<8x128xf32>
    %156 = vector.extract_strided_slice %153 {offsets = [0, 256], sizes = [8, 128], strides = [1, 1]} : vector<8x384xf32> to vector<8x128xf32>
    %157 = vector.extract_strided_slice %147 {offsets = [0, 384], sizes = [8, 128], strides = [1, 1]} : vector<8x512xf32> to vector<8x128xf32>
    %158 = math.tanh %157 : vector<8x128xf32>
    %159 = arith.mulf %155, %136 : vector<8x128xf32>
    %160 = arith.mulf %154, %158 : vector<8x128xf32>
    %161 = arith.addf %159, %160 : vector<8x128xf32>
    %162 = math.tanh %161 : vector<8x128xf32>
    %163 = arith.mulf %156, %162 : vector<8x128xf32>
    %164 = arith.index_cast %c5_i32 : i32 to index
    %c0_49 = arith.constant 0 : index
    %c0_50 = arith.constant 0 : index
    %165 = vector.load %arg11[%164, %c0_49, %c0_50] : memref<8x8x128xf32, #tpu.memory_space<vmem>>, vector<1x8x128xf32>
    %166 = vector.shape_cast %165 : vector<1x8x128xf32> to vector<8x128xf32>
    %167 = vector.shape_cast %163 : vector<8x128xf32> to vector<1x8x128xf32>
    tpu.vector_store %arg11[%164, %c0_49, %c0_50], %167 {strides = array<i32>} : memref<8x8x128xf32, #tpu.memory_space<vmem>>, vector<1x8x128xf32>,
    %c6_i32 = arith.constant 6 : i32
    %168 = arith.index_cast %c6_i32 : i32 to index
    %c0_51 = arith.constant 0 : index
    %c0_52 = arith.constant 0 : index
    %169 = vector.load %arg10[%168, %c0_51, %c0_52] : memref<8x8x512xf32, #tpu.memory_space<vmem>>, vector<1x8x512xf32>
    %170 = vector.shape_cast %169 : vector<1x8x512xf32> to vector<8x512xf32>
    %cst_53 = arith.constant dense<0.000000e+00> : vector<8x512xf32>
    %171 = tpu.matmul %163, %15, %cst_53 {dimension_numbers = #tpu.dot_dimension_numbers<[1], [0], [0], [1], [0, 0, 1, 1], [], []>} : vector<8x128xf32>, vector<128x512xf32>, vector<8x512xf32> -> vector<8x512xf32>
    %172 = arith.addf %170, %171 : vector<8x512xf32>
    %173 = vector.extract_strided_slice %172 {offsets = [0, 0], sizes = [8, 384], strides = [1, 1]} : vector<8x512xf32> to vector<8x384xf32>
    %174 = arith.negf %173 : vector<8x384xf32>
    %175 = math.exp %174 : vector<8x384xf32>
    %cst_54 = arith.constant 1.000000e+00 : f32
    %176 = vector.broadcast %cst_54 : f32 to vector<8x384xf32>
    %177 = arith.addf %176, %175 : vector<8x384xf32>
    %178 = arith.divf %176, %177 : vector<8x384xf32>
    %179 = vector.extract_strided_slice %178 {offsets = [0, 0], sizes = [8, 128], strides = [1, 1]} : vector<8x384xf32> to vector<8x128xf32>
    %180 = vector.extract_strided_slice %178 {offsets = [0, 128], sizes = [8, 128], strides = [1, 1]} : vector<8x384xf32> to vector<8x128xf32>
    %181 = vector.extract_strided_slice %178 {offsets = [0, 256], sizes = [8, 128], strides = [1, 1]} : vector<8x384xf32> to vector<8x128xf32>
    %182 = vector.extract_strided_slice %172 {offsets = [0, 384], sizes = [8, 128], strides = [1, 1]} : vector<8x512xf32> to vector<8x128xf32>
    %183 = math.tanh %182 : vector<8x128xf32>
    %184 = arith.mulf %180, %161 : vector<8x128xf32>
    %185 = arith.mulf %179, %183 : vector<8x128xf32>
    %186 = arith.addf %184, %185 : vector<8x128xf32>
    %187 = math.tanh %186 : vector<8x128xf32>
    %188 = arith.mulf %181, %187 : vector<8x128xf32>
    %189 = arith.index_cast %c6_i32 : i32 to index
    %c0_55 = arith.constant 0 : index
    %c0_56 = arith.constant 0 : index
    %190 = vector.load %arg11[%189, %c0_55, %c0_56] : memref<8x8x128xf32, #tpu.memory_space<vmem>>, vector<1x8x128xf32>
    %191 = vector.shape_cast %190 : vector<1x8x128xf32> to vector<8x128xf32>
    %192 = vector.shape_cast %188 : vector<8x128xf32> to vector<1x8x128xf32>
    tpu.vector_store %arg11[%189, %c0_55, %c0_56], %192 {strides = array<i32>} : memref<8x8x128xf32, #tpu.memory_space<vmem>>, vector<1x8x128xf32>,
    %c7_i32 = arith.constant 7 : i32
    %193 = arith.index_cast %c7_i32 : i32 to index
    %c0_57 = arith.constant 0 : index
    %c0_58 = arith.constant 0 : index
    %194 = vector.load %arg10[%193, %c0_57, %c0_58] : memref<8x8x512xf32, #tpu.memory_space<vmem>>, vector<1x8x512xf32>
    %195 = vector.shape_cast %194 : vector<1x8x512xf32> to vector<8x512xf32>
    %cst_59 = arith.constant dense<0.000000e+00> : vector<8x512xf32>
    %196 = tpu.matmul %188, %15, %cst_59 {dimension_numbers = #tpu.dot_dimension_numbers<[1], [0], [0], [1], [0, 0, 1, 1], [], []>} : vector<8x128xf32>, vector<128x512xf32>, vector<8x512xf32> -> vector<8x512xf32>
    %197 = arith.addf %195, %196 : vector<8x512xf32>
    %198 = vector.extract_strided_slice %197 {offsets = [0, 0], sizes = [8, 384], strides = [1, 1]} : vector<8x512xf32> to vector<8x384xf32>
    %199 = arith.negf %198 : vector<8x384xf32>
    %200 = math.exp %199 : vector<8x384xf32>
    %cst_60 = arith.constant 1.000000e+00 : f32
    %201 = vector.broadcast %cst_60 : f32 to vector<8x384xf32>
    %202 = arith.addf %201, %200 : vector<8x384xf32>
    %203 = arith.divf %201, %202 : vector<8x384xf32>
    %204 = vector.extract_strided_slice %203 {offsets = [0, 0], sizes = [8, 128], strides = [1, 1]} : vector<8x384xf32> to vector<8x128xf32>
    %205 = vector.extract_strided_slice %203 {offsets = [0, 128], sizes = [8, 128], strides = [1, 1]} : vector<8x384xf32> to vector<8x128xf32>
    %206 = vector.extract_strided_slice %203 {offsets = [0, 256], sizes = [8, 128], strides = [1, 1]} : vector<8x384xf32> to vector<8x128xf32>
    %207 = vector.extract_strided_slice %197 {offsets = [0, 384], sizes = [8, 128], strides = [1, 1]} : vector<8x512xf32> to vector<8x128xf32>
    %208 = math.tanh %207 : vector<8x128xf32>
    %209 = arith.mulf %205, %186 : vector<8x128xf32>
    %210 = arith.mulf %204, %208 : vector<8x128xf32>
    %211 = arith.addf %209, %210 : vector<8x128xf32>
    %212 = math.tanh %211 : vector<8x128xf32>
    %213 = arith.mulf %206, %212 : vector<8x128xf32>
    %214 = arith.index_cast %c7_i32 : i32 to index
    %c0_61 = arith.constant 0 : index
    %c0_62 = arith.constant 0 : index
    %215 = vector.load %arg11[%214, %c0_61, %c0_62] : memref<8x8x128xf32, #tpu.memory_space<vmem>>, vector<1x8x128xf32>
    %216 = vector.shape_cast %215 : vector<1x8x128xf32> to vector<8x128xf32>
    %217 = vector.shape_cast %213 : vector<8x128xf32> to vector<1x8x128xf32>
    tpu.vector_store %arg11[%214, %c0_61, %c0_62], %217 {strides = array<i32>} : memref<8x8x128xf32, #tpu.memory_space<vmem>>, vector<1x8x128xf32>,
    %c8_i32 = arith.constant 8 : i32
    %c0_63 = arith.constant 0 : index
    %c0_64 = arith.constant 0 : index
    %c0_65 = arith.constant 0 : index
    %218 = vector.load %arg8[%c0_63, %c0_64, %c0_65] : memref<2x8x128xf32, #tpu.memory_space<vmem>>, vector<1x8x128xf32>
    %219 = vector.shape_cast %218 : vector<1x8x128xf32> to vector<8x128xf32>
    %220 = vector.shape_cast %213 : vector<8x128xf32> to vector<1x8x128xf32>
    tpu.vector_store %arg8[%c0_63, %c0_64, %c0_65], %220 {strides = array<i32>} : memref<2x8x128xf32, #tpu.memory_space<vmem>>, vector<1x8x128xf32>,
    %c0_66 = arith.constant 0 : index
    %c0_67 = arith.constant 0 : index
    %c0_68 = arith.constant 0 : index
    %221 = vector.load %arg9[%c0_66, %c0_67, %c0_68] : memref<2x8x128xf32, #tpu.memory_space<vmem>>, vector<1x8x128xf32>
    %222 = vector.shape_cast %221 : vector<1x8x128xf32> to vector<8x128xf32>
    %223 = vector.shape_cast %211 : vector<8x128xf32> to vector<1x8x128xf32>
    tpu.vector_store %arg9[%c0_66, %c0_67, %c0_68], %223 {strides = array<i32>} : memref<2x8x128xf32, #tpu.memory_space<vmem>>, vector<1x8x128xf32>,
    %c0_69 = arith.constant 0 : index
    %c0_70 = arith.constant 0 : index
    %c0_71 = arith.constant 0 : index
    %224 = vector.load %arg11[%c0_69, %c0_70, %c0_71] : memref<8x8x128xf32, #tpu.memory_space<vmem>>, vector<8x8x128xf32>
    %225 = vector.shape_cast %224 : vector<8x8x128xf32> to vector<64x128xf32>
    %c0_72 = arith.constant 0 : index
    %c0_73 = arith.constant 0 : index
    %226 = vector.load %arg5[%c0_72, %c0_73] : memref<128x512xf32, #tpu.memory_space<vmem>>, vector<128x512xf32>
    %cst_74 = arith.constant dense<0.000000e+00> : vector<64x512xf32>
    %227 = tpu.matmul %225, %226, %cst_74 {dimension_numbers = #tpu.dot_dimension_numbers<[1], [0], [0], [1], [0, 0, 1, 1], [], []>} : vector<64x128xf32>, vector<128x512xf32>, vector<64x512xf32> -> vector<64x512xf32>
    %c0_75 = arith.constant 0 : index
    %c0_76 = arith.constant 0 : index
    %228 = vector.load %arg7[%c0_75, %c0_76] : memref<1x512xf32, #tpu.memory_space<vmem>>, vector<1x512xf32>
    %229 = vector.broadcast %228 : vector<1x512xf32> to vector<64x512xf32>
    %230 = arith.addf %227, %229 : vector<64x512xf32>
    %231 = vector.shape_cast %230 : vector<64x512xf32> to vector<8x8x512xf32>
    %c0_77 = arith.constant 0 : index
    %c0_78 = arith.constant 0 : index
    %c0_79 = arith.constant 0 : index
    %232 = vector.load %arg10[%c0_77, %c0_78, %c0_79] : memref<8x8x512xf32, #tpu.memory_space<vmem>>, vector<8x8x512xf32>
    tpu.vector_store %arg10[%c0_77, %c0_78, %c0_79], %231 {strides = array<i32>} : memref<8x8x512xf32, #tpu.memory_space<vmem>>, vector<8x8x512xf32>,
    %c0_80 = arith.constant 0 : index
    %c0_81 = arith.constant 0 : index
    %233 = vector.load %arg6[%c0_80, %c0_81] : memref<128x512xf32, #tpu.memory_space<vmem>>, vector<128x512xf32>
    %cst_82 = arith.constant 0.000000e+00 : f32
    %234 = vector.broadcast %cst_82 : f32 to vector<8x128xf32>
    %cst_83 = arith.constant 0.000000e+00 : f32
    %235 = vector.broadcast %cst_83 : f32 to vector<8x128xf32>
    %c0_i32_84 = arith.constant 0 : i32
    %236 = arith.index_cast %c0_i32_84 : i32 to index
    %c0_85 = arith.constant 0 : index
    %c0_86 = arith.constant 0 : index
    %237 = vector.load %arg10[%236, %c0_85, %c0_86] : memref<8x8x512xf32, #tpu.memory_space<vmem>>, vector<1x8x512xf32>
    %238 = vector.shape_cast %237 : vector<1x8x512xf32> to vector<8x512xf32>
    %cst_87 = arith.constant dense<0.000000e+00> : vector<8x512xf32>
    %239 = tpu.matmul %234, %233, %cst_87 {dimension_numbers = #tpu.dot_dimension_numbers<[1], [0], [0], [1], [0, 0, 1, 1], [], []>} : vector<8x128xf32>, vector<128x512xf32>, vector<8x512xf32> -> vector<8x512xf32>
    %240 = arith.addf %238, %239 : vector<8x512xf32>
    %241 = vector.extract_strided_slice %240 {offsets = [0, 0], sizes = [8, 384], strides = [1, 1]} : vector<8x512xf32> to vector<8x384xf32>
    %242 = arith.negf %241 : vector<8x384xf32>
    %243 = math.exp %242 : vector<8x384xf32>
    %cst_88 = arith.constant 1.000000e+00 : f32
    %244 = vector.broadcast %cst_88 : f32 to vector<8x384xf32>
    %245 = arith.addf %244, %243 : vector<8x384xf32>
    %246 = arith.divf %244, %245 : vector<8x384xf32>
    %247 = vector.extract_strided_slice %246 {offsets = [0, 0], sizes = [8, 128], strides = [1, 1]} : vector<8x384xf32> to vector<8x128xf32>
    %248 = vector.extract_strided_slice %246 {offsets = [0, 128], sizes = [8, 128], strides = [1, 1]} : vector<8x384xf32> to vector<8x128xf32>
    %249 = vector.extract_strided_slice %246 {offsets = [0, 256], sizes = [8, 128], strides = [1, 1]} : vector<8x384xf32> to vector<8x128xf32>
    %250 = vector.extract_strided_slice %240 {offsets = [0, 384], sizes = [8, 128], strides = [1, 1]} : vector<8x512xf32> to vector<8x128xf32>
    %251 = math.tanh %250 : vector<8x128xf32>
    %252 = arith.mulf %248, %235 : vector<8x128xf32>
    %253 = arith.mulf %247, %251 : vector<8x128xf32>
    %254 = arith.addf %252, %253 : vector<8x128xf32>
    %255 = math.tanh %254 : vector<8x128xf32>
    %256 = arith.mulf %249, %255 : vector<8x128xf32>
    %c1_i32_89 = arith.constant 1 : i32
    %257 = arith.index_cast %c1_i32_89 : i32 to index
    %c0_90 = arith.constant 0 : index
    %c0_91 = arith.constant 0 : index
    %258 = vector.load %arg10[%257, %c0_90, %c0_91] : memref<8x8x512xf32, #tpu.memory_space<vmem>>, vector<1x8x512xf32>
    %259 = vector.shape_cast %258 : vector<1x8x512xf32> to vector<8x512xf32>
    %cst_92 = arith.constant dense<0.000000e+00> : vector<8x512xf32>
    %260 = tpu.matmul %256, %233, %cst_92 {dimension_numbers = #tpu.dot_dimension_numbers<[1], [0], [0], [1], [0, 0, 1, 1], [], []>} : vector<8x128xf32>, vector<128x512xf32>, vector<8x512xf32> -> vector<8x512xf32>
    %261 = arith.addf %259, %260 : vector<8x512xf32>
    %262 = vector.extract_strided_slice %261 {offsets = [0, 0], sizes = [8, 384], strides = [1, 1]} : vector<8x512xf32> to vector<8x384xf32>
    %263 = arith.negf %262 : vector<8x384xf32>
    %264 = math.exp %263 : vector<8x384xf32>
    %cst_93 = arith.constant 1.000000e+00 : f32
    %265 = vector.broadcast %cst_93 : f32 to vector<8x384xf32>
    %266 = arith.addf %265, %264 : vector<8x384xf32>
    %267 = arith.divf %265, %266 : vector<8x384xf32>
    %268 = vector.extract_strided_slice %267 {offsets = [0, 0], sizes = [8, 128], strides = [1, 1]} : vector<8x384xf32> to vector<8x128xf32>
    %269 = vector.extract_strided_slice %267 {offsets = [0, 128], sizes = [8, 128], strides = [1, 1]} : vector<8x384xf32> to vector<8x128xf32>
    %270 = vector.extract_strided_slice %267 {offsets = [0, 256], sizes = [8, 128], strides = [1, 1]} : vector<8x384xf32> to vector<8x128xf32>
    %271 = vector.extract_strided_slice %261 {offsets = [0, 384], sizes = [8, 128], strides = [1, 1]} : vector<8x512xf32> to vector<8x128xf32>
    %272 = math.tanh %271 : vector<8x128xf32>
    %273 = arith.mulf %269, %254 : vector<8x128xf32>
    %274 = arith.mulf %268, %272 : vector<8x128xf32>
    %275 = arith.addf %273, %274 : vector<8x128xf32>
    %276 = math.tanh %275 : vector<8x128xf32>
    %277 = arith.mulf %270, %276 : vector<8x128xf32>
    %c2_i32_94 = arith.constant 2 : i32
    %278 = arith.index_cast %c2_i32_94 : i32 to index
    %c0_95 = arith.constant 0 : index
    %c0_96 = arith.constant 0 : index
    %279 = vector.load %arg10[%278, %c0_95, %c0_96] : memref<8x8x512xf32, #tpu.memory_space<vmem>>, vector<1x8x512xf32>
    %280 = vector.shape_cast %279 : vector<1x8x512xf32> to vector<8x512xf32>
    %cst_97 = arith.constant dense<0.000000e+00> : vector<8x512xf32>
    %281 = tpu.matmul %277, %233, %cst_97 {dimension_numbers = #tpu.dot_dimension_numbers<[1], [0], [0], [1], [0, 0, 1, 1], [], []>} : vector<8x128xf32>, vector<128x512xf32>, vector<8x512xf32> -> vector<8x512xf32>
    %282 = arith.addf %280, %281 : vector<8x512xf32>
    %283 = vector.extract_strided_slice %282 {offsets = [0, 0], sizes = [8, 384], strides = [1, 1]} : vector<8x512xf32> to vector<8x384xf32>
    %284 = arith.negf %283 : vector<8x384xf32>
    %285 = math.exp %284 : vector<8x384xf32>
    %cst_98 = arith.constant 1.000000e+00 : f32
    %286 = vector.broadcast %cst_98 : f32 to vector<8x384xf32>
    %287 = arith.addf %286, %285 : vector<8x384xf32>
    %288 = arith.divf %286, %287 : vector<8x384xf32>
    %289 = vector.extract_strided_slice %288 {offsets = [0, 0], sizes = [8, 128], strides = [1, 1]} : vector<8x384xf32> to vector<8x128xf32>
    %290 = vector.extract_strided_slice %288 {offsets = [0, 128], sizes = [8, 128], strides = [1, 1]} : vector<8x384xf32> to vector<8x128xf32>
    %291 = vector.extract_strided_slice %288 {offsets = [0, 256], sizes = [8, 128], strides = [1, 1]} : vector<8x384xf32> to vector<8x128xf32>
    %292 = vector.extract_strided_slice %282 {offsets = [0, 384], sizes = [8, 128], strides = [1, 1]} : vector<8x512xf32> to vector<8x128xf32>
    %293 = math.tanh %292 : vector<8x128xf32>
    %294 = arith.mulf %290, %275 : vector<8x128xf32>
    %295 = arith.mulf %289, %293 : vector<8x128xf32>
    %296 = arith.addf %294, %295 : vector<8x128xf32>
    %297 = math.tanh %296 : vector<8x128xf32>
    %298 = arith.mulf %291, %297 : vector<8x128xf32>
    %c3_i32_99 = arith.constant 3 : i32
    %299 = arith.index_cast %c3_i32_99 : i32 to index
    %c0_100 = arith.constant 0 : index
    %c0_101 = arith.constant 0 : index
    %300 = vector.load %arg10[%299, %c0_100, %c0_101] : memref<8x8x512xf32, #tpu.memory_space<vmem>>, vector<1x8x512xf32>
    %301 = vector.shape_cast %300 : vector<1x8x512xf32> to vector<8x512xf32>
    %cst_102 = arith.constant dense<0.000000e+00> : vector<8x512xf32>
    %302 = tpu.matmul %298, %233, %cst_102 {dimension_numbers = #tpu.dot_dimension_numbers<[1], [0], [0], [1], [0, 0, 1, 1], [], []>} : vector<8x128xf32>, vector<128x512xf32>, vector<8x512xf32> -> vector<8x512xf32>
    %303 = arith.addf %301, %302 : vector<8x512xf32>
    %304 = vector.extract_strided_slice %303 {offsets = [0, 0], sizes = [8, 384], strides = [1, 1]} : vector<8x512xf32> to vector<8x384xf32>
    %305 = arith.negf %304 : vector<8x384xf32>
    %306 = math.exp %305 : vector<8x384xf32>
    %cst_103 = arith.constant 1.000000e+00 : f32
    %307 = vector.broadcast %cst_103 : f32 to vector<8x384xf32>
    %308 = arith.addf %307, %306 : vector<8x384xf32>
    %309 = arith.divf %307, %308 : vector<8x384xf32>
    %310 = vector.extract_strided_slice %309 {offsets = [0, 0], sizes = [8, 128], strides = [1, 1]} : vector<8x384xf32> to vector<8x128xf32>
    %311 = vector.extract_strided_slice %309 {offsets = [0, 128], sizes = [8, 128], strides = [1, 1]} : vector<8x384xf32> to vector<8x128xf32>
    %312 = vector.extract_strided_slice %309 {offsets = [0, 256], sizes = [8, 128], strides = [1, 1]} : vector<8x384xf32> to vector<8x128xf32>
    %313 = vector.extract_strided_slice %303 {offsets = [0, 384], sizes = [8, 128], strides = [1, 1]} : vector<8x512xf32> to vector<8x128xf32>
    %314 = math.tanh %313 : vector<8x128xf32>
    %315 = arith.mulf %311, %296 : vector<8x128xf32>
    %316 = arith.mulf %310, %314 : vector<8x128xf32>
    %317 = arith.addf %315, %316 : vector<8x128xf32>
    %318 = math.tanh %317 : vector<8x128xf32>
    %319 = arith.mulf %312, %318 : vector<8x128xf32>
    %c4_i32_104 = arith.constant 4 : i32
    %320 = arith.index_cast %c4_i32_104 : i32 to index
    %c0_105 = arith.constant 0 : index
    %c0_106 = arith.constant 0 : index
    %321 = vector.load %arg10[%320, %c0_105, %c0_106] : memref<8x8x512xf32, #tpu.memory_space<vmem>>, vector<1x8x512xf32>
    %322 = vector.shape_cast %321 : vector<1x8x512xf32> to vector<8x512xf32>
    %cst_107 = arith.constant dense<0.000000e+00> : vector<8x512xf32>
    %323 = tpu.matmul %319, %233, %cst_107 {dimension_numbers = #tpu.dot_dimension_numbers<[1], [0], [0], [1], [0, 0, 1, 1], [], []>} : vector<8x128xf32>, vector<128x512xf32>, vector<8x512xf32> -> vector<8x512xf32>
    %324 = arith.addf %322, %323 : vector<8x512xf32>
    %325 = vector.extract_strided_slice %324 {offsets = [0, 0], sizes = [8, 384], strides = [1, 1]} : vector<8x512xf32> to vector<8x384xf32>
    %326 = arith.negf %325 : vector<8x384xf32>
    %327 = math.exp %326 : vector<8x384xf32>
    %cst_108 = arith.constant 1.000000e+00 : f32
    %328 = vector.broadcast %cst_108 : f32 to vector<8x384xf32>
    %329 = arith.addf %328, %327 : vector<8x384xf32>
    %330 = arith.divf %328, %329 : vector<8x384xf32>
    %331 = vector.extract_strided_slice %330 {offsets = [0, 0], sizes = [8, 128], strides = [1, 1]} : vector<8x384xf32> to vector<8x128xf32>
    %332 = vector.extract_strided_slice %330 {offsets = [0, 128], sizes = [8, 128], strides = [1, 1]} : vector<8x384xf32> to vector<8x128xf32>
    %333 = vector.extract_strided_slice %330 {offsets = [0, 256], sizes = [8, 128], strides = [1, 1]} : vector<8x384xf32> to vector<8x128xf32>
    %334 = vector.extract_strided_slice %324 {offsets = [0, 384], sizes = [8, 128], strides = [1, 1]} : vector<8x512xf32> to vector<8x128xf32>
    %335 = math.tanh %334 : vector<8x128xf32>
    %336 = arith.mulf %332, %317 : vector<8x128xf32>
    %337 = arith.mulf %331, %335 : vector<8x128xf32>
    %338 = arith.addf %336, %337 : vector<8x128xf32>
    %339 = math.tanh %338 : vector<8x128xf32>
    %340 = arith.mulf %333, %339 : vector<8x128xf32>
    %c5_i32_109 = arith.constant 5 : i32
    %341 = arith.index_cast %c5_i32_109 : i32 to index
    %c0_110 = arith.constant 0 : index
    %c0_111 = arith.constant 0 : index
    %342 = vector.load %arg10[%341, %c0_110, %c0_111] : memref<8x8x512xf32, #tpu.memory_space<vmem>>, vector<1x8x512xf32>
    %343 = vector.shape_cast %342 : vector<1x8x512xf32> to vector<8x512xf32>
    %cst_112 = arith.constant dense<0.000000e+00> : vector<8x512xf32>
    %344 = tpu.matmul %340, %233, %cst_112 {dimension_numbers = #tpu.dot_dimension_numbers<[1], [0], [0], [1], [0, 0, 1, 1], [], []>} : vector<8x128xf32>, vector<128x512xf32>, vector<8x512xf32> -> vector<8x512xf32>
    %345 = arith.addf %343, %344 : vector<8x512xf32>
    %346 = vector.extract_strided_slice %345 {offsets = [0, 0], sizes = [8, 384], strides = [1, 1]} : vector<8x512xf32> to vector<8x384xf32>
    %347 = arith.negf %346 : vector<8x384xf32>
    %348 = math.exp %347 : vector<8x384xf32>
    %cst_113 = arith.constant 1.000000e+00 : f32
    %349 = vector.broadcast %cst_113 : f32 to vector<8x384xf32>
    %350 = arith.addf %349, %348 : vector<8x384xf32>
    %351 = arith.divf %349, %350 : vector<8x384xf32>
    %352 = vector.extract_strided_slice %351 {offsets = [0, 0], sizes = [8, 128], strides = [1, 1]} : vector<8x384xf32> to vector<8x128xf32>
    %353 = vector.extract_strided_slice %351 {offsets = [0, 128], sizes = [8, 128], strides = [1, 1]} : vector<8x384xf32> to vector<8x128xf32>
    %354 = vector.extract_strided_slice %351 {offsets = [0, 256], sizes = [8, 128], strides = [1, 1]} : vector<8x384xf32> to vector<8x128xf32>
    %355 = vector.extract_strided_slice %345 {offsets = [0, 384], sizes = [8, 128], strides = [1, 1]} : vector<8x512xf32> to vector<8x128xf32>
    %356 = math.tanh %355 : vector<8x128xf32>
    %357 = arith.mulf %353, %338 : vector<8x128xf32>
    %358 = arith.mulf %352, %356 : vector<8x128xf32>
    %359 = arith.addf %357, %358 : vector<8x128xf32>
    %360 = math.tanh %359 : vector<8x128xf32>
    %361 = arith.mulf %354, %360 : vector<8x128xf32>
    %c6_i32_114 = arith.constant 6 : i32
    %362 = arith.index_cast %c6_i32_114 : i32 to index
    %c0_115 = arith.constant 0 : index
    %c0_116 = arith.constant 0 : index
    %363 = vector.load %arg10[%362, %c0_115, %c0_116] : memref<8x8x512xf32, #tpu.memory_space<vmem>>, vector<1x8x512xf32>
    %364 = vector.shape_cast %363 : vector<1x8x512xf32> to vector<8x512xf32>
    %cst_117 = arith.constant dense<0.000000e+00> : vector<8x512xf32>
    %365 = tpu.matmul %361, %233, %cst_117 {dimension_numbers = #tpu.dot_dimension_numbers<[1], [0], [0], [1], [0, 0, 1, 1], [], []>} : vector<8x128xf32>, vector<128x512xf32>, vector<8x512xf32> -> vector<8x512xf32>
    %366 = arith.addf %364, %365 : vector<8x512xf32>
    %367 = vector.extract_strided_slice %366 {offsets = [0, 0], sizes = [8, 384], strides = [1, 1]} : vector<8x512xf32> to vector<8x384xf32>
    %368 = arith.negf %367 : vector<8x384xf32>
    %369 = math.exp %368 : vector<8x384xf32>
    %cst_118 = arith.constant 1.000000e+00 : f32
    %370 = vector.broadcast %cst_118 : f32 to vector<8x384xf32>
    %371 = arith.addf %370, %369 : vector<8x384xf32>
    %372 = arith.divf %370, %371 : vector<8x384xf32>
    %373 = vector.extract_strided_slice %372 {offsets = [0, 0], sizes = [8, 128], strides = [1, 1]} : vector<8x384xf32> to vector<8x128xf32>
    %374 = vector.extract_strided_slice %372 {offsets = [0, 128], sizes = [8, 128], strides = [1, 1]} : vector<8x384xf32> to vector<8x128xf32>
    %375 = vector.extract_strided_slice %372 {offsets = [0, 256], sizes = [8, 128], strides = [1, 1]} : vector<8x384xf32> to vector<8x128xf32>
    %376 = vector.extract_strided_slice %366 {offsets = [0, 384], sizes = [8, 128], strides = [1, 1]} : vector<8x512xf32> to vector<8x128xf32>
    %377 = math.tanh %376 : vector<8x128xf32>
    %378 = arith.mulf %374, %359 : vector<8x128xf32>
    %379 = arith.mulf %373, %377 : vector<8x128xf32>
    %380 = arith.addf %378, %379 : vector<8x128xf32>
    %381 = math.tanh %380 : vector<8x128xf32>
    %382 = arith.mulf %375, %381 : vector<8x128xf32>
    %c7_i32_119 = arith.constant 7 : i32
    %383 = arith.index_cast %c7_i32_119 : i32 to index
    %c0_120 = arith.constant 0 : index
    %c0_121 = arith.constant 0 : index
    %384 = vector.load %arg10[%383, %c0_120, %c0_121] : memref<8x8x512xf32, #tpu.memory_space<vmem>>, vector<1x8x512xf32>
    %385 = vector.shape_cast %384 : vector<1x8x512xf32> to vector<8x512xf32>
    %cst_122 = arith.constant dense<0.000000e+00> : vector<8x512xf32>
    %386 = tpu.matmul %382, %233, %cst_122 {dimension_numbers = #tpu.dot_dimension_numbers<[1], [0], [0], [1], [0, 0, 1, 1], [], []>} : vector<8x128xf32>, vector<128x512xf32>, vector<8x512xf32> -> vector<8x512xf32>
    %387 = arith.addf %385, %386 : vector<8x512xf32>
    %388 = vector.extract_strided_slice %387 {offsets = [0, 0], sizes = [8, 384], strides = [1, 1]} : vector<8x512xf32> to vector<8x384xf32>
    %389 = arith.negf %388 : vector<8x384xf32>
    %390 = math.exp %389 : vector<8x384xf32>
    %cst_123 = arith.constant 1.000000e+00 : f32
    %391 = vector.broadcast %cst_123 : f32 to vector<8x384xf32>
    %392 = arith.addf %391, %390 : vector<8x384xf32>
    %393 = arith.divf %391, %392 : vector<8x384xf32>
    %394 = vector.extract_strided_slice %393 {offsets = [0, 0], sizes = [8, 128], strides = [1, 1]} : vector<8x384xf32> to vector<8x128xf32>
    %395 = vector.extract_strided_slice %393 {offsets = [0, 128], sizes = [8, 128], strides = [1, 1]} : vector<8x384xf32> to vector<8x128xf32>
    %396 = vector.extract_strided_slice %393 {offsets = [0, 256], sizes = [8, 128], strides = [1, 1]} : vector<8x384xf32> to vector<8x128xf32>
    %397 = vector.extract_strided_slice %387 {offsets = [0, 384], sizes = [8, 128], strides = [1, 1]} : vector<8x512xf32> to vector<8x128xf32>
    %398 = math.tanh %397 : vector<8x128xf32>
    %399 = arith.mulf %395, %380 : vector<8x128xf32>
    %400 = arith.mulf %394, %398 : vector<8x128xf32>
    %401 = arith.addf %399, %400 : vector<8x128xf32>
    %402 = math.tanh %401 : vector<8x128xf32>
    %403 = arith.mulf %396, %402 : vector<8x128xf32>
    %c8_i32_124 = arith.constant 8 : i32
    %c1 = arith.constant 1 : index
    %c0_125 = arith.constant 0 : index
    %c0_126 = arith.constant 0 : index
    %404 = vector.load %arg8[%c1, %c0_125, %c0_126] : memref<2x8x128xf32, #tpu.memory_space<vmem>>, vector<1x8x128xf32>
    %405 = vector.shape_cast %404 : vector<1x8x128xf32> to vector<8x128xf32>
    %406 = vector.shape_cast %403 : vector<8x128xf32> to vector<1x8x128xf32>
    tpu.vector_store %arg8[%c1, %c0_125, %c0_126], %406 {strides = array<i32>} : memref<2x8x128xf32, #tpu.memory_space<vmem>>, vector<1x8x128xf32>,
    %c1_127 = arith.constant 1 : index
    %c0_128 = arith.constant 0 : index
    %c0_129 = arith.constant 0 : index
    %407 = vector.load %arg9[%c1_127, %c0_128, %c0_129] : memref<2x8x128xf32, #tpu.memory_space<vmem>>, vector<1x8x128xf32>
    %408 = vector.shape_cast %407 : vector<1x8x128xf32> to vector<8x128xf32>
    %409 = vector.shape_cast %401 : vector<8x128xf32> to vector<1x8x128xf32>
    tpu.vector_store %arg9[%c1_127, %c0_128, %c0_129], %409 {strides = array<i32>} : memref<2x8x128xf32, #tpu.memory_space<vmem>>, vector<1x8x128xf32>,
    return
  }
}

</mosaic_0001>

<llo_original>
// kernel: encoder_forward.1
$region0: #{encoder_forward.1}
  #allocation0 [shape = 'u32[]', space=smem, size = 0x4, offset = 0x4, fixed_abs, tag = 'smem constant byte address 0x4 - core index']
  #allocation1 [shape = 'u32[72,128]{1,0:T(1,128)}', space=vmem, size = 0x9000, scoped, tag = 'internal scratch']
  #allocation2 [shape = 'f32[8,8,512]{2,1,0:T(8,128)}', space=vmem, size = 0x20000, scoped, tag = 'scratch operand']
  #allocation3 [shape = 'f32[8,8,128]{2,1,0:T(8,128)}', space=vmem, size = 0x8000, scoped, tag = 'scratch operand']
  %s0 = inlined_call_operand.vmem [shape: s32[64,1], index: 0, kind: input, shape index: {}]
  %s1 = inlined_call_operand.vmem [shape: f32[50,128], index: 1, kind: input, shape index: {}]
  %s2 = inlined_call_operand.vmem [shape: f32[128,512], index: 2, kind: input, shape index: {}]
  %s3 = inlined_call_operand.vmem [shape: f32[128,512], index: 3, kind: input, shape index: {}]
  %s4 = inlined_call_operand.vmem [shape: f32[1,512], index: 4, kind: input, shape index: {}]
  %s5 = inlined_call_operand.vmem [shape: f32[128,512], index: 5, kind: input, shape index: {}]
  %s6 = inlined_call_operand.vmem [shape: f32[128,512], index: 6, kind: input, shape index: {}]
  %s7 = inlined_call_operand.vmem [shape: f32[1,512], index: 7, kind: input, shape index: {}]
  %s8 = inlined_call_operand.vmem [shape: f32[2,8,128], index: 8, kind: output, shape index: {0}]
  %s9 = inlined_call_operand.vmem [shape: f32[2,8,128], index: 9, kind: output, shape index: {1}]
  %10 = xla_tuple %s8, %s9
  %s11 = sld [smem:[#allocation0]]
  $region50: #{encoder_forward.1} parent=0
    _
  %s13 = ssub.s32 1, %s11
  %s14 = scalar_select 0, %s13, %s11
  // Predicated region
  $region2: #{encoder_forward.1} parent=0 // pred_check
    _
  $region3: #{encoder_forward.1} parent=0 // pred_check_branch
    %16 = sbr.rel (0) target = $region5
  $region4: #{encoder_forward.1} parent=0 // pred_region
    _
  $region5: #{encoder_forward.1} parent=0 // pred_fallthru
    _
  // Predicated region
  $region6: #{encoder_forward.1} parent=0 // pred_check
    _
  $region7: #{encoder_forward.1} parent=0 // pred_check_branch
    %18 = sbr.rel (0) target = $region9
  $region8: #{encoder_forward.1} parent=0 // pred_region
    _
  $region9: #{encoder_forward.1} parent=0 // pred_fallthru
    _
  // Predicated region
  $region10: #{encoder_forward.1} parent=0 // pred_check
    _
  $region11: #{encoder_forward.1} parent=0 // pred_check_branch
    %20 = sbr.rel (0) target = $region13
  $region12: #{encoder_forward.1} parent=0 // pred_region
    _
  $region13: #{encoder_forward.1} parent=0 // pred_fallthru
    _
  // Predicated region
  $region14: #{encoder_forward.1} parent=0 // pred_check
    _
  $region15: #{encoder_forward.1} parent=0 // pred_check_branch
    %22 = sbr.rel (0) target = $region17
  $region16: #{encoder_forward.1} parent=0 // pred_region
    _
  $region17: #{encoder_forward.1} parent=0 // pred_fallthru
    _
  // Predicated region
  $region18: #{encoder_forward.1} parent=0 // pred_check
    _
  $region19: #{encoder_forward.1} parent=0 // pred_check_branch
    %24 = sbr.rel (0) target = $region21
  $region20: #{encoder_forward.1} parent=0 // pred_region
    _
  $region21: #{encoder_forward.1} parent=0 // pred_fallthru
    _
  // Predicated region
  $region22: #{encoder_forward.1} parent=0 // pred_check
    _
  $region23: #{encoder_forward.1} parent=0 // pred_check_branch
    %26 = sbr.rel (0) target = $region25
  $region24: #{encoder_forward.1} parent=0 // pred_region
    _
  $region25: #{encoder_forward.1} parent=0 // pred_fallthru
    _
  // Predicated region
  $region26: #{encoder_forward.1} parent=0 // pred_check
    _
  $region27: #{encoder_forward.1} parent=0 // pred_check_branch
    %28 = sbr.rel (0) target = $region29
  $region28: #{encoder_forward.1} parent=0 // pred_region
    _
  $region29: #{encoder_forward.1} parent=0 // pred_fallthru
    _
  // Predicated region
  $region30: #{encoder_forward.1} parent=0 // pred_check
    _
  $region31: #{encoder_forward.1} parent=0 // pred_check_branch
    %30 = sbr.rel (0) target = $region33
  $region32: #{encoder_forward.1} parent=0 // pred_region
    _
  $region33: #{encoder_forward.1} parent=0 // pred_fallthru
    _
  %v31 = vld [vmem:[%s0] sm:$0xff]
  %v32 = vld [vmem:[%s0 + $0x8] sm:$0xff]
  %v33 = vld [vmem:[%s0 + $0x10] sm:$0xff]
  %v34 = vld [vmem:[%s0 + $0x18] sm:$0xff]
  %v35 = vld [vmem:[%s0 + $0x20] sm:$0xff]
  %v36 = vld [vmem:[%s0 + $0x28] sm:$0xff]
  %v37 = vld [vmem:[%s0 + $0x30] sm:$0xff]
  %v38 = vld [vmem:[%s0 + $0x38] sm:$0xff]
  %v39 = vlaneseq
  %v40 = vand.u32 %v39, 127
  %41 = vset.pattern.permute.xlu0 0
  %42 = vperm.xlu0 %41, %v31
  %v43 = vpop.permute.xlu0 %42
  %44 = vset.pattern.permute.xlu0 0
  %45 = vperm.xlu0 %44, %v32
  %v46 = vpop.permute.xlu0 %45
  %47 = vset.pattern.permute.xlu0 0
  %48 = vperm.xlu0 %47, %v33
  %v49 = vpop.permute.xlu0 %48
  %50 = vset.pattern.permute.xlu0 0
  %51 = vperm.xlu0 %50, %v34
  %v52 = vpop.permute.xlu0 %51
  %53 = vset.pattern.permute.xlu0 0
  %54 = vperm.xlu0 %53, %v35
  %v55 = vpop.permute.xlu0 %54
  %56 = vset.pattern.permute.xlu0 0
  %57 = vperm.xlu0 %56, %v36
  %v58 = vpop.permute.xlu0 %57
  %59 = vset.pattern.permute.xlu0 0
  %60 = vperm.xlu0 %59, %v37
  %v61 = vpop.permute.xlu0 %60
  %62 = vset.pattern.permute.xlu0 0
  %63 = vperm.xlu0 %62, %v38
  %v64 = vpop.permute.xlu0 %63
  %vm65 = vcmp.eq.s32.totalorder %v40, %v43
  %vm66 = vcmp.eq.s32.totalorder %v40, %v46
  %vm67 = vcmp.eq.s32.totalorder %v40, %v49
  %vm68 = vcmp.eq.s32.totalorder %v40, %v52
  %vm69 = vcmp.eq.s32.totalorder %v40, %v55
  %vm70 = vcmp.eq.s32.totalorder %v40, %v58
  %vm71 = vcmp.eq.s32.totalorder %v40, %v61
  %vm72 = vcmp.eq.s32.totalorder %v40, %v64
  %v73 = vsel %vm65, 1, 0
  %v74 = vsel %vm66, 1, 0
  %v75 = vsel %vm67, 1, 0
  %v76 = vsel %vm68, 1, 0
  %v77 = vsel %vm69, 1, 0
  %v78 = vsel %vm70, 1, 0
  %v79 = vsel %vm71, 1, 0
  %v80 = vsel %vm72, 1, 0
  %v81 = vcvt.s32.f32 %v73
  %v82 = vcvt.s32.f32 %v74
  %v83 = vcvt.s32.f32 %v75
  %v84 = vcvt.s32.f32 %v76
  %v85 = vcvt.s32.f32 %v77
  %v86 = vcvt.s32.f32 %v78
  %v87 = vcvt.s32.f32 %v79
  %v88 = vcvt.s32.f32 %v80
  %v89 = vld [vmem:[%s1] sm:$0xff]
  %v90 = vld [vmem:[%s1 + $0x8] sm:$0xff]
  %v91 = vld [vmem:[%s1 + $0x10] sm:$0xff]
  %v92 = vld [vmem:[%s1 + $0x18] sm:$0xff]
  %v93 = vld [vmem:[%s1 + $0x20] sm:$0xff]
  %v94 = vld [vmem:[%s1 + $0x28] sm:$0xff]
  %v95 = vld [vmem:[%s1 + $0x30] sm:$0x3]
  %vm96 = vcmask 408576
  %v98 = vsel %vm96, %v81, 0
  %v101 = vsel %vm96, %v82, 0
  %v104 = vsel %vm96, %v83, 0
  %v107 = vsel %vm96, %v84, 0
  %v110 = vsel %vm96, %v85, 0
  %v113 = vsel %vm96, %v86, 0
  %v116 = vsel %vm96, %v87, 0
  %v119 = vsel %vm96, %v88, 0
  %vm121 = vcmask 1041408
  %v123 = vsel %vm121, %v95, 0
  %125 = vmatpush.msra.mxu0 0.0
  %126 = vmatpush.msra.mxu0 0.0
  %127 = vmatpush.msra.mxu0 0.0
  %128 = vmatpush.msra.mxu0 0.0
  %129 = vmatpush.msra.mxu0 0.0
  %130 = vmatpush.msra.mxu0 0.0
  %131 = vmatpush.msra.mxu0 0.0
  %132 = vmatpush.msra.mxu0 0.0
  %133 = vmatpush.msra.mxu0 0.0
  %134 = vmatpush.msra.mxu0 %v123
  %135 = vmatpush.msra.mxu0 %v94
  %136 = vmatpush.msra.mxu0 %v93
  %137 = vmatpush.msra.mxu0 %v92
  %138 = vmatpush.msra.mxu0 %v91
  %139 = vmatpush.msra.mxu0 %v90
  %140 = vmatpush.msra.mxu0 %v89
  %141 = vmatmul.f32.gmra.mxu0 %v98
  %v142 = vpop.f32.mrf.mxu0
  %v143 = vadd.f32 0.0, %v142
  %144 = vmatmul.f32.gmra.mxu0 %v101
  %v145 = vpop.f32.mrf.mxu0
  %v146 = vadd.f32 0.0, %v145
  %147 = vmatmul.f32.gmra.mxu0 %v104
  %v148 = vpop.f32.mrf.mxu0
  %v149 = vadd.f32 0.0, %v148
  %150 = vmatmul.f32.gmra.mxu0 %v107
  %v151 = vpop.f32.mrf.mxu0
  %v152 = vadd.f32 0.0, %v151
  %153 = vmatmul.f32.gmra.mxu0 %v110
  %v154 = vpop.f32.mrf.mxu0
  %v155 = vadd.f32 0.0, %v154
  %156 = vmatmul.f32.gmra.mxu0 %v113
  %v157 = vpop.f32.mrf.mxu0
  %v158 = vadd.f32 0.0, %v157
  %159 = vmatmul.f32.gmra.mxu0 %v116
  %v160 = vpop.f32.mrf.mxu0
  %v161 = vadd.f32 0.0, %v160
  %162 = vmatmul.f32.gmra.mxu0 %v119
  %v163 = vpop.f32.mrf.mxu0
  %v164 = vadd.f32 0.0, %v163
  %165 = vdwg.mxu0
  %v166 = vld [vmem:[%s2] sm:$0xff]
  %v167 = vld [vmem:[%s2 + $0x8] sm:$0xff]
  %v168 = vld [vmem:[%s2 + $0x10] sm:$0xff]
  %v169 = vld [vmem:[%s2 + $0x18] sm:$0xff]
  %v170 = vld [vmem:[%s2 + $0x20] sm:$0xff]
  %v171 = vld [vmem:[%s2 + $0x28] sm:$0xff]
  %v172 = vld [vmem:[%s2 + $0x30] sm:$0xff]
  %v173 = vld [vmem:[%s2 + $0x38] sm:$0xff]
  %v174 = vld [vmem:[%s2 + $0x40] sm:$0xff]
  %v175 = vld [vmem:[%s2 + $0x48] sm:$0xff]
  %v176 = vld [vmem:[%s2 + $0x50] sm:$0xff]
  %v177 = vld [vmem:[%s2 + $0x58] sm:$0xff]
  %v178 = vld [vmem:[%s2 + $0x60] sm:$0xff]
  %v179 = vld [vmem:[%s2 + $0x68] sm:$0xff]
  %v180 = vld [vmem:[%s2 + $0x70] sm:$0xff]
  %v181 = vld [vmem:[%s2 + $0x78] sm:$0xff]
  %v182 = vld [vmem:[%s2 + $0x80] sm:$0xff]
  %v183 = vld [vmem:[%s2 + $0x88] sm:$0xff]
  %v184 = vld [vmem:[%s2 + $0x90] sm:$0xff]
  %v185 = vld [vmem:[%s2 + $0x98] sm:$0xff]
  %v186 = vld [vmem:[%s2 + $0xa0] sm:$0xff]
  %v187 = vld [vmem:[%s2 + $0xa8] sm:$0xff]
  %v188 = vld [vmem:[%s2 + $0xb0] sm:$0xff]
  %v189 = vld [vmem:[%s2 + $0xb8] sm:$0xff]
  %v190 = vld [vmem:[%s2 + $0xc0] sm:$0xff]
  %v191 = vld [vmem:[%s2 + $0xc8] sm:$0xff]
  %v192 = vld [vmem:[%s2 + $0xd0] sm:$0xff]
  %v193 = vld [vmem:[%s2 + $0xd8] sm:$0xff]
  %v194 = vld [vmem:[%s2 + $0xe0] sm:$0xff]
  %v195 = vld [vmem:[%s2 + $0xe8] sm:$0xff]
  %v196 = vld [vmem:[%s2 + $0xf0] sm:$0xff]
  %v197 = vld [vmem:[%s2 + $0xf8] sm:$0xff]
  %v198 = vld [vmem:[%s2 + $0x100] sm:$0xff]
  %v199 = vld [vmem:[%s2 + $0x108] sm:$0xff]
  %v200 = vld [vmem:[%s2 + $0x110] sm:$0xff]
  %v201 = vld [vmem:[%s2 + $0x118] sm:$0xff]
  %v202 = vld [vmem:[%s2 + $0x120] sm:$0xff]
  %v203 = vld [vmem:[%s2 + $0x128] sm:$0xff]
  %v204 = vld [vmem:[%s2 + $0x130] sm:$0xff]
  %v205 = vld [vmem:[%s2 + $0x138] sm:$0xff]
  %v206 = vld [vmem:[%s2 + $0x140] sm:$0xff]
  %v207 = vld [vmem:[%s2 + $0x148] sm:$0xff]
  %v208 = vld [vmem:[%s2 + $0x150] sm:$0xff]
  %v209 = vld [vmem:[%s2 + $0x158] sm:$0xff]
  %v210 = vld [vmem:[%s2 + $0x160] sm:$0xff]
  %v211 = vld [vmem:[%s2 + $0x168] sm:$0xff]
  %v212 = vld [vmem:[%s2 + $0x170] sm:$0xff]
  %v213 = vld [vmem:[%s2 + $0x178] sm:$0xff]
  %v214 = vld [vmem:[%s2 + $0x180] sm:$0xff]
  %v215 = vld [vmem:[%s2 + $0x188] sm:$0xff]
  %v216 = vld [vmem:[%s2 + $0x190] sm:$0xff]
  %v217 = vld [vmem:[%s2 + $0x198] sm:$0xff]
  %v218 = vld [vmem:[%s2 + $0x1a0] sm:$0xff]
  %v219 = vld [vmem:[%s2 + $0x1a8] sm:$0xff]
  %v220 = vld [vmem:[%s2 + $0x1b0] sm:$0xff]
  %v221 = vld [vmem:[%s2 + $0x1b8] sm:$0xff]
  %v222 = vld [vmem:[%s2 + $0x1c0] sm:$0xff]
  %v223 = vld [vmem:[%s2 + $0x1c8] sm:$0xff]
  %v224 = vld [vmem:[%s2 + $0x1d0] sm:$0xff]
  %v225 = vld [vmem:[%s2 + $0x1d8] sm:$0xff]
  %v226 = vld [vmem:[%s2 + $0x1e0] sm:$0xff]
  %v227 = vld [vmem:[%s2 + $0x1e8] sm:$0xff]
  %v228 = vld [vmem:[%s2 + $0x1f0] sm:$0xff]
  %v229 = vld [vmem:[%s2 + $0x1f8] sm:$0xff]
  %v230 = vld [vmem:[%s4] sm:$0xf]
  %v232 = vperm.slane %v230, 0
  %v233 = vperm.slane %v230, 1
  %v234 = vperm.slane %v230, 2
  %v235 = vperm.slane %v230, 3
  %240 = vmatpush.msra.mxu0 %v226
  %241 = vmatpush.msra.mxu0 %v222
  %242 = vmatpush.msra.mxu0 %v218
  %243 = vmatpush.msra.mxu0 %v214
  %244 = vmatpush.msra.mxu0 %v210
  %245 = vmatpush.msra.mxu0 %v206
  %246 = vmatpush.msra.mxu0 %v202
  %247 = vmatpush.msra.mxu0 %v198
  %248 = vmatpush.msra.mxu0 %v194
  %249 = vmatpush.msra.mxu0 %v190
  %250 = vmatpush.msra.mxu0 %v186
  %251 = vmatpush.msra.mxu0 %v182
  %252 = vmatpush.msra.mxu0 %v178
  %253 = vmatpush.msra.mxu0 %v174
  %254 = vmatpush.msra.mxu0 %v170
  %255 = vmatpush.msra.mxu0 %v166
  %256 = vmatmul.f32.gmra.mxu0 %v143
  %v257 = vpop.f32.mrf.mxu0
  %v258 = vadd.f32 %v232, %v257
  %259 = vmatmul.f32.gmra.mxu0 %v146
  %v260 = vpop.f32.mrf.mxu0
  %v261 = vadd.f32 %v232, %v260
  %262 = vmatmul.f32.gmra.mxu0 %v149
  %v263 = vpop.f32.mrf.mxu0
  %v264 = vadd.f32 %v232, %v263
  %265 = vmatmul.f32.gmra.mxu0 %v152
  %v266 = vpop.f32.mrf.mxu0
  %v267 = vadd.f32 %v232, %v266
  %268 = vmatmul.f32.gmra.mxu0 %v155
  %v269 = vpop.f32.mrf.mxu0
  %v270 = vadd.f32 %v232, %v269
  %271 = vmatmul.f32.gmra.mxu0 %v158
  %v272 = vpop.f32.mrf.mxu0
  %v273 = vadd.f32 %v232, %v272
  %274 = vmatmul.f32.gmra.mxu0 %v161
  %v275 = vpop.f32.mrf.mxu0
  %v276 = vadd.f32 %v232, %v275
  %277 = vmatmul.f32.gmra.mxu0 %v164
  %v278 = vpop.f32.mrf.mxu0
  %v279 = vadd.f32 %v232, %v278
  %280 = vdwg.mxu0
  %281 = vmatpush.msra.mxu0 %v227
  %282 = vmatpush.msra.mxu0 %v223
  %283 = vmatpush.msra.mxu0 %v219
  %284 = vmatpush.msra.mxu0 %v215
  %285 = vmatpush.msra.mxu0 %v211
  %286 = vmatpush.msra.mxu0 %v207
  %287 = vmatpush.msra.mxu0 %v203
  %288 = vmatpush.msra.mxu0 %v199
  %289 = vmatpush.msra.mxu0 %v195
  %290 = vmatpush.msra.mxu0 %v191
  %291 = vmatpush.msra.mxu0 %v187
  %292 = vmatpush.msra.mxu0 %v183
  %293 = vmatpush.msra.mxu0 %v179
  %294 = vmatpush.msra.mxu0 %v175
  %295 = vmatpush.msra.mxu0 %v171
  %296 = vmatpush.msra.mxu0 %v167
  %297 = vmatmul.f32.gmra.mxu0 %v143
  %v298 = vpop.f32.mrf.mxu0
  %v299 = vadd.f32 %v233, %v298
  %300 = vmatmul.f32.gmra.mxu0 %v146
  %v301 = vpop.f32.mrf.mxu0
  %v302 = vadd.f32 %v233, %v301
  %303 = vmatmul.f32.gmra.mxu0 %v149
  %v304 = vpop.f32.mrf.mxu0
  %v305 = vadd.f32 %v233, %v304
  %306 = vmatmul.f32.gmra.mxu0 %v152
  %v307 = vpop.f32.mrf.mxu0
  %v308 = vadd.f32 %v233, %v307
  %309 = vmatmul.f32.gmra.mxu0 %v155
  %v310 = vpop.f32.mrf.mxu0
  %v311 = vadd.f32 %v233, %v310
  %312 = vmatmul.f32.gmra.mxu0 %v158
  %v313 = vpop.f32.mrf.mxu0
  %v314 = vadd.f32 %v233, %v313
  %315 = vmatmul.f32.gmra.mxu0 %v161
  %v316 = vpop.f32.mrf.mxu0
  %v317 = vadd.f32 %v233, %v316
  %318 = vmatmul.f32.gmra.mxu0 %v164
  %v319 = vpop.f32.mrf.mxu0
  %v320 = vadd.f32 %v233, %v319
  %321 = vdwg.mxu0
  %322 = vmatpush.msra.mxu0 %v228
  %323 = vmatpush.msra.mxu0 %v224
  %324 = vmatpush.msra.mxu0 %v220
  %325 = vmatpush.msra.mxu0 %v216
  %326 = vmatpush.msra.mxu0 %v212
  %327 = vmatpush.msra.mxu0 %v208
  %328 = vmatpush.msra.mxu0 %v204
  %329 = vmatpush.msra.mxu0 %v200
  %330 = vmatpush.msra.mxu0 %v196
  %331 = vmatpush.msra.mxu0 %v192
  %332 = vmatpush.msra.mxu0 %v188
  %333 = vmatpush.msra.mxu0 %v184
  %334 = vmatpush.msra.mxu0 %v180
  %335 = vmatpush.msra.mxu0 %v176
  %336 = vmatpush.msra.mxu0 %v172
  %337 = vmatpush.msra.mxu0 %v168
  %338 = vmatmul.f32.gmra.mxu0 %v143
  %v339 = vpop.f32.mrf.mxu0
  %v340 = vadd.f32 %v234, %v339
  %341 = vmatmul.f32.gmra.mxu0 %v146
  %v342 = vpop.f32.mrf.mxu0
  %v343 = vadd.f32 %v234, %v342
  %344 = vmatmul.f32.gmra.mxu0 %v149
  %v345 = vpop.f32.mrf.mxu0
  %v346 = vadd.f32 %v234, %v345
  %347 = vmatmul.f32.gmra.mxu0 %v152
  %v348 = vpop.f32.mrf.mxu0
  %v349 = vadd.f32 %v234, %v348
  %350 = vmatmul.f32.gmra.mxu0 %v155
  %v351 = vpop.f32.mrf.mxu0
  %v352 = vadd.f32 %v234, %v351
  %353 = vmatmul.f32.gmra.mxu0 %v158
  %v354 = vpop.f32.mrf.mxu0
  %v355 = vadd.f32 %v234, %v354
  %356 = vmatmul.f32.gmra.mxu0 %v161
  %v357 = vpop.f32.mrf.mxu0
  %v358 = vadd.f32 %v234, %v357
  %359 = vmatmul.f32.gmra.mxu0 %v164
  %v360 = vpop.f32.mrf.mxu0
  %v361 = vadd.f32 %v234, %v360
  %362 = vdwg.mxu0
  %363 = vmatpush.msra.mxu0 %v229
  %364 = vmatpush.msra.mxu0 %v225
  %365 = vmatpush.msra.mxu0 %v221
  %366 = vmatpush.msra.mxu0 %v217
  %367 = vmatpush.msra.mxu0 %v213
  %368 = vmatpush.msra.mxu0 %v209
  %369 = vmatpush.msra.mxu0 %v205
  %370 = vmatpush.msra.mxu0 %v201
  %371 = vmatpush.msra.mxu0 %v197
  %372 = vmatpush.msra.mxu0 %v193
  %373 = vmatpush.msra.mxu0 %v189
  %374 = vmatpush.msra.mxu0 %v185
  %375 = vmatpush.msra.mxu0 %v181
  %376 = vmatpush.msra.mxu0 %v177
  %377 = vmatpush.msra.mxu0 %v173
  %378 = vmatpush.msra.mxu0 %v169
  %379 = vmatmul.f32.gmra.mxu0 %v143
  %v380 = vpop.f32.mrf.mxu0
  %v381 = vadd.f32 %v235, %v380
  %382 = vmatmul.f32.gmra.mxu0 %v146
  %v383 = vpop.f32.mrf.mxu0
  %v384 = vadd.f32 %v235, %v383
  %385 = vmatmul.f32.gmra.mxu0 %v149
  %v386 = vpop.f32.mrf.mxu0
  %v387 = vadd.f32 %v235, %v386
  %388 = vmatmul.f32.gmra.mxu0 %v152
  %v389 = vpop.f32.mrf.mxu0
  %v390 = vadd.f32 %v235, %v389
  %391 = vmatmul.f32.gmra.mxu0 %v155
  %v392 = vpop.f32.mrf.mxu0
  %v393 = vadd.f32 %v235, %v392
  %394 = vmatmul.f32.gmra.mxu0 %v158
  %v395 = vpop.f32.mrf.mxu0
  %v396 = vadd.f32 %v235, %v395
  %397 = vmatmul.f32.gmra.mxu0 %v161
  %v398 = vpop.f32.mrf.mxu0
  %v399 = vadd.f32 %v235, %v398
  %400 = vmatmul.f32.gmra.mxu0 %v164
  %v401 = vpop.f32.mrf.mxu0
  %v402 = vadd.f32 %v235, %v401
  %403 = vdwg.mxu0
  %404 = vst [vmem:[#allocation2] sm:$0xff] %v258
  %405 = vst [vmem:[#allocation2 + $0x8] sm:$0xff] %v299
  %406 = vst [vmem:[#allocation2 + $0x10] sm:$0xff] %v340
  %407 = vst [vmem:[#allocation2 + $0x18] sm:$0xff] %v381
  %408 = vst [vmem:[#allocation2 + $0x20] sm:$0xff] %v261
  %409 = vst [vmem:[#allocation2 + $0x28] sm:$0xff] %v302
  %410 = vst [vmem:[#allocation2 + $0x30] sm:$0xff] %v343
  %411 = vst [vmem:[#allocation2 + $0x38] sm:$0xff] %v384
  %412 = vst [vmem:[#allocation2 + $0x40] sm:$0xff] %v264
  %413 = vst [vmem:[#allocation2 + $0x48] sm:$0xff] %v305
  %414 = vst [vmem:[#allocation2 + $0x50] sm:$0xff] %v346
  %415 = vst [vmem:[#allocation2 + $0x58] sm:$0xff] %v387
  %416 = vst [vmem:[#allocation2 + $0x60] sm:$0xff] %v267
  %417 = vst [vmem:[#allocation2 + $0x68] sm:$0xff] %v308
  %418 = vst [vmem:[#allocation2 + $0x70] sm:$0xff] %v349
  %419 = vst [vmem:[#allocation2 + $0x78] sm:$0xff] %v390
  %420 = vst [vmem:[#allocation2 + $0x80] sm:$0xff] %v270
  %421 = vst [vmem:[#allocation2 + $0x88] sm:$0xff] %v311
  %422 = vst [vmem:[#allocation2 + $0x90] sm:$0xff] %v352
  %423 = vst [vmem:[#allocation2 + $0x98] sm:$0xff] %v393
  %424 = vst [vmem:[#allocation2 + $0xa0] sm:$0xff] %v273
  %425 = vst [vmem:[#allocation2 + $0xa8] sm:$0xff] %v314
  %426 = vst [vmem:[#allocation2 + $0xb0] sm:$0xff] %v355
  %427 = vst [vmem:[#allocation2 + $0xb8] sm:$0xff] %v396
  %428 = vst [vmem:[#allocation2 + $0xc0] sm:$0xff] %v276
  %429 = vst [vmem:[#allocation2 + $0xc8] sm:$0xff] %v317
  %430 = vst [vmem:[#allocation2 + $0xd0] sm:$0xff] %v358
  %431 = vst [vmem:[#allocation2 + $0xd8] sm:$0xff] %v399
  %432 = vst [vmem:[#allocation2 + $0xe0] sm:$0xff] %v279
  %433 = vst [vmem:[#allocation2 + $0xe8] sm:$0xff] %v320
  %434 = vst [vmem:[#allocation2 + $0xf0] sm:$0xff] %v361
  %435 = vst [vmem:[#allocation2 + $0xf8] sm:$0xff] %v402
  %v436 = vld [vmem:[%s3] sm:$0xff]
  %v437 = vld [vmem:[%s3 + $0x8] sm:$0xff]
  %v438 = vld [vmem:[%s3 + $0x10] sm:$0xff]
  %v439 = vld [vmem:[%s3 + $0x18] sm:$0xff]
  %v440 = vld [vmem:[%s3 + $0x20] sm:$0xff]
  %v441 = vld [vmem:[%s3 + $0x28] sm:$0xff]
  %v442 = vld [vmem:[%s3 + $0x30] sm:$0xff]
  %v443 = vld [vmem:[%s3 + $0x38] sm:$0xff]
  %v444 = vld [vmem:[%s3 + $0x40] sm:$0xff]
  %v445 = vld [vmem:[%s3 + $0x48] sm:$0xff]
  %v446 = vld [vmem:[%s3 + $0x50] sm:$0xff]
  %v447 = vld [vmem:[%s3 + $0x58] sm:$0xff]
  %v448 = vld [vmem:[%s3 + $0x60] sm:$0xff]
  %v449 = vld [vmem:[%s3 + $0x68] sm:$0xff]
  %v450 = vld [vmem:[%s3 + $0x70] sm:$0xff]
  %v451 = vld [vmem:[%s3 + $0x78] sm:$0xff]
  %v452 = vld [vmem:[%s3 + $0x80] sm:$0xff]
  %v453 = vld [vmem:[%s3 + $0x88] sm:$0xff]
  %v454 = vld [vmem:[%s3 + $0x90] sm:$0xff]
  %v455 = vld [vmem:[%s3 + $0x98] sm:$0xff]
  %v456 = vld [vmem:[%s3 + $0xa0] sm:$0xff]
  %v457 = vld [vmem:[%s3 + $0xa8] sm:$0xff]
  %v458 = vld [vmem:[%s3 + $0xb0] sm:$0xff]
  %v459 = vld [vmem:[%s3 + $0xb8] sm:$0xff]
  %v460 = vld [vmem:[%s3 + $0xc0] sm:$0xff]
  %v461 = vld [vmem:[%s3 + $0xc8] sm:$0xff]
  %v462 = vld [vmem:[%s3 + $0xd0] sm:$0xff]
  %v463 = vld [vmem:[%s3 + $0xd8] sm:$0xff]
  %v464 = vld [vmem:[%s3 + $0xe0] sm:$0xff]
  %v465 = vld [vmem:[%s3 + $0xe8] sm:$0xff]
  %v466 = vld [vmem:[%s3 + $0xf0] sm:$0xff]
  %v467 = vld [vmem:[%s3 + $0xf8] sm:$0xff]
  %v468 = vld [vmem:[%s3 + $0x100] sm:$0xff]
  %v469 = vld [vmem:[%s3 + $0x108] sm:$0xff]
  %v470 = vld [vmem:[%s3 + $0x110] sm:$0xff]
  %v471 = vld [vmem:[%s3 + $0x118] sm:$0xff]
  %v472 = vld [vmem:[%s3 + $0x120] sm:$0xff]
  %v473 = vld [vmem:[%s3 + $0x128] sm:$0xff]
  %v474 = vld [vmem:[%s3 + $0x130] sm:$0xff]
  %v475 = vld [vmem:[%s3 + $0x138] sm:$0xff]
  %v476 = vld [vmem:[%s3 + $0x140] sm:$0xff]
  %v477 = vld [vmem:[%s3 + $0x148] sm:$0xff]
  %v478 = vld [vmem:[%s3 + $0x150] sm:$0xff]
  %v479 = vld [vmem:[%s3 + $0x158] sm:$0xff]
  %v480 = vld [vmem:[%s3 + $0x160] sm:$0xff]
  %v481 = vld [vmem:[%s3 + $0x168] sm:$0xff]
  %v482 = vld [vmem:[%s3 + $0x170] sm:$0xff]
  %v483 = vld [vmem:[%s3 + $0x178] sm:$0xff]
  %v484 = vld [vmem:[%s3 + $0x180] sm:$0xff]
  %v485 = vld [vmem:[%s3 + $0x188] sm:$0xff]
  %v486 = vld [vmem:[%s3 + $0x190] sm:$0xff]
  %v487 = vld [vmem:[%s3 + $0x198] sm:$0xff]
  %v488 = vld [vmem:[%s3 + $0x1a0] sm:$0xff]
  %v489 = vld [vmem:[%s3 + $0x1a8] sm:$0xff]
  %v490 = vld [vmem:[%s3 + $0x1b0] sm:$0xff]
  %v491 = vld [vmem:[%s3 + $0x1b8] sm:$0xff]
  %v492 = vld [vmem:[%s3 + $0x1c0] sm:$0xff]
  %v493 = vld [vmem:[%s3 + $0x1c8] sm:$0xff]
  %v494 = vld [vmem:[%s3 + $0x1d0] sm:$0xff]
  %v495 = vld [vmem:[%s3 + $0x1d8] sm:$0xff]
  %v496 = vld [vmem:[%s3 + $0x1e0] sm:$0xff]
  %v497 = vld [vmem:[%s3 + $0x1e8] sm:$0xff]
  %v498 = vld [vmem:[%s3 + $0x1f0] sm:$0xff]
  %v499 = vld [vmem:[%s3 + $0x1f8] sm:$0xff]
  %v500 = vld [vmem:[#allocation2] sm:$0xff]
  %v501 = vld [vmem:[#allocation2 + $0x8] sm:$0xff]
  %v502 = vld [vmem:[#allocation2 + $0x10] sm:$0xff]
  %v503 = vld [vmem:[#allocation2 + $0x18] sm:$0xff]
  %504 = vmatpush.msra.mxu0 %v496
  %505 = vmatpush.msra.mxu0 %v492
  %506 = vmatpush.msra.mxu0 %v488
  %507 = vmatpush.msra.mxu0 %v484
  %508 = vmatpush.msra.mxu0 %v480
  %509 = vmatpush.msra.mxu0 %v476
  %510 = vmatpush.msra.mxu0 %v472
  %511 = vmatpush.msra.mxu0 %v468
  %512 = vmatpush.msra.mxu0 %v464
  %513 = vmatpush.msra.mxu0 %v460
  %514 = vmatpush.msra.mxu0 %v456
  %515 = vmatpush.msra.mxu0 %v452
  %516 = vmatpush.msra.mxu0 %v448
  %517 = vmatpush.msra.mxu0 %v444
  %518 = vmatpush.msra.mxu0 %v440
  %519 = vmatpush.msra.mxu0 %v436
  %520 = vmatmul.f32.gmra.mxu0 0.0
  %v521 = vpop.f32.mrf.mxu0
  %v522 = vadd.f32 0.0, %v521
  %523 = vdwg.mxu0
  %524 = vmatpush.msra.mxu0 %v497
  %525 = vmatpush.msra.mxu0 %v493
  %526 = vmatpush.msra.mxu0 %v489
  %527 = vmatpush.msra.mxu0 %v485
  %528 = vmatpush.msra.mxu0 %v481
  %529 = vmatpush.msra.mxu0 %v477
  %530 = vmatpush.msra.mxu0 %v473
  %531 = vmatpush.msra.mxu0 %v469
  %532 = vmatpush.msra.mxu0 %v465
  %533 = vmatpush.msra.mxu0 %v461
  %534 = vmatpush.msra.mxu0 %v457
  %535 = vmatpush.msra.mxu0 %v453
  %536 = vmatpush.msra.mxu0 %v449
  %537 = vmatpush.msra.mxu0 %v445
  %538 = vmatpush.msra.mxu0 %v441
  %539 = vmatpush.msra.mxu0 %v437
  %540 = vmatmul.f32.gmra.mxu0 0.0
  %v541 = vpop.f32.mrf.mxu0
  %v542 = vadd.f32 0.0, %v541
  %543 = vdwg.mxu0
  %544 = vmatpush.msra.mxu0 %v498
  %545 = vmatpush.msra.mxu0 %v494
  %546 = vmatpush.msra.mxu0 %v490
  %547 = vmatpush.msra.mxu0 %v486
  %548 = vmatpush.msra.mxu0 %v482
  %549 = vmatpush.msra.mxu0 %v478
  %550 = vmatpush.msra.mxu0 %v474
  %551 = vmatpush.msra.mxu0 %v470
  %552 = vmatpush.msra.mxu0 %v466
  %553 = vmatpush.msra.mxu0 %v462
  %554 = vmatpush.msra.mxu0 %v458
  %555 = vmatpush.msra.mxu0 %v454
  %556 = vmatpush.msra.mxu0 %v450
  %557 = vmatpush.msra.mxu0 %v446
  %558 = vmatpush.msra.mxu0 %v442
  %559 = vmatpush.msra.mxu0 %v438
  %560 = vmatmul.f32.gmra.mxu0 0.0
  %v561 = vpop.f32.mrf.mxu0
  %v562 = vadd.f32 0.0, %v561
  %563 = vdwg.mxu0
  %564 = vmatpush.msra.mxu0 %v499
  %565 = vmatpush.msra.mxu0 %v495
  %566 = vmatpush.msra.mxu0 %v491
  %567 = vmatpush.msra.mxu0 %v487
  %568 = vmatpush.msra.mxu0 %v483
  %569 = vmatpush.msra.mxu0 %v479
  %570 = vmatpush.msra.mxu0 %v475
  %571 = vmatpush.msra.mxu0 %v471
  %572 = vmatpush.msra.mxu0 %v467
  %573 = vmatpush.msra.mxu0 %v463
  %574 = vmatpush.msra.mxu0 %v459
  %575 = vmatpush.msra.mxu0 %v455
  %576 = vmatpush.msra.mxu0 %v451
  %577 = vmatpush.msra.mxu0 %v447
  %578 = vmatpush.msra.mxu0 %v443
  %579 = vmatpush.msra.mxu0 %v439
  %580 = vmatmul.f32.gmra.mxu0 0.0
  %v581 = vpop.f32.mrf.mxu0
  %v582 = vadd.f32 0.0, %v581
  %583 = vdwg.mxu0
  %v584 = vadd.f32 %v500, %v522
  %v585 = vadd.f32 %v501, %v542
  %v586 = vadd.f32 %v502, %v562
  %v587 = vadd.f32 %v503, %v582
  %v588 = vxor.u32 %v584, 2147483648
  %v589 = vxor.u32 %v585, 2147483648
  %v590 = vxor.u32 %v586, 2147483648
  %v591 = vmul.f32 %v588, 1.442695
  %v592 = vpow.pop %v591
  %v593 = vmul.f32 %v589, 1.442695
  %v594 = vpow.pop %v593
  %v595 = vmul.f32 %v590, 1.442695
  %v596 = vpow.pop %v595
  %v597 = vadd.f32 %v592, 1.0
  %v598 = vadd.f32 %v594, 1.0
  %v599 = vadd.f32 %v596, 1.0
  %v600 = vrcp.pop %v597
  %v601 = vmul.f32 %v597, %v600
  %v602 = vsub.f32 1.0, %v601
  %v603 = vmul.f32 %v600, %v602
  %v604 = vadd.f32 %v600, %v603
  %vm605 = vweird.f32 %v597
  %vm606 = vweird.f32 %v600
  %vm607 = vmor %vm605, %vm606
  %v608 = vsel %vm607, %v600, %v604
  %v609 = vand.u32 2147483647, %v597
  %vm610 = vcmp.eq.f32.partialorder %v609, 8.507059e+37
  %v611 = vand.u32 %v597, 2147483648
  %v612 = vor.u32 1.1754944e-38, %v611
  %v613 = vsel %vm610, %v612, %v608
  %v614 = vmul.f32 1.0, %v613
  %v615 = vrcp.pop %v598
  %v616 = vmul.f32 %v598, %v615
  %v617 = vsub.f32 1.0, %v616
  %v618 = vmul.f32 %v615, %v617
  %v619 = vadd.f32 %v615, %v618
  %vm620 = vweird.f32 %v598
  %vm621 = vweird.f32 %v615
  %vm622 = vmor %vm620, %vm621
  %v623 = vsel %vm622, %v615, %v619
  %v624 = vand.u32 2147483647, %v598
  %vm625 = vcmp.eq.f32.partialorder %v624, 8.507059e+37
  %v626 = vand.u32 %v598, 2147483648
  %v627 = vor.u32 1.1754944e-38, %v626
  %v628 = vsel %vm625, %v627, %v623
  %v629 = vmul.f32 1.0, %v628
  %v630 = vrcp.pop %v599
  %v631 = vmul.f32 %v599, %v630
  %v632 = vsub.f32 1.0, %v631
  %v633 = vmul.f32 %v630, %v632
  %v634 = vadd.f32 %v630, %v633
  %vm635 = vweird.f32 %v599
  %vm636 = vweird.f32 %v630
  %vm637 = vmor %vm635, %vm636
  %v638 = vsel %vm637, %v630, %v634
  %v639 = vand.u32 2147483647, %v599
  %vm640 = vcmp.eq.f32.partialorder %v639, 8.507059e+37
  %v641 = vand.u32 %v599, 2147483648
  %v642 = vor.u32 1.1754944e-38, %v641
  %v643 = vsel %vm640, %v642, %v638
  %v644 = vmul.f32 1.0, %v643
  %v645 = vtanh.pop %v587
  %v646 = vmul.f32 %v629, 0.0
  %v647 = vmul.f32 %v614, %v645
  %v648 = vadd.f32 %v646, %v647
  %v649 = vtanh.pop %v648
  %v650 = vmul.f32 %v644, %v649
  %651 = vst [vmem:[#allocation3] sm:$0xff] %v650
  %s652 = scalar_lea.vmem [#allocation2], 32
  %v653 = vld [vmem:[%s652] sm:$0xff]
  %v654 = vld [vmem:[%s652 + $0x8] sm:$0xff]
  %v655 = vld [vmem:[%s652 + $0x10] sm:$0xff]
  %v656 = vld [vmem:[%s652 + $0x18] sm:$0xff]
  %657 = vmatpush.msra.mxu0 %v496
  %658 = vmatpush.msra.mxu0 %v492
  %659 = vmatpush.msra.mxu0 %v488
  %660 = vmatpush.msra.mxu0 %v484
  %661 = vmatpush.msra.mxu0 %v480
  %662 = vmatpush.msra.mxu0 %v476
  %663 = vmatpush.msra.mxu0 %v472
  %664 = vmatpush.msra.mxu0 %v468
  %665 = vmatpush.msra.mxu0 %v464
  %666 = vmatpush.msra.mxu0 %v460
  %667 = vmatpush.msra.mxu0 %v456
  %668 = vmatpush.msra.mxu0 %v452
  %669 = vmatpush.msra.mxu0 %v448
  %670 = vmatpush.msra.mxu0 %v444
  %671 = vmatpush.msra.mxu0 %v440
  %672 = vmatpush.msra.mxu0 %v436
  %673 = vmatmul.f32.gmra.mxu0 %v650
  %v674 = vpop.f32.mrf.mxu0
  %v675 = vadd.f32 0.0, %v674
  %676 = vdwg.mxu0
  %677 = vmatpush.msra.mxu0 %v497
  %678 = vmatpush.msra.mxu0 %v493
  %679 = vmatpush.msra.mxu0 %v489
  %680 = vmatpush.msra.mxu0 %v485
  %681 = vmatpush.msra.mxu0 %v481
  %682 = vmatpush.msra.mxu0 %v477
  %683 = vmatpush.msra.mxu0 %v473
  %684 = vmatpush.msra.mxu0 %v469
  %685 = vmatpush.msra.mxu0 %v465
  %686 = vmatpush.msra.mxu0 %v461
  %687 = vmatpush.msra.mxu0 %v457
  %688 = vmatpush.msra.mxu0 %v453
  %689 = vmatpush.msra.mxu0 %v449
  %690 = vmatpush.msra.mxu0 %v445
  %691 = vmatpush.msra.mxu0 %v441
  %692 = vmatpush.msra.mxu0 %v437
  %693 = vmatmul.f32.gmra.mxu0 %v650
  %v694 = vpop.f32.mrf.mxu0
  %v695 = vadd.f32 0.0, %v694
  %696 = vdwg.mxu0
  %697 = vmatpush.msra.mxu0 %v498
  %698 = vmatpush.msra.mxu0 %v494
  %699 = vmatpush.msra.mxu0 %v490
  %700 = vmatpush.msra.mxu0 %v486
  %701 = vmatpush.msra.mxu0 %v482
  %702 = vmatpush.msra.mxu0 %v478
  %703 = vmatpush.msra.mxu0 %v474
  %704 = vmatpush.msra.mxu0 %v470
  %705 = vmatpush.msra.mxu0 %v466
  %706 = vmatpush.msra.mxu0 %v462
  %707 = vmatpush.msra.mxu0 %v458
  %708 = vmatpush.msra.mxu0 %v454
  %709 = vmatpush.msra.mxu0 %v450
  %710 = vmatpush.msra.mxu0 %v446
  %711 = vmatpush.msra.mxu0 %v442
  %712 = vmatpush.msra.mxu0 %v438
  %713 = vmatmul.f32.gmra.mxu0 %v650
  %v714 = vpop.f32.mrf.mxu0
  %v715 = vadd.f32 0.0, %v714
  %716 = vdwg.mxu0
  %717 = vmatpush.msra.mxu0 %v499
  %718 = vmatpush.msra.mxu0 %v495
  %719 = vmatpush.msra.mxu0 %v491
  %720 = vmatpush.msra.mxu0 %v487
  %721 = vmatpush.msra.mxu0 %v483
  %722 = vmatpush.msra.mxu0 %v479
  %723 = vmatpush.msra.mxu0 %v475
  %724 = vmatpush.msra.mxu0 %v471
  %725 = vmatpush.msra.mxu0 %v467
  %726 = vmatpush.msra.mxu0 %v463
  %727 = vmatpush.msra.mxu0 %v459
  %728 = vmatpush.msra.mxu0 %v455
  %729 = vmatpush.msra.mxu0 %v451
  %730 = vmatpush.msra.mxu0 %v447
  %731 = vmatpush.msra.mxu0 %v443
  %732 = vmatpush.msra.mxu0 %v439
  %733 = vmatmul.f32.gmra.mxu0 %v650
  %v734 = vpop.f32.mrf.mxu0
  %v735 = vadd.f32 0.0, %v734
  %736 = vdwg.mxu0
  %v737 = vadd.f32 %v653, %v675
  %v738 = vadd.f32 %v654, %v695
  %v739 = vadd.f32 %v655, %v715
  %v740 = vadd.f32 %v656, %v735
  %v741 = vxor.u32 %v737, 2147483648
  %v742 = vxor.u32 %v738, 2147483648
  %v743 = vxor.u32 %v739, 2147483648
  %v744 = vmul.f32 %v741, 1.442695
  %v745 = vpow.pop %v744
  %v746 = vmul.f32 %v742, 1.442695
  %v747 = vpow.pop %v746
  %v748 = vmul.f32 %v743, 1.442695
  %v749 = vpow.pop %v748
  %v750 = vadd.f32 %v745, 1.0
  %v751 = vadd.f32 %v747, 1.0
  %v752 = vadd.f32 %v749, 1.0
  %v753 = vrcp.pop %v750
  %v754 = vmul.f32 %v750, %v753
  %v755 = vsub.f32 1.0, %v754
  %v756 = vmul.f32 %v753, %v755
  %v757 = vadd.f32 %v753, %v756
  %vm758 = vweird.f32 %v750
  %vm759 = vweird.f32 %v753
  %vm760 = vmor %vm758, %vm759
  %v761 = vsel %vm760, %v753, %v757
  %v762 = vand.u32 2147483647, %v750
  %vm763 = vcmp.eq.f32.partialorder %v762, 8.507059e+37
  %v764 = vand.u32 %v750, 2147483648
  %v765 = vor.u32 1.1754944e-38, %v764
  %v766 = vsel %vm763, %v765, %v761
  %v767 = vmul.f32 1.0, %v766
  %v768 = vrcp.pop %v751
  %v769 = vmul.f32 %v751, %v768
  %v770 = vsub.f32 1.0, %v769
  %v771 = vmul.f32 %v768, %v770
  %v772 = vadd.f32 %v768, %v771
  %vm773 = vweird.f32 %v751
  %vm774 = vweird.f32 %v768
  %vm775 = vmor %vm773, %vm774
  %v776 = vsel %vm775, %v768, %v772
  %v777 = vand.u32 2147483647, %v751
  %vm778 = vcmp.eq.f32.partialorder %v777, 8.507059e+37
  %v779 = vand.u32 %v751, 2147483648
  %v780 = vor.u32 1.1754944e-38, %v779
  %v781 = vsel %vm778, %v780, %v776
  %v782 = vmul.f32 1.0, %v781
  %v783 = vrcp.pop %v752
  %v784 = vmul.f32 %v752, %v783
  %v785 = vsub.f32 1.0, %v784
  %v786 = vmul.f32 %v783, %v785
  %v787 = vadd.f32 %v783, %v786
  %vm788 = vweird.f32 %v752
  %vm789 = vweird.f32 %v783
  %vm790 = vmor %vm788, %vm789
  %v791 = vsel %vm790, %v783, %v787
  %v792 = vand.u32 2147483647, %v752
  %vm793 = vcmp.eq.f32.partialorder %v792, 8.507059e+37
  %v794 = vand.u32 %v752, 2147483648
  %v795 = vor.u32 1.1754944e-38, %v794
  %v796 = vsel %vm793, %v795, %v791
  %v797 = vmul.f32 1.0, %v796
  %v798 = vtanh.pop %v740
  %v799 = vmul.f32 %v782, %v648
  %v800 = vmul.f32 %v767, %v798
  %v801 = vadd.f32 %v799, %v800
  %v802 = vtanh.pop %v801
  %v803 = vmul.f32 %v797, %v802
  %s804 = scalar_lea.vmem [#allocation3], 8
  %805 = vst [vmem:[%s804] sm:$0xff] %v803
  %s806 = scalar_lea.vmem [#allocation2], 64
  %v807 = vld [vmem:[%s806] sm:$0xff]
  %v808 = vld [vmem:[%s806 + $0x8] sm:$0xff]
  %v809 = vld [vmem:[%s806 + $0x10] sm:$0xff]
  %v810 = vld [vmem:[%s806 + $0x18] sm:$0xff]
  %811 = vmatpush.msra.mxu0 %v496
  %812 = vmatpush.msra.mxu0 %v492
  %813 = vmatpush.msra.mxu0 %v488
  %814 = vmatpush.msra.mxu0 %v484
  %815 = vmatpush.msra.mxu0 %v480
  %816 = vmatpush.msra.mxu0 %v476
  %817 = vmatpush.msra.mxu0 %v472
  %818 = vmatpush.msra.mxu0 %v468
  %819 = vmatpush.msra.mxu0 %v464
  %820 = vmatpush.msra.mxu0 %v460
  %821 = vmatpush.msra.mxu0 %v456
  %822 = vmatpush.msra.mxu0 %v452
  %823 = vmatpush.msra.mxu0 %v448
  %824 = vmatpush.msra.mxu0 %v444
  %825 = vmatpush.msra.mxu0 %v440
  %826 = vmatpush.msra.mxu0 %v436
  %827 = vmatmul.f32.gmra.mxu0 %v803
  %v828 = vpop.f32.mrf.mxu0
  %v829 = vadd.f32 0.0, %v828
  %830 = vdwg.mxu0
  %831 = vmatpush.msra.mxu0 %v497
  %832 = vmatpush.msra.mxu0 %v493
  %833 = vmatpush.msra.mxu0 %v489
  %834 = vmatpush.msra.mxu0 %v485
  %835 = vmatpush.msra.mxu0 %v481
  %836 = vmatpush.msra.mxu0 %v477
  %837 = vmatpush.msra.mxu0 %v473
  %838 = vmatpush.msra.mxu0 %v469
  %839 = vmatpush.msra.mxu0 %v465
  %840 = vmatpush.msra.mxu0 %v461
  %841 = vmatpush.msra.mxu0 %v457
  %842 = vmatpush.msra.mxu0 %v453
  %843 = vmatpush.msra.mxu0 %v449
  %844 = vmatpush.msra.mxu0 %v445
  %845 = vmatpush.msra.mxu0 %v441
  %846 = vmatpush.msra.mxu0 %v437
  %847 = vmatmul.f32.gmra.mxu0 %v803
  %v848 = vpop.f32.mrf.mxu0
  %v849 = vadd.f32 0.0, %v848
  %850 = vdwg.mxu0
  %851 = vmatpush.msra.mxu0 %v498
  %852 = vmatpush.msra.mxu0 %v494
  %853 = vmatpush.msra.mxu0 %v490
  %854 = vmatpush.msra.mxu0 %v486
  %855 = vmatpush.msra.mxu0 %v482
  %856 = vmatpush.msra.mxu0 %v478
  %857 = vmatpush.msra.mxu0 %v474
  %858 = vmatpush.msra.mxu0 %v470
  %859 = vmatpush.msra.mxu0 %v466
  %860 = vmatpush.msra.mxu0 %v462
  %861 = vmatpush.msra.mxu0 %v458
  %862 = vmatpush.msra.mxu0 %v454
  %863 = vmatpush.msra.mxu0 %v450
  %864 = vmatpush.msra.mxu0 %v446
  %865 = vmatpush.msra.mxu0 %v442
  %866 = vmatpush.msra.mxu0 %v438
  %867 = vmatmul.f32.gmra.mxu0 %v803
  %v868 = vpop.f32.mrf.mxu0
  %v869 = vadd.f32 0.0, %v868
  %870 = vdwg.mxu0
  %871 = vmatpush.msra.mxu0 %v499
  %872 = vmatpush.msra.mxu0 %v495
  %873 = vmatpush.msra.mxu0 %v491
  %874 = vmatpush.msra.mxu0 %v487
  %875 = vmatpush.msra.mxu0 %v483
  %876 = vmatpush.msra.mxu0 %v479
  %877 = vmatpush.msra.mxu0 %v475
  %878 = vmatpush.msra.mxu0 %v471
  %879 = vmatpush.msra.mxu0 %v467
  %880 = vmatpush.msra.mxu0 %v463
  %881 = vmatpush.msra.mxu0 %v459
  %882 = vmatpush.msra.mxu0 %v455
  %883 = vmatpush.msra.mxu0 %v451
  %884 = vmatpush.msra.mxu0 %v447
  %885 = vmatpush.msra.mxu0 %v443
  %886 = vmatpush.msra.mxu0 %v439
  %887 = vmatmul.f32.gmra.mxu0 %v803
  %v888 = vpop.f32.mrf.mxu0
  %v889 = vadd.f32 0.0, %v888
  %890 = vdwg.mxu0
  %v891 = vadd.f32 %v807, %v829
  %v892 = vadd.f32 %v808, %v849
  %v893 = vadd.f32 %v809, %v869
  %v894 = vadd.f32 %v810, %v889
  %v895 = vxor.u32 %v891, 2147483648
  %v896 = vxor.u32 %v892, 2147483648
  %v897 = vxor.u32 %v893, 2147483648
  %v898 = vmul.f32 %v895, 1.442695
  %v899 = vpow.pop %v898
  %v900 = vmul.f32 %v896, 1.442695
  %v901 = vpow.pop %v900
  %v902 = vmul.f32 %v897, 1.442695
  %v903 = vpow.pop %v902
  %v904 = vadd.f32 %v899, 1.0
  %v905 = vadd.f32 %v901, 1.0
  %v906 = vadd.f32 %v903, 1.0
  %v907 = vrcp.pop %v904
  %v908 = vmul.f32 %v904, %v907
  %v909 = vsub.f32 1.0, %v908
  %v910 = vmul.f32 %v907, %v909
  %v911 = vadd.f32 %v907, %v910
  %vm912 = vweird.f32 %v904
  %vm913 = vweird.f32 %v907
  %vm914 = vmor %vm912, %vm913
  %v915 = vsel %vm914, %v907, %v911
  %v916 = vand.u32 2147483647, %v904
  %vm917 = vcmp.eq.f32.partialorder %v916, 8.507059e+37
  %v918 = vand.u32 %v904, 2147483648
  %v919 = vor.u32 1.1754944e-38, %v918
  %v920 = vsel %vm917, %v919, %v915
  %v921 = vmul.f32 1.0, %v920
  %v922 = vrcp.pop %v905
  %v923 = vmul.f32 %v905, %v922
  %v924 = vsub.f32 1.0, %v923
  %v925 = vmul.f32 %v922, %v924
  %v926 = vadd.f32 %v922, %v925
  %vm927 = vweird.f32 %v905
  %vm928 = vweird.f32 %v922
  %vm929 = vmor %vm927, %vm928
  %v930 = vsel %vm929, %v922, %v926
  %v931 = vand.u32 2147483647, %v905
  %vm932 = vcmp.eq.f32.partialorder %v931, 8.507059e+37
  %v933 = vand.u32 %v905, 2147483648
  %v934 = vor.u32 1.1754944e-38, %v933
  %v935 = vsel %vm932, %v934, %v930
  %v936 = vmul.f32 1.0, %v935
  %v937 = vrcp.pop %v906
  %v938 = vmul.f32 %v906, %v937
  %v939 = vsub.f32 1.0, %v938
  %v940 = vmul.f32 %v937, %v939
  %v941 = vadd.f32 %v937, %v940
  %vm942 = vweird.f32 %v906
  %vm943 = vweird.f32 %v937
  %vm944 = vmor %vm942, %vm943
  %v945 = vsel %vm944, %v937, %v941
  %v946 = vand.u32 2147483647, %v906
  %vm947 = vcmp.eq.f32.partialorder %v946, 8.507059e+37
  %v948 = vand.u32 %v906, 2147483648
  %v949 = vor.u32 1.1754944e-38, %v948
  %v950 = vsel %vm947, %v949, %v945
  %v951 = vmul.f32 1.0, %v950
  %v952 = vtanh.pop %v894
  %v953 = vmul.f32 %v936, %v801
  %v954 = vmul.f32 %v921, %v952
  %v955 = vadd.f32 %v953, %v954
  %v956 = vtanh.pop %v955
  %v957 = vmul.f32 %v951, %v956
  %s958 = scalar_lea.vmem [#allocation3], 16
  %959 = vst [vmem:[%s958] sm:$0xff] %v957
  %s960 = scalar_lea.vmem [#allocation2], 96
  %v961 = vld [vmem:[%s960] sm:$0xff]
  %v962 = vld [vmem:[%s960 + $0x8] sm:$0xff]
  %v963 = vld [vmem:[%s960 + $0x10] sm:$0xff]
  %v964 = vld [vmem:[%s960 + $0x18] sm:$0xff]
  %965 = vmatpush.msra.mxu0 %v496
  %966 = vmatpush.msra.mxu0 %v492
  %967 = vmatpush.msra.mxu0 %v488
  %968 = vmatpush.msra.mxu0 %v484
  %969 = vmatpush.msra.mxu0 %v480
  %970 = vmatpush.msra.mxu0 %v476
  %971 = vmatpush.msra.mxu0 %v472
  %972 = vmatpush.msra.mxu0 %v468
  %973 = vmatpush.msra.mxu0 %v464
  %974 = vmatpush.msra.mxu0 %v460
  %975 = vmatpush.msra.mxu0 %v456
  %976 = vmatpush.msra.mxu0 %v452
  %977 = vmatpush.msra.mxu0 %v448
  %978 = vmatpush.msra.mxu0 %v444
  %979 = vmatpush.msra.mxu0 %v440
  %980 = vmatpush.msra.mxu0 %v436
  %981 = vmatmul.f32.gmra.mxu0 %v957
  %v982 = vpop.f32.mrf.mxu0
  %v983 = vadd.f32 0.0, %v982
  %984 = vdwg.mxu0
  %985 = vmatpush.msra.mxu0 %v497
  %986 = vmatpush.msra.mxu0 %v493
  %987 = vmatpush.msra.mxu0 %v489
  %988 = vmatpush.msra.mxu0 %v485
  %989 = vmatpush.msra.mxu0 %v481
  %990 = vmatpush.msra.mxu0 %v477
  %991 = vmatpush.msra.mxu0 %v473
  %992 = vmatpush.msra.mxu0 %v469
  %993 = vmatpush.msra.mxu0 %v465
  %994 = vmatpush.msra.mxu0 %v461
  %995 = vmatpush.msra.mxu0 %v457
  %996 = vmatpush.msra.mxu0 %v453
  %997 = vmatpush.msra.mxu0 %v449
  %998 = vmatpush.msra.mxu0 %v445
  %999 = vmatpush.msra.mxu0 %v441
  %1000 = vmatpush.msra.mxu0 %v437
  %1001 = vmatmul.f32.gmra.mxu0 %v957
  %v1002 = vpop.f32.mrf.mxu0
  %v1003 = vadd.f32 0.0, %v1002
  %1004 = vdwg.mxu0
  %1005 = vmatpush.msra.mxu0 %v498
  %1006 = vmatpush.msra.mxu0 %v494
  %1007 = vmatpush.msra.mxu0 %v490
  %1008 = vmatpush.msra.mxu0 %v486
  %1009 = vmatpush.msra.mxu0 %v482
  %1010 = vmatpush.msra.mxu0 %v478
  %1011 = vmatpush.msra.mxu0 %v474
  %1012 = vmatpush.msra.mxu0 %v470
  %1013 = vmatpush.msra.mxu0 %v466
  %1014 = vmatpush.msra.mxu0 %v462
  %1015 = vmatpush.msra.mxu0 %v458
  %1016 = vmatpush.msra.mxu0 %v454
  %1017 = vmatpush.msra.mxu0 %v450
  %1018 = vmatpush.msra.mxu0 %v446
  %1019 = vmatpush.msra.mxu0 %v442
  %1020 = vmatpush.msra.mxu0 %v438
  %1021 = vmatmul.f32.gmra.mxu0 %v957
  %v1022 = vpop.f32.mrf.mxu0
  %v1023 = vadd.f32 0.0, %v1022
  %1024 = vdwg.mxu0
  %1025 = vmatpush.msra.mxu0 %v499
  %1026 = vmatpush.msra.mxu0 %v495
  %1027 = vmatpush.msra.mxu0 %v491
  %1028 = vmatpush.msra.mxu0 %v487
  %1029 = vmatpush.msra.mxu0 %v483
  %1030 = vmatpush.msra.mxu0 %v479
  %1031 = vmatpush.msra.mxu0 %v475
  %1032 = vmatpush.msra.mxu0 %v471
  %1033 = vmatpush.msra.mxu0 %v467
  %1034 = vmatpush.msra.mxu0 %v463
  %1035 = vmatpush.msra.mxu0 %v459
  %1036 = vmatpush.msra.mxu0 %v455
  %1037 = vmatpush.msra.mxu0 %v451
  %1038 = vmatpush.msra.mxu0 %v447
  %1039 = vmatpush.msra.mxu0 %v443
  %1040 = vmatpush.msra.mxu0 %v439
  %1041 = vmatmul.f32.gmra.mxu0 %v957
  %v1042 = vpop.f32.mrf.mxu0
  %v1043 = vadd.f32 0.0, %v1042
  %1044 = vdwg.mxu0
  %v1045 = vadd.f32 %v961, %v983
  %v1046 = vadd.f32 %v962, %v1003
  %v1047 = vadd.f32 %v963, %v1023
  %v1048 = vadd.f32 %v964, %v1043
  %v1049 = vxor.u32 %v1045, 2147483648
  %v1050 = vxor.u32 %v1046, 2147483648
  %v1051 = vxor.u32 %v1047, 2147483648
  %v1052 = vmul.f32 %v1049, 1.442695
  %v1053 = vpow.pop %v1052
  %v1054 = vmul.f32 %v1050, 1.442695
  %v1055 = vpow.pop %v1054
  %v1056 = vmul.f32 %v1051, 1.442695
  %v1057 = vpow.pop %v1056
  %v1058 = vadd.f32 %v1053, 1.0
  %v1059 = vadd.f32 %v1055, 1.0
  %v1060 = vadd.f32 %v1057, 1.0
  %v1061 = vrcp.pop %v1058
  %v1062 = vmul.f32 %v1058, %v1061
  %v1063 = vsub.f32 1.0, %v1062
  %v1064 = vmul.f32 %v1061, %v1063
  %v1065 = vadd.f32 %v1061, %v1064
  %vm1066 = vweird.f32 %v1058
  %vm1067 = vweird.f32 %v1061
  %vm1068 = vmor %vm1066, %vm1067
  %v1069 = vsel %vm1068, %v1061, %v1065
  %v1070 = vand.u32 2147483647, %v1058
  %vm1071 = vcmp.eq.f32.partialorder %v1070, 8.507059e+37
  %v1072 = vand.u32 %v1058, 2147483648
  %v1073 = vor.u32 1.1754944e-38, %v1072
  %v1074 = vsel %vm1071, %v1073, %v1069
  %v1075 = vmul.f32 1.0, %v1074
  %v1076 = vrcp.pop %v1059
  %v1077 = vmul.f32 %v1059, %v1076
  %v1078 = vsub.f32 1.0, %v1077
  %v1079 = vmul.f32 %v1076, %v1078
  %v1080 = vadd.f32 %v1076, %v1079
  %vm1081 = vweird.f32 %v1059
  %vm1082 = vweird.f32 %v1076
  %vm1083 = vmor %vm1081, %vm1082
  %v1084 = vsel %vm1083, %v1076, %v1080
  %v1085 = vand.u32 2147483647, %v1059
  %vm1086 = vcmp.eq.f32.partialorder %v1085, 8.507059e+37
  %v1087 = vand.u32 %v1059, 2147483648
  %v1088 = vor.u32 1.1754944e-38, %v1087
  %v1089 = vsel %vm1086, %v1088, %v1084
  %v1090 = vmul.f32 1.0, %v1089
  %v1091 = vrcp.pop %v1060
  %v1092 = vmul.f32 %v1060, %v1091
  %v1093 = vsub.f32 1.0, %v1092
  %v1094 = vmul.f32 %v1091, %v1093
  %v1095 = vadd.f32 %v1091, %v1094
  %vm1096 = vweird.f32 %v1060
  %vm1097 = vweird.f32 %v1091
  %vm1098 = vmor %vm1096, %vm1097
  %v1099 = vsel %vm1098, %v1091, %v1095
  %v1100 = vand.u32 2147483647, %v1060
  %vm1101 = vcmp.eq.f32.partialorder %v1100, 8.507059e+37
  %v1102 = vand.u32 %v1060, 2147483648
  %v1103 = vor.u32 1.1754944e-38, %v1102
  %v1104 = vsel %vm1101, %v1103, %v1099
  %v1105 = vmul.f32 1.0, %v1104
  %v1106 = vtanh.pop %v1048
  %v1107 = vmul.f32 %v1090, %v955
  %v1108 = vmul.f32 %v1075, %v1106
  %v1109 = vadd.f32 %v1107, %v1108
  %v1110 = vtanh.pop %v1109
  %v1111 = vmul.f32 %v1105, %v1110
  %s1112 = scalar_lea.vmem [#allocation3], 24
  %1113 = vst [vmem:[%s1112] sm:$0xff] %v1111
  %s1114 = scalar_lea.vmem [#allocation2], 128
  %v1115 = vld [vmem:[%s1114] sm:$0xff]
  %v1116 = vld [vmem:[%s1114 + $0x8] sm:$0xff]
  %v1117 = vld [vmem:[%s1114 + $0x10] sm:$0xff]
  %v1118 = vld [vmem:[%s1114 + $0x18] sm:$0xff]
  %1119 = vmatpush.msra.mxu0 %v496
  %1120 = vmatpush.msra.mxu0 %v492
  %1121 = vmatpush.msra.mxu0 %v488
  %1122 = vmatpush.msra.mxu0 %v484
  %1123 = vmatpush.msra.mxu0 %v480
  %1124 = vmatpush.msra.mxu0 %v476
  %1125 = vmatpush.msra.mxu0 %v472
  %1126 = vmatpush.msra.mxu0 %v468
  %1127 = vmatpush.msra.mxu0 %v464
  %1128 = vmatpush.msra.mxu0 %v460
  %1129 = vmatpush.msra.mxu0 %v456
  %1130 = vmatpush.msra.mxu0 %v452
  %1131 = vmatpush.msra.mxu0 %v448
  %1132 = vmatpush.msra.mxu0 %v444
  %1133 = vmatpush.msra.mxu0 %v440
  %1134 = vmatpush.msra.mxu0 %v436
  %1135 = vmatmul.f32.gmra.mxu0 %v1111
  %v1136 = vpop.f32.mrf.mxu0
  %v1137 = vadd.f32 0.0, %v1136
  %1138 = vdwg.mxu0
  %1139 = vmatpush.msra.mxu0 %v497
  %1140 = vmatpush.msra.mxu0 %v493
  %1141 = vmatpush.msra.mxu0 %v489
  %1142 = vmatpush.msra.mxu0 %v485
  %1143 = vmatpush.msra.mxu0 %v481
  %1144 = vmatpush.msra.mxu0 %v477
  %1145 = vmatpush.msra.mxu0 %v473
  %1146 = vmatpush.msra.mxu0 %v469
  %1147 = vmatpush.msra.mxu0 %v465
  %1148 = vmatpush.msra.mxu0 %v461
  %1149 = vmatpush.msra.mxu0 %v457
  %1150 = vmatpush.msra.mxu0 %v453
  %1151 = vmatpush.msra.mxu0 %v449
  %1152 = vmatpush.msra.mxu0 %v445
  %1153 = vmatpush.msra.mxu0 %v441
  %1154 = vmatpush.msra.mxu0 %v437
  %1155 = vmatmul.f32.gmra.mxu0 %v1111
  %v1156 = vpop.f32.mrf.mxu0
  %v1157 = vadd.f32 0.0, %v1156
  %1158 = vdwg.mxu0
  %1159 = vmatpush.msra.mxu0 %v498
  %1160 = vmatpush.msra.mxu0 %v494
  %1161 = vmatpush.msra.mxu0 %v490
  %1162 = vmatpush.msra.mxu0 %v486
  %1163 = vmatpush.msra.mxu0 %v482
  %1164 = vmatpush.msra.mxu0 %v478
  %1165 = vmatpush.msra.mxu0 %v474
  %1166 = vmatpush.msra.mxu0 %v470
  %1167 = vmatpush.msra.mxu0 %v466
  %1168 = vmatpush.msra.mxu0 %v462
  %1169 = vmatpush.msra.mxu0 %v458
  %1170 = vmatpush.msra.mxu0 %v454
  %1171 = vmatpush.msra.mxu0 %v450
  %1172 = vmatpush.msra.mxu0 %v446
  %1173 = vmatpush.msra.mxu0 %v442
  %1174 = vmatpush.msra.mxu0 %v438
  %1175 = vmatmul.f32.gmra.mxu0 %v1111
  %v1176 = vpop.f32.mrf.mxu0
  %v1177 = vadd.f32 0.0, %v1176
  %1178 = vdwg.mxu0
  %1179 = vmatpush.msra.mxu0 %v499
  %1180 = vmatpush.msra.mxu0 %v495
  %1181 = vmatpush.msra.mxu0 %v491
  %1182 = vmatpush.msra.mxu0 %v487
  %1183 = vmatpush.msra.mxu0 %v483
  %1184 = vmatpush.msra.mxu0 %v479
  %1185 = vmatpush.msra.mxu0 %v475
  %1186 = vmatpush.msra.mxu0 %v471
  %1187 = vmatpush.msra.mxu0 %v467
  %1188 = vmatpush.msra.mxu0 %v463
  %1189 = vmatpush.msra.mxu0 %v459
  %1190 = vmatpush.msra.mxu0 %v455
  %1191 = vmatpush.msra.mxu0 %v451
  %1192 = vmatpush.msra.mxu0 %v447
  %1193 = vmatpush.msra.mxu0 %v443
  %1194 = vmatpush.msra.mxu0 %v439
  %1195 = vmatmul.f32.gmra.mxu0 %v1111
  %v1196 = vpop.f32.mrf.mxu0
  %v1197 = vadd.f32 0.0, %v1196
  %1198 = vdwg.mxu0
  %v1199 = vadd.f32 %v1115, %v1137
  %v1200 = vadd.f32 %v1116, %v1157
  %v1201 = vadd.f32 %v1117, %v1177
  %v1202 = vadd.f32 %v1118, %v1197
  %v1203 = vxor.u32 %v1199, 2147483648
  %v1204 = vxor.u32 %v1200, 2147483648
  %v1205 = vxor.u32 %v1201, 2147483648
  %v1206 = vmul.f32 %v1203, 1.442695
  %v1207 = vpow.pop %v1206
  %v1208 = vmul.f32 %v1204, 1.442695
  %v1209 = vpow.pop %v1208
  %v1210 = vmul.f32 %v1205, 1.442695
  %v1211 = vpow.pop %v1210
  %v1212 = vadd.f32 %v1207, 1.0
  %v1213 = vadd.f32 %v1209, 1.0
  %v1214 = vadd.f32 %v1211, 1.0
  %v1215 = vrcp.pop %v1212
  %v1216 = vmul.f32 %v1212, %v1215
  %v1217 = vsub.f32 1.0, %v1216
  %v1218 = vmul.f32 %v1215, %v1217
  %v1219 = vadd.f32 %v1215, %v1218
  %vm1220 = vweird.f32 %v1212
  %vm1221 = vweird.f32 %v1215
  %vm1222 = vmor %vm1220, %vm1221
  %v1223 = vsel %vm1222, %v1215, %v1219
  %v1224 = vand.u32 2147483647, %v1212
  %vm1225 = vcmp.eq.f32.partialorder %v1224, 8.507059e+37
  %v1226 = vand.u32 %v1212, 2147483648
  %v1227 = vor.u32 1.1754944e-38, %v1226
  %v1228 = vsel %vm1225, %v1227, %v1223
  %v1229 = vmul.f32 1.0, %v1228
  %v1230 = vrcp.pop %v1213
  %v1231 = vmul.f32 %v1213, %v1230
  %v1232 = vsub.f32 1.0, %v1231
  %v1233 = vmul.f32 %v1230, %v1232
  %v1234 = vadd.f32 %v1230, %v1233
  %vm1235 = vweird.f32 %v1213
  %vm1236 = vweird.f32 %v1230
  %vm1237 = vmor %vm1235, %vm1236
  %v1238 = vsel %vm1237, %v1230, %v1234
  %v1239 = vand.u32 2147483647, %v1213
  %vm1240 = vcmp.eq.f32.partialorder %v1239, 8.507059e+37
  %v1241 = vand.u32 %v1213, 2147483648
  %v1242 = vor.u32 1.1754944e-38, %v1241
  %v1243 = vsel %vm1240, %v1242, %v1238
  %v1244 = vmul.f32 1.0, %v1243
  %v1245 = vrcp.pop %v1214
  %v1246 = vmul.f32 %v1214, %v1245
  %v1247 = vsub.f32 1.0, %v1246
  %v1248 = vmul.f32 %v1245, %v1247
  %v1249 = vadd.f32 %v1245, %v1248
  %vm1250 = vweird.f32 %v1214
  %vm1251 = vweird.f32 %v1245
  %vm1252 = vmor %vm1250, %vm1251
  %v1253 = vsel %vm1252, %v1245, %v1249
  %v1254 = vand.u32 2147483647, %v1214
  %vm1255 = vcmp.eq.f32.partialorder %v1254, 8.507059e+37
  %v1256 = vand.u32 %v1214, 2147483648
  %v1257 = vor.u32 1.1754944e-38, %v1256
  %v1258 = vsel %vm1255, %v1257, %v1253
  %v1259 = vmul.f32 1.0, %v1258
  %v1260 = vtanh.pop %v1202
  %v1261 = vmul.f32 %v1244, %v1109
  %v1262 = vmul.f32 %v1229, %v1260
  %v1263 = vadd.f32 %v1261, %v1262
  %v1264 = vtanh.pop %v1263
  %v1265 = vmul.f32 %v1259, %v1264
  %s1266 = scalar_lea.vmem [#allocation3], 32
  %1267 = vst [vmem:[%s1266] sm:$0xff] %v1265
  %s1268 = scalar_lea.vmem [#allocation2], 160
  %v1269 = vld [vmem:[%s1268] sm:$0xff]
  %v1270 = vld [vmem:[%s1268 + $0x8] sm:$0xff]
  %v1271 = vld [vmem:[%s1268 + $0x10] sm:$0xff]
  %v1272 = vld [vmem:[%s1268 + $0x18] sm:$0xff]
  %1273 = vmatpush.msra.mxu0 %v496
  %1274 = vmatpush.msra.mxu0 %v492
  %1275 = vmatpush.msra.mxu0 %v488
  %1276 = vmatpush.msra.mxu0 %v484
  %1277 = vmatpush.msra.mxu0 %v480
  %1278 = vmatpush.msra.mxu0 %v476
  %1279 = vmatpush.msra.mxu0 %v472
  %1280 = vmatpush.msra.mxu0 %v468
  %1281 = vmatpush.msra.mxu0 %v464
  %1282 = vmatpush.msra.mxu0 %v460
  %1283 = vmatpush.msra.mxu0 %v456
  %1284 = vmatpush.msra.mxu0 %v452
  %1285 = vmatpush.msra.mxu0 %v448
  %1286 = vmatpush.msra.mxu0 %v444
  %1287 = vmatpush.msra.mxu0 %v440
  %1288 = vmatpush.msra.mxu0 %v436
  %1289 = vmatmul.f32.gmra.mxu0 %v1265
  %v1290 = vpop.f32.mrf.mxu0
  %v1291 = vadd.f32 0.0, %v1290
  %1292 = vdwg.mxu0
  %1293 = vmatpush.msra.mxu0 %v497
  %1294 = vmatpush.msra.mxu0 %v493
  %1295 = vmatpush.msra.mxu0 %v489
  %1296 = vmatpush.msra.mxu0 %v485
  %1297 = vmatpush.msra.mxu0 %v481
  %1298 = vmatpush.msra.mxu0 %v477
  %1299 = vmatpush.msra.mxu0 %v473
  %1300 = vmatpush.msra.mxu0 %v469
  %1301 = vmatpush.msra.mxu0 %v465
  %1302 = vmatpush.msra.mxu0 %v461
  %1303 = vmatpush.msra.mxu0 %v457
  %1304 = vmatpush.msra.mxu0 %v453
  %1305 = vmatpush.msra.mxu0 %v449
  %1306 = vmatpush.msra.mxu0 %v445
  %1307 = vmatpush.msra.mxu0 %v441
  %1308 = vmatpush.msra.mxu0 %v437
  %1309 = vmatmul.f32.gmra.mxu0 %v1265
  %v1310 = vpop.f32.mrf.mxu0
  %v1311 = vadd.f32 0.0, %v1310
  %1312 = vdwg.mxu0
  %1313 = vmatpush.msra.mxu0 %v498
  %1314 = vmatpush.msra.mxu0 %v494
  %1315 = vmatpush.msra.mxu0 %v490
  %1316 = vmatpush.msra.mxu0 %v486
  %1317 = vmatpush.msra.mxu0 %v482
  %1318 = vmatpush.msra.mxu0 %v478
  %1319 = vmatpush.msra.mxu0 %v474
  %1320 = vmatpush.msra.mxu0 %v470
  %1321 = vmatpush.msra.mxu0 %v466
  %1322 = vmatpush.msra.mxu0 %v462
  %1323 = vmatpush.msra.mxu0 %v458
  %1324 = vmatpush.msra.mxu0 %v454
  %1325 = vmatpush.msra.mxu0 %v450
  %1326 = vmatpush.msra.mxu0 %v446
  %1327 = vmatpush.msra.mxu0 %v442
  %1328 = vmatpush.msra.mxu0 %v438
  %1329 = vmatmul.f32.gmra.mxu0 %v1265
  %v1330 = vpop.f32.mrf.mxu0
  %v1331 = vadd.f32 0.0, %v1330
  %1332 = vdwg.mxu0
  %1333 = vmatpush.msra.mxu0 %v499
  %1334 = vmatpush.msra.mxu0 %v495
  %1335 = vmatpush.msra.mxu0 %v491
  %1336 = vmatpush.msra.mxu0 %v487
  %1337 = vmatpush.msra.mxu0 %v483
  %1338 = vmatpush.msra.mxu0 %v479
  %1339 = vmatpush.msra.mxu0 %v475
  %1340 = vmatpush.msra.mxu0 %v471
  %1341 = vmatpush.msra.mxu0 %v467
  %1342 = vmatpush.msra.mxu0 %v463
  %1343 = vmatpush.msra.mxu0 %v459
  %1344 = vmatpush.msra.mxu0 %v455
  %1345 = vmatpush.msra.mxu0 %v451
  %1346 = vmatpush.msra.mxu0 %v447
  %1347 = vmatpush.msra.mxu0 %v443
  %1348 = vmatpush.msra.mxu0 %v439
  %1349 = vmatmul.f32.gmra.mxu0 %v1265
  %v1350 = vpop.f32.mrf.mxu0
  %v1351 = vadd.f32 0.0, %v1350
  %1352 = vdwg.mxu0
  %v1353 = vadd.f32 %v1269, %v1291
  %v1354 = vadd.f32 %v1270, %v1311
  %v1355 = vadd.f32 %v1271, %v1331
  %v1356 = vadd.f32 %v1272, %v1351
  %v1357 = vxor.u32 %v1353, 2147483648
  %v1358 = vxor.u32 %v1354, 2147483648
  %v1359 = vxor.u32 %v1355, 2147483648
  %v1360 = vmul.f32 %v1357, 1.442695
  %v1361 = vpow.pop %v1360
  %v1362 = vmul.f32 %v1358, 1.442695
  %v1363 = vpow.pop %v1362
  %v1364 = vmul.f32 %v1359, 1.442695
  %v1365 = vpow.pop %v1364
  %v1366 = vadd.f32 %v1361, 1.0
  %v1367 = vadd.f32 %v1363, 1.0
  %v1368 = vadd.f32 %v1365, 1.0
  %v1369 = vrcp.pop %v1366
  %v1370 = vmul.f32 %v1366, %v1369
  %v1371 = vsub.f32 1.0, %v1370
  %v1372 = vmul.f32 %v1369, %v1371
  %v1373 = vadd.f32 %v1369, %v1372
  %vm1374 = vweird.f32 %v1366
  %vm1375 = vweird.f32 %v1369
  %vm1376 = vmor %vm1374, %vm1375
  %v1377 = vsel %vm1376, %v1369, %v1373
  %v1378 = vand.u32 2147483647, %v1366
  %vm1379 = vcmp.eq.f32.partialorder %v1378, 8.507059e+37
  %v1380 = vand.u32 %v1366, 2147483648
  %v1381 = vor.u32 1.1754944e-38, %v1380
  %v1382 = vsel %vm1379, %v1381, %v1377
  %v1383 = vmul.f32 1.0, %v1382
  %v1384 = vrcp.pop %v1367
  %v1385 = vmul.f32 %v1367, %v1384
  %v1386 = vsub.f32 1.0, %v1385
  %v1387 = vmul.f32 %v1384, %v1386
  %v1388 = vadd.f32 %v1384, %v1387
  %vm1389 = vweird.f32 %v1367
  %vm1390 = vweird.f32 %v1384
  %vm1391 = vmor %vm1389, %vm1390
  %v1392 = vsel %vm1391, %v1384, %v1388
  %v1393 = vand.u32 2147483647, %v1367
  %vm1394 = vcmp.eq.f32.partialorder %v1393, 8.507059e+37
  %v1395 = vand.u32 %v1367, 2147483648
  %v1396 = vor.u32 1.1754944e-38, %v1395
  %v1397 = vsel %vm1394, %v1396, %v1392
  %v1398 = vmul.f32 1.0, %v1397
  %v1399 = vrcp.pop %v1368
  %v1400 = vmul.f32 %v1368, %v1399
  %v1401 = vsub.f32 1.0, %v1400
  %v1402 = vmul.f32 %v1399, %v1401
  %v1403 = vadd.f32 %v1399, %v1402
  %vm1404 = vweird.f32 %v1368
  %vm1405 = vweird.f32 %v1399
  %vm1406 = vmor %vm1404, %vm1405
  %v1407 = vsel %vm1406, %v1399, %v1403
  %v1408 = vand.u32 2147483647, %v1368
  %vm1409 = vcmp.eq.f32.partialorder %v1408, 8.507059e+37
  %v1410 = vand.u32 %v1368, 2147483648
  %v1411 = vor.u32 1.1754944e-38, %v1410
  %v1412 = vsel %vm1409, %v1411, %v1407
  %v1413 = vmul.f32 1.0, %v1412
  %v1414 = vtanh.pop %v1356
  %v1415 = vmul.f32 %v1398, %v1263
  %v1416 = vmul.f32 %v1383, %v1414
  %v1417 = vadd.f32 %v1415, %v1416
  %v1418 = vtanh.pop %v1417
  %v1419 = vmul.f32 %v1413, %v1418
  %s1420 = scalar_lea.vmem [#allocation3], 40
  %1421 = vst [vmem:[%s1420] sm:$0xff] %v1419
  %s1422 = scalar_lea.vmem [#allocation2], 192
  %v1423 = vld [vmem:[%s1422] sm:$0xff]
  %v1424 = vld [vmem:[%s1422 + $0x8] sm:$0xff]
  %v1425 = vld [vmem:[%s1422 + $0x10] sm:$0xff]
  %v1426 = vld [vmem:[%s1422 + $0x18] sm:$0xff]
  %1427 = vmatpush.msra.mxu0 %v496
  %1428 = vmatpush.msra.mxu0 %v492
  %1429 = vmatpush.msra.mxu0 %v488
  %1430 = vmatpush.msra.mxu0 %v484
  %1431 = vmatpush.msra.mxu0 %v480
  %1432 = vmatpush.msra.mxu0 %v476
  %1433 = vmatpush.msra.mxu0 %v472
  %1434 = vmatpush.msra.mxu0 %v468
  %1435 = vmatpush.msra.mxu0 %v464
  %1436 = vmatpush.msra.mxu0 %v460
  %1437 = vmatpush.msra.mxu0 %v456
  %1438 = vmatpush.msra.mxu0 %v452
  %1439 = vmatpush.msra.mxu0 %v448
  %1440 = vmatpush.msra.mxu0 %v444
  %1441 = vmatpush.msra.mxu0 %v440
  %1442 = vmatpush.msra.mxu0 %v436
  %1443 = vmatmul.f32.gmra.mxu0 %v1419
  %v1444 = vpop.f32.mrf.mxu0
  %v1445 = vadd.f32 0.0, %v1444
  %1446 = vdwg.mxu0
  %1447 = vmatpush.msra.mxu0 %v497
  %1448 = vmatpush.msra.mxu0 %v493
  %1449 = vmatpush.msra.mxu0 %v489
  %1450 = vmatpush.msra.mxu0 %v485
  %1451 = vmatpush.msra.mxu0 %v481
  %1452 = vmatpush.msra.mxu0 %v477
  %1453 = vmatpush.msra.mxu0 %v473
  %1454 = vmatpush.msra.mxu0 %v469
  %1455 = vmatpush.msra.mxu0 %v465
  %1456 = vmatpush.msra.mxu0 %v461
  %1457 = vmatpush.msra.mxu0 %v457
  %1458 = vmatpush.msra.mxu0 %v453
  %1459 = vmatpush.msra.mxu0 %v449
  %1460 = vmatpush.msra.mxu0 %v445
  %1461 = vmatpush.msra.mxu0 %v441
  %1462 = vmatpush.msra.mxu0 %v437
  %1463 = vmatmul.f32.gmra.mxu0 %v1419
  %v1464 = vpop.f32.mrf.mxu0
  %v1465 = vadd.f32 0.0, %v1464
  %1466 = vdwg.mxu0
  %1467 = vmatpush.msra.mxu0 %v498
  %1468 = vmatpush.msra.mxu0 %v494
  %1469 = vmatpush.msra.mxu0 %v490
  %1470 = vmatpush.msra.mxu0 %v486
  %1471 = vmatpush.msra.mxu0 %v482
  %1472 = vmatpush.msra.mxu0 %v478
  %1473 = vmatpush.msra.mxu0 %v474
  %1474 = vmatpush.msra.mxu0 %v470
  %1475 = vmatpush.msra.mxu0 %v466
  %1476 = vmatpush.msra.mxu0 %v462
  %1477 = vmatpush.msra.mxu0 %v458
  %1478 = vmatpush.msra.mxu0 %v454
  %1479 = vmatpush.msra.mxu0 %v450
  %1480 = vmatpush.msra.mxu0 %v446
  %1481 = vmatpush.msra.mxu0 %v442
  %1482 = vmatpush.msra.mxu0 %v438
  %1483 = vmatmul.f32.gmra.mxu0 %v1419
  %v1484 = vpop.f32.mrf.mxu0
  %v1485 = vadd.f32 0.0, %v1484
  %1486 = vdwg.mxu0
  %1487 = vmatpush.msra.mxu0 %v499
  %1488 = vmatpush.msra.mxu0 %v495
  %1489 = vmatpush.msra.mxu0 %v491
  %1490 = vmatpush.msra.mxu0 %v487
  %1491 = vmatpush.msra.mxu0 %v483
  %1492 = vmatpush.msra.mxu0 %v479
  %1493 = vmatpush.msra.mxu0 %v475
  %1494 = vmatpush.msra.mxu0 %v471
  %1495 = vmatpush.msra.mxu0 %v467
  %1496 = vmatpush.msra.mxu0 %v463
  %1497 = vmatpush.msra.mxu0 %v459
  %1498 = vmatpush.msra.mxu0 %v455
  %1499 = vmatpush.msra.mxu0 %v451
  %1500 = vmatpush.msra.mxu0 %v447
  %1501 = vmatpush.msra.mxu0 %v443
  %1502 = vmatpush.msra.mxu0 %v439
  %1503 = vmatmul.f32.gmra.mxu0 %v1419
  %v1504 = vpop.f32.mrf.mxu0
  %v1505 = vadd.f32 0.0, %v1504
  %1506 = vdwg.mxu0
  %v1507 = vadd.f32 %v1423, %v1445
  %v1508 = vadd.f32 %v1424, %v1465
  %v1509 = vadd.f32 %v1425, %v1485
  %v1510 = vadd.f32 %v1426, %v1505
  %v1511 = vxor.u32 %v1507, 2147483648
  %v1512 = vxor.u32 %v1508, 2147483648
  %v1513 = vxor.u32 %v1509, 2147483648
  %v1514 = vmul.f32 %v1511, 1.442695
  %v1515 = vpow.pop %v1514
  %v1516 = vmul.f32 %v1512, 1.442695
  %v1517 = vpow.pop %v1516
  %v1518 = vmul.f32 %v1513, 1.442695
  %v1519 = vpow.pop %v1518
  %v1520 = vadd.f32 %v1515, 1.0
  %v1521 = vadd.f32 %v1517, 1.0
  %v1522 = vadd.f32 %v1519, 1.0
  %v1523 = vrcp.pop %v1520
  %v1524 = vmul.f32 %v1520, %v1523
  %v1525 = vsub.f32 1.0, %v1524
  %v1526 = vmul.f32 %v1523, %v1525
  %v1527 = vadd.f32 %v1523, %v1526
  %vm1528 = vweird.f32 %v1520
  %vm1529 = vweird.f32 %v1523
  %vm1530 = vmor %vm1528, %vm1529
  %v1531 = vsel %vm1530, %v1523, %v1527
  %v1532 = vand.u32 2147483647, %v1520
  %vm1533 = vcmp.eq.f32.partialorder %v1532, 8.507059e+37
  %v1534 = vand.u32 %v1520, 2147483648
  %v1535 = vor.u32 1.1754944e-38, %v1534
  %v1536 = vsel %vm1533, %v1535, %v1531
  %v1537 = vmul.f32 1.0, %v1536
  %v1538 = vrcp.pop %v1521
  %v1539 = vmul.f32 %v1521, %v1538
  %v1540 = vsub.f32 1.0, %v1539
  %v1541 = vmul.f32 %v1538, %v1540
  %v1542 = vadd.f32 %v1538, %v1541
  %vm1543 = vweird.f32 %v1521
  %vm1544 = vweird.f32 %v1538
  %vm1545 = vmor %vm1543, %vm1544
  %v1546 = vsel %vm1545, %v1538, %v1542
  %v1547 = vand.u32 2147483647, %v1521
  %vm1548 = vcmp.eq.f32.partialorder %v1547, 8.507059e+37
  %v1549 = vand.u32 %v1521, 2147483648
  %v1550 = vor.u32 1.1754944e-38, %v1549
  %v1551 = vsel %vm1548, %v1550, %v1546
  %v1552 = vmul.f32 1.0, %v1551
  %v1553 = vrcp.pop %v1522
  %v1554 = vmul.f32 %v1522, %v1553
  %v1555 = vsub.f32 1.0, %v1554
  %v1556 = vmul.f32 %v1553, %v1555
  %v1557 = vadd.f32 %v1553, %v1556
  %vm1558 = vweird.f32 %v1522
  %vm1559 = vweird.f32 %v1553
  %vm1560 = vmor %vm1558, %vm1559
  %v1561 = vsel %vm1560, %v1553, %v1557
  %v1562 = vand.u32 2147483647, %v1522
  %vm1563 = vcmp.eq.f32.partialorder %v1562, 8.507059e+37
  %v1564 = vand.u32 %v1522, 2147483648
  %v1565 = vor.u32 1.1754944e-38, %v1564
  %v1566 = vsel %vm1563, %v1565, %v1561
  %v1567 = vmul.f32 1.0, %v1566
  %v1568 = vtanh.pop %v1510
  %v1569 = vmul.f32 %v1552, %v1417
  %v1570 = vmul.f32 %v1537, %v1568
  %v1571 = vadd.f32 %v1569, %v1570
  %v1572 = vtanh.pop %v1571
  %v1573 = vmul.f32 %v1567, %v1572
  %s1574 = scalar_lea.vmem [#allocation3], 48
  %1575 = vst [vmem:[%s1574] sm:$0xff] %v1573
  %s1576 = scalar_lea.vmem [#allocation2], 224
  %v1577 = vld [vmem:[%s1576] sm:$0xff]
  %v1578 = vld [vmem:[%s1576 + $0x8] sm:$0xff]
  %v1579 = vld [vmem:[%s1576 + $0x10] sm:$0xff]
  %v1580 = vld [vmem:[%s1576 + $0x18] sm:$0xff]
  %1581 = vmatpush.msra.mxu0 %v496
  %1582 = vmatpush.msra.mxu0 %v492
  %1583 = vmatpush.msra.mxu0 %v488
  %1584 = vmatpush.msra.mxu0 %v484
  %1585 = vmatpush.msra.mxu0 %v480
  %1586 = vmatpush.msra.mxu0 %v476
  %1587 = vmatpush.msra.mxu0 %v472
  %1588 = vmatpush.msra.mxu0 %v468
  %1589 = vmatpush.msra.mxu0 %v464
  %1590 = vmatpush.msra.mxu0 %v460
  %1591 = vmatpush.msra.mxu0 %v456
  %1592 = vmatpush.msra.mxu0 %v452
  %1593 = vmatpush.msra.mxu0 %v448
  %1594 = vmatpush.msra.mxu0 %v444
  %1595 = vmatpush.msra.mxu0 %v440
  %1596 = vmatpush.msra.mxu0 %v436
  %1597 = vmatmul.f32.gmra.mxu0 %v1573
  %v1598 = vpop.f32.mrf.mxu0
  %v1599 = vadd.f32 0.0, %v1598
  %1600 = vdwg.mxu0
  %1601 = vmatpush.msra.mxu0 %v497
  %1602 = vmatpush.msra.mxu0 %v493
  %1603 = vmatpush.msra.mxu0 %v489
  %1604 = vmatpush.msra.mxu0 %v485
  %1605 = vmatpush.msra.mxu0 %v481
  %1606 = vmatpush.msra.mxu0 %v477
  %1607 = vmatpush.msra.mxu0 %v473
  %1608 = vmatpush.msra.mxu0 %v469
  %1609 = vmatpush.msra.mxu0 %v465
  %1610 = vmatpush.msra.mxu0 %v461
  %1611 = vmatpush.msra.mxu0 %v457
  %1612 = vmatpush.msra.mxu0 %v453
  %1613 = vmatpush.msra.mxu0 %v449
  %1614 = vmatpush.msra.mxu0 %v445
  %1615 = vmatpush.msra.mxu0 %v441
  %1616 = vmatpush.msra.mxu0 %v437
  %1617 = vmatmul.f32.gmra.mxu0 %v1573
  %v1618 = vpop.f32.mrf.mxu0
  %v1619 = vadd.f32 0.0, %v1618
  %1620 = vdwg.mxu0
  %1621 = vmatpush.msra.mxu0 %v498
  %1622 = vmatpush.msra.mxu0 %v494
  %1623 = vmatpush.msra.mxu0 %v490
  %1624 = vmatpush.msra.mxu0 %v486
  %1625 = vmatpush.msra.mxu0 %v482
  %1626 = vmatpush.msra.mxu0 %v478
  %1627 = vmatpush.msra.mxu0 %v474
  %1628 = vmatpush.msra.mxu0 %v470
  %1629 = vmatpush.msra.mxu0 %v466
  %1630 = vmatpush.msra.mxu0 %v462
  %1631 = vmatpush.msra.mxu0 %v458
  %1632 = vmatpush.msra.mxu0 %v454
  %1633 = vmatpush.msra.mxu0 %v450
  %1634 = vmatpush.msra.mxu0 %v446
  %1635 = vmatpush.msra.mxu0 %v442
  %1636 = vmatpush.msra.mxu0 %v438
  %1637 = vmatmul.f32.gmra.mxu0 %v1573
  %v1638 = vpop.f32.mrf.mxu0
  %v1639 = vadd.f32 0.0, %v1638
  %1640 = vdwg.mxu0
  %1641 = vmatpush.msra.mxu0 %v499
  %1642 = vmatpush.msra.mxu0 %v495
  %1643 = vmatpush.msra.mxu0 %v491
  %1644 = vmatpush.msra.mxu0 %v487
  %1645 = vmatpush.msra.mxu0 %v483
  %1646 = vmatpush.msra.mxu0 %v479
  %1647 = vmatpush.msra.mxu0 %v475
  %1648 = vmatpush.msra.mxu0 %v471
  %1649 = vmatpush.msra.mxu0 %v467
  %1650 = vmatpush.msra.mxu0 %v463
  %1651 = vmatpush.msra.mxu0 %v459
  %1652 = vmatpush.msra.mxu0 %v455
  %1653 = vmatpush.msra.mxu0 %v451
  %1654 = vmatpush.msra.mxu0 %v447
  %1655 = vmatpush.msra.mxu0 %v443
  %1656 = vmatpush.msra.mxu0 %v439
  %1657 = vmatmul.f32.gmra.mxu0 %v1573
  %v1658 = vpop.f32.mrf.mxu0
  %v1659 = vadd.f32 0.0, %v1658
  %1660 = vdwg.mxu0
  %v1661 = vadd.f32 %v1577, %v1599
  %v1662 = vadd.f32 %v1578, %v1619
  %v1663 = vadd.f32 %v1579, %v1639
  %v1664 = vadd.f32 %v1580, %v1659
  %v1665 = vxor.u32 %v1661, 2147483648
  %v1666 = vxor.u32 %v1662, 2147483648
  %v1667 = vxor.u32 %v1663, 2147483648
  %v1668 = vmul.f32 %v1665, 1.442695
  %v1669 = vpow.pop %v1668
  %v1670 = vmul.f32 %v1666, 1.442695
  %v1671 = vpow.pop %v1670
  %v1672 = vmul.f32 %v1667, 1.442695
  %v1673 = vpow.pop %v1672
  %v1674 = vadd.f32 %v1669, 1.0
  %v1675 = vadd.f32 %v1671, 1.0
  %v1676 = vadd.f32 %v1673, 1.0
  %v1677 = vrcp.pop %v1674
  %v1678 = vmul.f32 %v1674, %v1677
  %v1679 = vsub.f32 1.0, %v1678
  %v1680 = vmul.f32 %v1677, %v1679
  %v1681 = vadd.f32 %v1677, %v1680
  %vm1682 = vweird.f32 %v1674
  %vm1683 = vweird.f32 %v1677
  %vm1684 = vmor %vm1682, %vm1683
  %v1685 = vsel %vm1684, %v1677, %v1681
  %v1686 = vand.u32 2147483647, %v1674
  %vm1687 = vcmp.eq.f32.partialorder %v1686, 8.507059e+37
  %v1688 = vand.u32 %v1674, 2147483648
  %v1689 = vor.u32 1.1754944e-38, %v1688
  %v1690 = vsel %vm1687, %v1689, %v1685
  %v1691 = vmul.f32 1.0, %v1690
  %v1692 = vrcp.pop %v1675
  %v1693 = vmul.f32 %v1675, %v1692
  %v1694 = vsub.f32 1.0, %v1693
  %v1695 = vmul.f32 %v1692, %v1694
  %v1696 = vadd.f32 %v1692, %v1695
  %vm1697 = vweird.f32 %v1675
  %vm1698 = vweird.f32 %v1692
  %vm1699 = vmor %vm1697, %vm1698
  %v1700 = vsel %vm1699, %v1692, %v1696
  %v1701 = vand.u32 2147483647, %v1675
  %vm1702 = vcmp.eq.f32.partialorder %v1701, 8.507059e+37
  %v1703 = vand.u32 %v1675, 2147483648
  %v1704 = vor.u32 1.1754944e-38, %v1703
  %v1705 = vsel %vm1702, %v1704, %v1700
  %v1706 = vmul.f32 1.0, %v1705
  %v1707 = vrcp.pop %v1676
  %v1708 = vmul.f32 %v1676, %v1707
  %v1709 = vsub.f32 1.0, %v1708
  %v1710 = vmul.f32 %v1707, %v1709
  %v1711 = vadd.f32 %v1707, %v1710
  %vm1712 = vweird.f32 %v1676
  %vm1713 = vweird.f32 %v1707
  %vm1714 = vmor %vm1712, %vm1713
  %v1715 = vsel %vm1714, %v1707, %v1711
  %v1716 = vand.u32 2147483647, %v1676
  %vm1717 = vcmp.eq.f32.partialorder %v1716, 8.507059e+37
  %v1718 = vand.u32 %v1676, 2147483648
  %v1719 = vor.u32 1.1754944e-38, %v1718
  %v1720 = vsel %vm1717, %v1719, %v1715
  %v1721 = vmul.f32 1.0, %v1720
  %v1722 = vtanh.pop %v1664
  %v1723 = vmul.f32 %v1706, %v1571
  %v1724 = vmul.f32 %v1691, %v1722
  %v1725 = vadd.f32 %v1723, %v1724
  %v1726 = vtanh.pop %v1725
  %v1727 = vmul.f32 %v1721, %v1726
  %s1728 = scalar_lea.vmem [#allocation3], 56
  %1729 = vst [vmem:[%s1728] sm:$0xff] %v1727
  %1730 = vst [vmem:[%s8] sm:$0xff] %v1727
  %1731 = vst [vmem:[%s9] sm:$0xff] %v1725
  %v1732 = vld [vmem:[#allocation3] sm:$0xff]
  %v1733 = vld [vmem:[#allocation3 + $0x8] sm:$0xff]
  %v1734 = vld [vmem:[#allocation3 + $0x10] sm:$0xff]
  %v1735 = vld [vmem:[#allocation3 + $0x18] sm:$0xff]
  %v1736 = vld [vmem:[#allocation3 + $0x20] sm:$0xff]
  %v1737 = vld [vmem:[#allocation3 + $0x28] sm:$0xff]
  %v1738 = vld [vmem:[#allocation3 + $0x30] sm:$0xff]
  %v1739 = vld [vmem:[#allocation3 + $0x38] sm:$0xff]
  %v1740 = vld [vmem:[%s5] sm:$0xff]
  %v1741 = vld [vmem:[%s5 + $0x8] sm:$0xff]
  %v1742 = vld [vmem:[%s5 + $0x10] sm:$0xff]
  %v1743 = vld [vmem:[%s5 + $0x18] sm:$0xff]
  %v1744 = vld [vmem:[%s5 + $0x20] sm:$0xff]
  %v1745 = vld [vmem:[%s5 + $0x28] sm:$0xff]
  %v1746 = vld [vmem:[%s5 + $0x30] sm:$0xff]
  %v1747 = vld [vmem:[%s5 + $0x38] sm:$0xff]
  %v1748 = vld [vmem:[%s5 + $0x40] sm:$0xff]
  %v1749 = vld [vmem:[%s5 + $0x48] sm:$0xff]
  %v1750 = vld [vmem:[%s5 + $0x50] sm:$0xff]
  %v1751 = vld [vmem:[%s5 + $0x58] sm:$0xff]
  %v1752 = vld [vmem:[%s5 + $0x60] sm:$0xff]
  %v1753 = vld [vmem:[%s5 + $0x68] sm:$0xff]
  %v1754 = vld [vmem:[%s5 + $0x70] sm:$0xff]
  %v1755 = vld [vmem:[%s5 + $0x78] sm:$0xff]
  %v1756 = vld [vmem:[%s5 + $0x80] sm:$0xff]
  %v1757 = vld [vmem:[%s5 + $0x88] sm:$0xff]
  %v1758 = vld [vmem:[%s5 + $0x90] sm:$0xff]
  %v1759 = vld [vmem:[%s5 + $0x98] sm:$0xff]
  %v1760 = vld [vmem:[%s5 + $0xa0] sm:$0xff]
  %v1761 = vld [vmem:[%s5 + $0xa8] sm:$0xff]
  %v1762 = vld [vmem:[%s5 + $0xb0] sm:$0xff]
  %v1763 = vld [vmem:[%s5 + $0xb8] sm:$0xff]
  %v1764 = vld [vmem:[%s5 + $0xc0] sm:$0xff]
  %v1765 = vld [vmem:[%s5 + $0xc8] sm:$0xff]
  %v1766 = vld [vmem:[%s5 + $0xd0] sm:$0xff]
  %v1767 = vld [vmem:[%s5 + $0xd8] sm:$0xff]
  %v1768 = vld [vmem:[%s5 + $0xe0] sm:$0xff]
  %v1769 = vld [vmem:[%s5 + $0xe8] sm:$0xff]
  %v1770 = vld [vmem:[%s5 + $0xf0] sm:$0xff]
  %v1771 = vld [vmem:[%s5 + $0xf8] sm:$0xff]
  %v1772 = vld [vmem:[%s5 + $0x100] sm:$0xff]
  %v1773 = vld [vmem:[%s5 + $0x108] sm:$0xff]
  %v1774 = vld [vmem:[%s5 + $0x110] sm:$0xff]
  %v1775 = vld [vmem:[%s5 + $0x118] sm:$0xff]
  %v1776 = vld [vmem:[%s5 + $0x120] sm:$0xff]
  %v1777 = vld [vmem:[%s5 + $0x128] sm:$0xff]
  %v1778 = vld [vmem:[%s5 + $0x130] sm:$0xff]
  %v1779 = vld [vmem:[%s5 + $0x138] sm:$0xff]
  %v1780 = vld [vmem:[%s5 + $0x140] sm:$0xff]
  %v1781 = vld [vmem:[%s5 + $0x148] sm:$0xff]
  %v1782 = vld [vmem:[%s5 + $0x150] sm:$0xff]
  %v1783 = vld [vmem:[%s5 + $0x158] sm:$0xff]
  %v1784 = vld [vmem:[%s5 + $0x160] sm:$0xff]
  %v1785 = vld [vmem:[%s5 + $0x168] sm:$0xff]
  %v1786 = vld [vmem:[%s5 + $0x170] sm:$0xff]
  %v1787 = vld [vmem:[%s5 + $0x178] sm:$0xff]
  %v1788 = vld [vmem:[%s5 + $0x180] sm:$0xff]
  %v1789 = vld [vmem:[%s5 + $0x188] sm:$0xff]
  %v1790 = vld [vmem:[%s5 + $0x190] sm:$0xff]
  %v1791 = vld [vmem:[%s5 + $0x198] sm:$0xff]
  %v1792 = vld [vmem:[%s5 + $0x1a0] sm:$0xff]
  %v1793 = vld [vmem:[%s5 + $0x1a8] sm:$0xff]
  %v1794 = vld [vmem:[%s5 + $0x1b0] sm:$0xff]
  %v1795 = vld [vmem:[%s5 + $0x1b8] sm:$0xff]
  %v1796 = vld [vmem:[%s5 + $0x1c0] sm:$0xff]
  %v1797 = vld [vmem:[%s5 + $0x1c8] sm:$0xff]
  %v1798 = vld [vmem:[%s5 + $0x1d0] sm:$0xff]
  %v1799 = vld [vmem:[%s5 + $0x1d8] sm:$0xff]
  %v1800 = vld [vmem:[%s5 + $0x1e0] sm:$0xff]
  %v1801 = vld [vmem:[%s5 + $0x1e8] sm:$0xff]
  %v1802 = vld [vmem:[%s5 + $0x1f0] sm:$0xff]
  %v1803 = vld [vmem:[%s5 + $0x1f8] sm:$0xff]
  %v1804 = vld [vmem:[%s7] sm:$0xf]
  %v1806 = vperm.slane %v1804, 0
  %v1807 = vperm.slane %v1804, 1
  %v1808 = vperm.slane %v1804, 2
  %v1809 = vperm.slane %v1804, 3
  %1814 = vmatpush.msra.mxu0 %v1800
  %1815 = vmatpush.msra.mxu0 %v1796
  %1816 = vmatpush.msra.mxu0 %v1792
  %1817 = vmatpush.msra.mxu0 %v1788
  %1818 = vmatpush.msra.mxu0 %v1784
  %1819 = vmatpush.msra.mxu0 %v1780
  %1820 = vmatpush.msra.mxu0 %v1776
  %1821 = vmatpush.msra.mxu0 %v1772
  %1822 = vmatpush.msra.mxu0 %v1768
  %1823 = vmatpush.msra.mxu0 %v1764
  %1824 = vmatpush.msra.mxu0 %v1760
  %1825 = vmatpush.msra.mxu0 %v1756
  %1826 = vmatpush.msra.mxu0 %v1752
  %1827 = vmatpush.msra.mxu0 %v1748
  %1828 = vmatpush.msra.mxu0 %v1744
  %1829 = vmatpush.msra.mxu0 %v1740
  %1830 = vmatmul.f32.gmra.mxu0 %v1732
  %v1831 = vpop.f32.mrf.mxu0
  %v1832 = vadd.f32 %v1806, %v1831
  %1833 = vmatmul.f32.gmra.mxu0 %v1733
  %v1834 = vpop.f32.mrf.mxu0
  %v1835 = vadd.f32 %v1806, %v1834
  %1836 = vmatmul.f32.gmra.mxu0 %v1734
  %v1837 = vpop.f32.mrf.mxu0
  %v1838 = vadd.f32 %v1806, %v1837
  %1839 = vmatmul.f32.gmra.mxu0 %v1735
  %v1840 = vpop.f32.mrf.mxu0
  %v1841 = vadd.f32 %v1806, %v1840
  %1842 = vmatmul.f32.gmra.mxu0 %v1736
  %v1843 = vpop.f32.mrf.mxu0
  %v1844 = vadd.f32 %v1806, %v1843
  %1845 = vmatmul.f32.gmra.mxu0 %v1737
  %v1846 = vpop.f32.mrf.mxu0
  %v1847 = vadd.f32 %v1806, %v1846
  %1848 = vmatmul.f32.gmra.mxu0 %v1738
  %v1849 = vpop.f32.mrf.mxu0
  %v1850 = vadd.f32 %v1806, %v1849
  %1851 = vmatmul.f32.gmra.mxu0 %v1739
  %v1852 = vpop.f32.mrf.mxu0
  %v1853 = vadd.f32 %v1806, %v1852
  %1854 = vdwg.mxu0
  %1855 = vmatpush.msra.mxu0 %v1801
  %1856 = vmatpush.msra.mxu0 %v1797
  %1857 = vmatpush.msra.mxu0 %v1793
  %1858 = vmatpush.msra.mxu0 %v1789
  %1859 = vmatpush.msra.mxu0 %v1785
  %1860 = vmatpush.msra.mxu0 %v1781
  %1861 = vmatpush.msra.mxu0 %v1777
  %1862 = vmatpush.msra.mxu0 %v1773
  %1863 = vmatpush.msra.mxu0 %v1769
  %1864 = vmatpush.msra.mxu0 %v1765
  %1865 = vmatpush.msra.mxu0 %v1761
  %1866 = vmatpush.msra.mxu0 %v1757
  %1867 = vmatpush.msra.mxu0 %v1753
  %1868 = vmatpush.msra.mxu0 %v1749
  %1869 = vmatpush.msra.mxu0 %v1745
  %1870 = vmatpush.msra.mxu0 %v1741
  %1871 = vmatmul.f32.gmra.mxu0 %v1732
  %v1872 = vpop.f32.mrf.mxu0
  %v1873 = vadd.f32 %v1807, %v1872
  %1874 = vmatmul.f32.gmra.mxu0 %v1733
  %v1875 = vpop.f32.mrf.mxu0
  %v1876 = vadd.f32 %v1807, %v1875
  %1877 = vmatmul.f32.gmra.mxu0 %v1734
  %v1878 = vpop.f32.mrf.mxu0
  %v1879 = vadd.f32 %v1807, %v1878
  %1880 = vmatmul.f32.gmra.mxu0 %v1735
  %v1881 = vpop.f32.mrf.mxu0
  %v1882 = vadd.f32 %v1807, %v1881
  %1883 = vmatmul.f32.gmra.mxu0 %v1736
  %v1884 = vpop.f32.mrf.mxu0
  %v1885 = vadd.f32 %v1807, %v1884
  %1886 = vmatmul.f32.gmra.mxu0 %v1737
  %v1887 = vpop.f32.mrf.mxu0
  %v1888 = vadd.f32 %v1807, %v1887
  %1889 = vmatmul.f32.gmra.mxu0 %v1738
  %v1890 = vpop.f32.mrf.mxu0
  %v1891 = vadd.f32 %v1807, %v1890
  %1892 = vmatmul.f32.gmra.mxu0 %v1739
  %v1893 = vpop.f32.mrf.mxu0
  %v1894 = vadd.f32 %v1807, %v1893
  %1895 = vdwg.mxu0
  %1896 = vmatpush.msra.mxu0 %v1802
  %1897 = vmatpush.msra.mxu0 %v1798
  %1898 = vmatpush.msra.mxu0 %v1794
  %1899 = vmatpush.msra.mxu0 %v1790
  %1900 = vmatpush.msra.mxu0 %v1786
  %1901 = vmatpush.msra.mxu0 %v1782
  %1902 = vmatpush.msra.mxu0 %v1778
  %1903 = vmatpush.msra.mxu0 %v1774
  %1904 = vmatpush.msra.mxu0 %v1770
  %1905 = vmatpush.msra.mxu0 %v1766
  %1906 = vmatpush.msra.mxu0 %v1762
  %1907 = vmatpush.msra.mxu0 %v1758
  %1908 = vmatpush.msra.mxu0 %v1754
  %1909 = vmatpush.msra.mxu0 %v1750
  %1910 = vmatpush.msra.mxu0 %v1746
  %1911 = vmatpush.msra.mxu0 %v1742
  %1912 = vmatmul.f32.gmra.mxu0 %v1732
  %v1913 = vpop.f32.mrf.mxu0
  %v1914 = vadd.f32 %v1808, %v1913
  %1915 = vmatmul.f32.gmra.mxu0 %v1733
  %v1916 = vpop.f32.mrf.mxu0
  %v1917 = vadd.f32 %v1808, %v1916
  %1918 = vmatmul.f32.gmra.mxu0 %v1734
  %v1919 = vpop.f32.mrf.mxu0
  %v1920 = vadd.f32 %v1808, %v1919
  %1921 = vmatmul.f32.gmra.mxu0 %v1735
  %v1922 = vpop.f32.mrf.mxu0
  %v1923 = vadd.f32 %v1808, %v1922
  %1924 = vmatmul.f32.gmra.mxu0 %v1736
  %v1925 = vpop.f32.mrf.mxu0
  %v1926 = vadd.f32 %v1808, %v1925
  %1927 = vmatmul.f32.gmra.mxu0 %v1737
  %v1928 = vpop.f32.mrf.mxu0
  %v1929 = vadd.f32 %v1808, %v1928
  %1930 = vmatmul.f32.gmra.mxu0 %v1738
  %v1931 = vpop.f32.mrf.mxu0
  %v1932 = vadd.f32 %v1808, %v1931
  %1933 = vmatmul.f32.gmra.mxu0 %v1739
  %v1934 = vpop.f32.mrf.mxu0
  %v1935 = vadd.f32 %v1808, %v1934
  %1936 = vdwg.mxu0
  %1937 = vmatpush.msra.mxu0 %v1803
  %1938 = vmatpush.msra.mxu0 %v1799
  %1939 = vmatpush.msra.mxu0 %v1795
  %1940 = vmatpush.msra.mxu0 %v1791
  %1941 = vmatpush.msra.mxu0 %v1787
  %1942 = vmatpush.msra.mxu0 %v1783
  %1943 = vmatpush.msra.mxu0 %v1779
  %1944 = vmatpush.msra.mxu0 %v1775
  %1945 = vmatpush.msra.mxu0 %v1771
  %1946 = vmatpush.msra.mxu0 %v1767
  %1947 = vmatpush.msra.mxu0 %v1763
  %1948 = vmatpush.msra.mxu0 %v1759
  %1949 = vmatpush.msra.mxu0 %v1755
  %1950 = vmatpush.msra.mxu0 %v1751
  %1951 = vmatpush.msra.mxu0 %v1747
  %1952 = vmatpush.msra.mxu0 %v1743
  %1953 = vmatmul.f32.gmra.mxu0 %v1732
  %v1954 = vpop.f32.mrf.mxu0
  %v1955 = vadd.f32 %v1809, %v1954
  %1956 = vmatmul.f32.gmra.mxu0 %v1733
  %v1957 = vpop.f32.mrf.mxu0
  %v1958 = vadd.f32 %v1809, %v1957
  %1959 = vmatmul.f32.gmra.mxu0 %v1734
  %v1960 = vpop.f32.mrf.mxu0
  %v1961 = vadd.f32 %v1809, %v1960
  %1962 = vmatmul.f32.gmra.mxu0 %v1735
  %v1963 = vpop.f32.mrf.mxu0
  %v1964 = vadd.f32 %v1809, %v1963
  %1965 = vmatmul.f32.gmra.mxu0 %v1736
  %v1966 = vpop.f32.mrf.mxu0
  %v1967 = vadd.f32 %v1809, %v1966
  %1968 = vmatmul.f32.gmra.mxu0 %v1737
  %v1969 = vpop.f32.mrf.mxu0
  %v1970 = vadd.f32 %v1809, %v1969
  %1971 = vmatmul.f32.gmra.mxu0 %v1738
  %v1972 = vpop.f32.mrf.mxu0
  %v1973 = vadd.f32 %v1809, %v1972
  %1974 = vmatmul.f32.gmra.mxu0 %v1739
  %v1975 = vpop.f32.mrf.mxu0
  %v1976 = vadd.f32 %v1809, %v1975
  %1977 = vdwg.mxu0
  %1978 = vst [vmem:[#allocation2] sm:$0xff] %v1832
  %1979 = vst [vmem:[#allocation2 + $0x8] sm:$0xff] %v1873
  %1980 = vst [vmem:[#allocation2 + $0x10] sm:$0xff] %v1914
  %1981 = vst [vmem:[#allocation2 + $0x18] sm:$0xff] %v1955
  %1982 = vst [vmem:[#allocation2 + $0x20] sm:$0xff] %v1835
  %1983 = vst [vmem:[#allocation2 + $0x28] sm:$0xff] %v1876
  %1984 = vst [vmem:[#allocation2 + $0x30] sm:$0xff] %v1917
  %1985 = vst [vmem:[#allocation2 + $0x38] sm:$0xff] %v1958
  %1986 = vst [vmem:[#allocation2 + $0x40] sm:$0xff] %v1838
  %1987 = vst [vmem:[#allocation2 + $0x48] sm:$0xff] %v1879
  %1988 = vst [vmem:[#allocation2 + $0x50] sm:$0xff] %v1920
  %1989 = vst [vmem:[#allocation2 + $0x58] sm:$0xff] %v1961
  %1990 = vst [vmem:[#allocation2 + $0x60] sm:$0xff] %v1841
  %1991 = vst [vmem:[#allocation2 + $0x68] sm:$0xff] %v1882
  %1992 = vst [vmem:[#allocation2 + $0x70] sm:$0xff] %v1923
  %1993 = vst [vmem:[#allocation2 + $0x78] sm:$0xff] %v1964
  %1994 = vst [vmem:[#allocation2 + $0x80] sm:$0xff] %v1844
  %1995 = vst [vmem:[#allocation2 + $0x88] sm:$0xff] %v1885
  %1996 = vst [vmem:[#allocation2 + $0x90] sm:$0xff] %v1926
  %1997 = vst [vmem:[#allocation2 + $0x98] sm:$0xff] %v1967
  %1998 = vst [vmem:[#allocation2 + $0xa0] sm:$0xff] %v1847
  %1999 = vst [vmem:[#allocation2 + $0xa8] sm:$0xff] %v1888
  %2000 = vst [vmem:[#allocation2 + $0xb0] sm:$0xff] %v1929
  %2001 = vst [vmem:[#allocation2 + $0xb8] sm:$0xff] %v1970
  %2002 = vst [vmem:[#allocation2 + $0xc0] sm:$0xff] %v1850
  %2003 = vst [vmem:[#allocation2 + $0xc8] sm:$0xff] %v1891
  %2004 = vst [vmem:[#allocation2 + $0xd0] sm:$0xff] %v1932
  %2005 = vst [vmem:[#allocation2 + $0xd8] sm:$0xff] %v1973
  %2006 = vst [vmem:[#allocation2 + $0xe0] sm:$0xff] %v1853
  %2007 = vst [vmem:[#allocation2 + $0xe8] sm:$0xff] %v1894
  %2008 = vst [vmem:[#allocation2 + $0xf0] sm:$0xff] %v1935
  %2009 = vst [vmem:[#allocation2 + $0xf8] sm:$0xff] %v1976
  %v2010 = vld [vmem:[%s6] sm:$0xff]
  %v2011 = vld [vmem:[%s6 + $0x8] sm:$0xff]
  %v2012 = vld [vmem:[%s6 + $0x10] sm:$0xff]
  %v2013 = vld [vmem:[%s6 + $0x18] sm:$0xff]
  %v2014 = vld [vmem:[%s6 + $0x20] sm:$0xff]
  %v2015 = vld [vmem:[%s6 + $0x28] sm:$0xff]
  %v2016 = vld [vmem:[%s6 + $0x30] sm:$0xff]
  %v2017 = vld [vmem:[%s6 + $0x38] sm:$0xff]
  %v2018 = vld [vmem:[%s6 + $0x40] sm:$0xff]
  %v2019 = vld [vmem:[%s6 + $0x48] sm:$0xff]
  %v2020 = vld [vmem:[%s6 + $0x50] sm:$0xff]
  %v2021 = vld [vmem:[%s6 + $0x58] sm:$0xff]
  %v2022 = vld [vmem:[%s6 + $0x60] sm:$0xff]
  %v2023 = vld [vmem:[%s6 + $0x68] sm:$0xff]
  %v2024 = vld [vmem:[%s6 + $0x70] sm:$0xff]
  %v2025 = vld [vmem:[%s6 + $0x78] sm:$0xff]
  %v2026 = vld [vmem:[%s6 + $0x80] sm:$0xff]
  %v2027 = vld [vmem:[%s6 + $0x88] sm:$0xff]
  %v2028 = vld [vmem:[%s6 + $0x90] sm:$0xff]
  %v2029 = vld [vmem:[%s6 + $0x98] sm:$0xff]
  %v2030 = vld [vmem:[%s6 + $0xa0] sm:$0xff]
  %v2031 = vld [vmem:[%s6 + $0xa8] sm:$0xff]
  %v2032 = vld [vmem:[%s6 + $0xb0] sm:$0xff]
  %v2033 = vld [vmem:[%s6 + $0xb8] sm:$0xff]
  %v2034 = vld [vmem:[%s6 + $0xc0] sm:$0xff]
  %v2035 = vld [vmem:[%s6 + $0xc8] sm:$0xff]
  %v2036 = vld [vmem:[%s6 + $0xd0] sm:$0xff]
  %v2037 = vld [vmem:[%s6 + $0xd8] sm:$0xff]
  %v2038 = vld [vmem:[%s6 + $0xe0] sm:$0xff]
  %v2039 = vld [vmem:[%s6 + $0xe8] sm:$0xff]
  %v2040 = vld [vmem:[%s6 + $0xf0] sm:$0xff]
  %v2041 = vld [vmem:[%s6 + $0xf8] sm:$0xff]
  %v2042 = vld [vmem:[%s6 + $0x100] sm:$0xff]
  %v2043 = vld [vmem:[%s6 + $0x108] sm:$0xff]
  %v2044 = vld [vmem:[%s6 + $0x110] sm:$0xff]
  %v2045 = vld [vmem:[%s6 + $0x118] sm:$0xff]
  %v2046 = vld [vmem:[%s6 + $0x120] sm:$0xff]
  %v2047 = vld [vmem:[%s6 + $0x128] sm:$0xff]
  %v2048 = vld [vmem:[%s6 + $0x130] sm:$0xff]
  %v2049 = vld [vmem:[%s6 + $0x138] sm:$0xff]
  %v2050 = vld [vmem:[%s6 + $0x140] sm:$0xff]
  %v2051 = vld [vmem:[%s6 + $0x148] sm:$0xff]
  %v2052 = vld [vmem:[%s6 + $0x150] sm:$0xff]
  %v2053 = vld [vmem:[%s6 + $0x158] sm:$0xff]
  %v2054 = vld [vmem:[%s6 + $0x160] sm:$0xff]
  %v2055 = vld [vmem:[%s6 + $0x168] sm:$0xff]
  %v2056 = vld [vmem:[%s6 + $0x170] sm:$0xff]
  %v2057 = vld [vmem:[%s6 + $0x178] sm:$0xff]
  %v2058 = vld [vmem:[%s6 + $0x180] sm:$0xff]
  %v2059 = vld [vmem:[%s6 + $0x188] sm:$0xff]
  %v2060 = vld [vmem:[%s6 + $0x190] sm:$0xff]
  %v2061 = vld [vmem:[%s6 + $0x198] sm:$0xff]
  %v2062 = vld [vmem:[%s6 + $0x1a0] sm:$0xff]
  %v2063 = vld [vmem:[%s6 + $0x1a8] sm:$0xff]
  %v2064 = vld [vmem:[%s6 + $0x1b0] sm:$0xff]
  %v2065 = vld [vmem:[%s6 + $0x1b8] sm:$0xff]
  %v2066 = vld [vmem:[%s6 + $0x1c0] sm:$0xff]
  %v2067 = vld [vmem:[%s6 + $0x1c8] sm:$0xff]
  %v2068 = vld [vmem:[%s6 + $0x1d0] sm:$0xff]
  %v2069 = vld [vmem:[%s6 + $0x1d8] sm:$0xff]
  %v2070 = vld [vmem:[%s6 + $0x1e0] sm:$0xff]
  %v2071 = vld [vmem:[%s6 + $0x1e8] sm:$0xff]
  %v2072 = vld [vmem:[%s6 + $0x1f0] sm:$0xff]
  %v2073 = vld [vmem:[%s6 + $0x1f8] sm:$0xff]
  %v2074 = vld [vmem:[#allocation2] sm:$0xff]
  %v2075 = vld [vmem:[#allocation2 + $0x8] sm:$0xff]
  %v2076 = vld [vmem:[#allocation2 + $0x10] sm:$0xff]
  %v2077 = vld [vmem:[#allocation2 + $0x18] sm:$0xff]
  %2078 = vmatpush.msra.mxu0 %v2070
  %2079 = vmatpush.msra.mxu0 %v2066
  %2080 = vmatpush.msra.mxu0 %v2062
  %2081 = vmatpush.msra.mxu0 %v2058
  %2082 = vmatpush.msra.mxu0 %v2054
  %2083 = vmatpush.msra.mxu0 %v2050
  %2084 = vmatpush.msra.mxu0 %v2046
  %2085 = vmatpush.msra.mxu0 %v2042
  %2086 = vmatpush.msra.mxu0 %v2038
  %2087 = vmatpush.msra.mxu0 %v2034
  %2088 = vmatpush.msra.mxu0 %v2030
  %2089 = vmatpush.msra.mxu0 %v2026
  %2090 = vmatpush.msra.mxu0 %v2022
  %2091 = vmatpush.msra.mxu0 %v2018
  %2092 = vmatpush.msra.mxu0 %v2014
  %2093 = vmatpush.msra.mxu0 %v2010
  %2094 = vmatmul.f32.gmra.mxu0 0.0
  %v2095 = vpop.f32.mrf.mxu0
  %v2096 = vadd.f32 0.0, %v2095
  %2097 = vdwg.mxu0
  %2098 = vmatpush.msra.mxu0 %v2071
  %2099 = vmatpush.msra.mxu0 %v2067
  %2100 = vmatpush.msra.mxu0 %v2063
  %2101 = vmatpush.msra.mxu0 %v2059
  %2102 = vmatpush.msra.mxu0 %v2055
  %2103 = vmatpush.msra.mxu0 %v2051
  %2104 = vmatpush.msra.mxu0 %v2047
  %2105 = vmatpush.msra.mxu0 %v2043
  %2106 = vmatpush.msra.mxu0 %v2039
  %2107 = vmatpush.msra.mxu0 %v2035
  %2108 = vmatpush.msra.mxu0 %v2031
  %2109 = vmatpush.msra.mxu0 %v2027
  %2110 = vmatpush.msra.mxu0 %v2023
  %2111 = vmatpush.msra.mxu0 %v2019
  %2112 = vmatpush.msra.mxu0 %v2015
  %2113 = vmatpush.msra.mxu0 %v2011
  %2114 = vmatmul.f32.gmra.mxu0 0.0
  %v2115 = vpop.f32.mrf.mxu0
  %v2116 = vadd.f32 0.0, %v2115
  %2117 = vdwg.mxu0
  %2118 = vmatpush.msra.mxu0 %v2072
  %2119 = vmatpush.msra.mxu0 %v2068
  %2120 = vmatpush.msra.mxu0 %v2064
  %2121 = vmatpush.msra.mxu0 %v2060
  %2122 = vmatpush.msra.mxu0 %v2056
  %2123 = vmatpush.msra.mxu0 %v2052
  %2124 = vmatpush.msra.mxu0 %v2048
  %2125 = vmatpush.msra.mxu0 %v2044
  %2126 = vmatpush.msra.mxu0 %v2040
  %2127 = vmatpush.msra.mxu0 %v2036
  %2128 = vmatpush.msra.mxu0 %v2032
  %2129 = vmatpush.msra.mxu0 %v2028
  %2130 = vmatpush.msra.mxu0 %v2024
  %2131 = vmatpush.msra.mxu0 %v2020
  %2132 = vmatpush.msra.mxu0 %v2016
  %2133 = vmatpush.msra.mxu0 %v2012
  %2134 = vmatmul.f32.gmra.mxu0 0.0
  %v2135 = vpop.f32.mrf.mxu0
  %v2136 = vadd.f32 0.0, %v2135
  %2137 = vdwg.mxu0
  %2138 = vmatpush.msra.mxu0 %v2073
  %2139 = vmatpush.msra.mxu0 %v2069
  %2140 = vmatpush.msra.mxu0 %v2065
  %2141 = vmatpush.msra.mxu0 %v2061
  %2142 = vmatpush.msra.mxu0 %v2057
  %2143 = vmatpush.msra.mxu0 %v2053
  %2144 = vmatpush.msra.mxu0 %v2049
  %2145 = vmatpush.msra.mxu0 %v2045
  %2146 = vmatpush.msra.mxu0 %v2041
  %2147 = vmatpush.msra.mxu0 %v2037
  %2148 = vmatpush.msra.mxu0 %v2033
  %2149 = vmatpush.msra.mxu0 %v2029
  %2150 = vmatpush.msra.mxu0 %v2025
  %2151 = vmatpush.msra.mxu0 %v2021
  %2152 = vmatpush.msra.mxu0 %v2017
  %2153 = vmatpush.msra.mxu0 %v2013
  %2154 = vmatmul.f32.gmra.mxu0 0.0
  %v2155 = vpop.f32.mrf.mxu0
  %v2156 = vadd.f32 0.0, %v2155
  %2157 = vdwg.mxu0
  %v2158 = vadd.f32 %v2074, %v2096
  %v2159 = vadd.f32 %v2075, %v2116
  %v2160 = vadd.f32 %v2076, %v2136
  %v2161 = vadd.f32 %v2077, %v2156
  %v2162 = vxor.u32 %v2158, 2147483648
  %v2163 = vxor.u32 %v2159, 2147483648
  %v2164 = vxor.u32 %v2160, 2147483648
  %v2165 = vmul.f32 %v2162, 1.442695
  %v2166 = vpow.pop %v2165
  %v2167 = vmul.f32 %v2163, 1.442695
  %v2168 = vpow.pop %v2167
  %v2169 = vmul.f32 %v2164, 1.442695
  %v2170 = vpow.pop %v2169
  %v2171 = vadd.f32 %v2166, 1.0
  %v2172 = vadd.f32 %v2168, 1.0
  %v2173 = vadd.f32 %v2170, 1.0
  %v2174 = vrcp.pop %v2171
  %v2175 = vmul.f32 %v2171, %v2174
  %v2176 = vsub.f32 1.0, %v2175
  %v2177 = vmul.f32 %v2174, %v2176
  %v2178 = vadd.f32 %v2174, %v2177
  %vm2179 = vweird.f32 %v2171
  %vm2180 = vweird.f32 %v2174
  %vm2181 = vmor %vm2179, %vm2180
  %v2182 = vsel %vm2181, %v2174, %v2178
  %v2183 = vand.u32 2147483647, %v2171
  %vm2184 = vcmp.eq.f32.partialorder %v2183, 8.507059e+37
  %v2185 = vand.u32 %v2171, 2147483648
  %v2186 = vor.u32 1.1754944e-38, %v2185
  %v2187 = vsel %vm2184, %v2186, %v2182
  %v2188 = vmul.f32 1.0, %v2187
  %v2189 = vrcp.pop %v2172
  %v2190 = vmul.f32 %v2172, %v2189
  %v2191 = vsub.f32 1.0, %v2190
  %v2192 = vmul.f32 %v2189, %v2191
  %v2193 = vadd.f32 %v2189, %v2192
  %vm2194 = vweird.f32 %v2172
  %vm2195 = vweird.f32 %v2189
  %vm2196 = vmor %vm2194, %vm2195
  %v2197 = vsel %vm2196, %v2189, %v2193
  %v2198 = vand.u32 2147483647, %v2172
  %vm2199 = vcmp.eq.f32.partialorder %v2198, 8.507059e+37
  %v2200 = vand.u32 %v2172, 2147483648
  %v2201 = vor.u32 1.1754944e-38, %v2200
  %v2202 = vsel %vm2199, %v2201, %v2197
  %v2203 = vmul.f32 1.0, %v2202
  %v2204 = vrcp.pop %v2173
  %v2205 = vmul.f32 %v2173, %v2204
  %v2206 = vsub.f32 1.0, %v2205
  %v2207 = vmul.f32 %v2204, %v2206
  %v2208 = vadd.f32 %v2204, %v2207
  %vm2209 = vweird.f32 %v2173
  %vm2210 = vweird.f32 %v2204
  %vm2211 = vmor %vm2209, %vm2210
  %v2212 = vsel %vm2211, %v2204, %v2208
  %v2213 = vand.u32 2147483647, %v2173
  %vm2214 = vcmp.eq.f32.partialorder %v2213, 8.507059e+37
  %v2215 = vand.u32 %v2173, 2147483648
  %v2216 = vor.u32 1.1754944e-38, %v2215
  %v2217 = vsel %vm2214, %v2216, %v2212
  %v2218 = vmul.f32 1.0, %v2217
  %v2219 = vtanh.pop %v2161
  %v2220 = vmul.f32 %v2203, 0.0
  %v2221 = vmul.f32 %v2188, %v2219
  %v2222 = vadd.f32 %v2220, %v2221
  %v2223 = vtanh.pop %v2222
  %v2224 = vmul.f32 %v2218, %v2223
  %v2225 = vld [vmem:[%s652] sm:$0xff]
  %v2226 = vld [vmem:[%s652 + $0x8] sm:$0xff]
  %v2227 = vld [vmem:[%s652 + $0x10] sm:$0xff]
  %v2228 = vld [vmem:[%s652 + $0x18] sm:$0xff]
  %2229 = vmatpush.msra.mxu0 %v2070
  %2230 = vmatpush.msra.mxu0 %v2066
  %2231 = vmatpush.msra.mxu0 %v2062
  %2232 = vmatpush.msra.mxu0 %v2058
  %2233 = vmatpush.msra.mxu0 %v2054
  %2234 = vmatpush.msra.mxu0 %v2050
  %2235 = vmatpush.msra.mxu0 %v2046
  %2236 = vmatpush.msra.mxu0 %v2042
  %2237 = vmatpush.msra.mxu0 %v2038
  %2238 = vmatpush.msra.mxu0 %v2034
  %2239 = vmatpush.msra.mxu0 %v2030
  %2240 = vmatpush.msra.mxu0 %v2026
  %2241 = vmatpush.msra.mxu0 %v2022
  %2242 = vmatpush.msra.mxu0 %v2018
  %2243 = vmatpush.msra.mxu0 %v2014
  %2244 = vmatpush.msra.mxu0 %v2010
  %2245 = vmatmul.f32.gmra.mxu0 %v2224
  %v2246 = vpop.f32.mrf.mxu0
  %v2247 = vadd.f32 0.0, %v2246
  %2248 = vdwg.mxu0
  %2249 = vmatpush.msra.mxu0 %v2071
  %2250 = vmatpush.msra.mxu0 %v2067
  %2251 = vmatpush.msra.mxu0 %v2063
  %2252 = vmatpush.msra.mxu0 %v2059
  %2253 = vmatpush.msra.mxu0 %v2055
  %2254 = vmatpush.msra.mxu0 %v2051
  %2255 = vmatpush.msra.mxu0 %v2047
  %2256 = vmatpush.msra.mxu0 %v2043
  %2257 = vmatpush.msra.mxu0 %v2039
  %2258 = vmatpush.msra.mxu0 %v2035
  %2259 = vmatpush.msra.mxu0 %v2031
  %2260 = vmatpush.msra.mxu0 %v2027
  %2261 = vmatpush.msra.mxu0 %v2023
  %2262 = vmatpush.msra.mxu0 %v2019
  %2263 = vmatpush.msra.mxu0 %v2015
  %2264 = vmatpush.msra.mxu0 %v2011
  %2265 = vmatmul.f32.gmra.mxu0 %v2224
  %v2266 = vpop.f32.mrf.mxu0
  %v2267 = vadd.f32 0.0, %v2266
  %2268 = vdwg.mxu0
  %2269 = vmatpush.msra.mxu0 %v2072
  %2270 = vmatpush.msra.mxu0 %v2068
  %2271 = vmatpush.msra.mxu0 %v2064
  %2272 = vmatpush.msra.mxu0 %v2060
  %2273 = vmatpush.msra.mxu0 %v2056
  %2274 = vmatpush.msra.mxu0 %v2052
  %2275 = vmatpush.msra.mxu0 %v2048
  %2276 = vmatpush.msra.mxu0 %v2044
  %2277 = vmatpush.msra.mxu0 %v2040
  %2278 = vmatpush.msra.mxu0 %v2036
  %2279 = vmatpush.msra.mxu0 %v2032
  %2280 = vmatpush.msra.mxu0 %v2028
  %2281 = vmatpush.msra.mxu0 %v2024
  %2282 = vmatpush.msra.mxu0 %v2020
  %2283 = vmatpush.msra.mxu0 %v2016
  %2284 = vmatpush.msra.mxu0 %v2012
  %2285 = vmatmul.f32.gmra.mxu0 %v2224
  %v2286 = vpop.f32.mrf.mxu0
  %v2287 = vadd.f32 0.0, %v2286
  %2288 = vdwg.mxu0
  %2289 = vmatpush.msra.mxu0 %v2073
  %2290 = vmatpush.msra.mxu0 %v2069
  %2291 = vmatpush.msra.mxu0 %v2065
  %2292 = vmatpush.msra.mxu0 %v2061
  %2293 = vmatpush.msra.mxu0 %v2057
  %2294 = vmatpush.msra.mxu0 %v2053
  %2295 = vmatpush.msra.mxu0 %v2049
  %2296 = vmatpush.msra.mxu0 %v2045
  %2297 = vmatpush.msra.mxu0 %v2041
  %2298 = vmatpush.msra.mxu0 %v2037
  %2299 = vmatpush.msra.mxu0 %v2033
  %2300 = vmatpush.msra.mxu0 %v2029
  %2301 = vmatpush.msra.mxu0 %v2025
  %2302 = vmatpush.msra.mxu0 %v2021
  %2303 = vmatpush.msra.mxu0 %v2017
  %2304 = vmatpush.msra.mxu0 %v2013
  %2305 = vmatmul.f32.gmra.mxu0 %v2224
  %v2306 = vpop.f32.mrf.mxu0
  %v2307 = vadd.f32 0.0, %v2306
  %2308 = vdwg.mxu0
  %v2309 = vadd.f32 %v2225, %v2247
  %v2310 = vadd.f32 %v2226, %v2267
  %v2311 = vadd.f32 %v2227, %v2287
  %v2312 = vadd.f32 %v2228, %v2307
  %v2313 = vxor.u32 %v2309, 2147483648
  %v2314 = vxor.u32 %v2310, 2147483648
  %v2315 = vxor.u32 %v2311, 2147483648
  %v2316 = vmul.f32 %v2313, 1.442695
  %v2317 = vpow.pop %v2316
  %v2318 = vmul.f32 %v2314, 1.442695
  %v2319 = vpow.pop %v2318
  %v2320 = vmul.f32 %v2315, 1.442695
  %v2321 = vpow.pop %v2320
  %v2322 = vadd.f32 %v2317, 1.0
  %v2323 = vadd.f32 %v2319, 1.0
  %v2324 = vadd.f32 %v2321, 1.0
  %v2325 = vrcp.pop %v2322
  %v2326 = vmul.f32 %v2322, %v2325
  %v2327 = vsub.f32 1.0, %v2326
  %v2328 = vmul.f32 %v2325, %v2327
  %v2329 = vadd.f32 %v2325, %v2328
  %vm2330 = vweird.f32 %v2322
  %vm2331 = vweird.f32 %v2325
  %vm2332 = vmor %vm2330, %vm2331
  %v2333 = vsel %vm2332, %v2325, %v2329
  %v2334 = vand.u32 2147483647, %v2322
  %vm2335 = vcmp.eq.f32.partialorder %v2334, 8.507059e+37
  %v2336 = vand.u32 %v2322, 2147483648
  %v2337 = vor.u32 1.1754944e-38, %v2336
  %v2338 = vsel %vm2335, %v2337, %v2333
  %v2339 = vmul.f32 1.0, %v2338
  %v2340 = vrcp.pop %v2323
  %v2341 = vmul.f32 %v2323, %v2340
  %v2342 = vsub.f32 1.0, %v2341
  %v2343 = vmul.f32 %v2340, %v2342
  %v2344 = vadd.f32 %v2340, %v2343
  %vm2345 = vweird.f32 %v2323
  %vm2346 = vweird.f32 %v2340
  %vm2347 = vmor %vm2345, %vm2346
  %v2348 = vsel %vm2347, %v2340, %v2344
  %v2349 = vand.u32 2147483647, %v2323
  %vm2350 = vcmp.eq.f32.partialorder %v2349, 8.507059e+37
  %v2351 = vand.u32 %v2323, 2147483648
  %v2352 = vor.u32 1.1754944e-38, %v2351
  %v2353 = vsel %vm2350, %v2352, %v2348
  %v2354 = vmul.f32 1.0, %v2353
  %v2355 = vrcp.pop %v2324
  %v2356 = vmul.f32 %v2324, %v2355
  %v2357 = vsub.f32 1.0, %v2356
  %v2358 = vmul.f32 %v2355, %v2357
  %v2359 = vadd.f32 %v2355, %v2358
  %vm2360 = vweird.f32 %v2324
  %vm2361 = vweird.f32 %v2355
  %vm2362 = vmor %vm2360, %vm2361
  %v2363 = vsel %vm2362, %v2355, %v2359
  %v2364 = vand.u32 2147483647, %v2324
  %vm2365 = vcmp.eq.f32.partialorder %v2364, 8.507059e+37
  %v2366 = vand.u32 %v2324, 2147483648
  %v2367 = vor.u32 1.1754944e-38, %v2366
  %v2368 = vsel %vm2365, %v2367, %v2363
  %v2369 = vmul.f32 1.0, %v2368
  %v2370 = vtanh.pop %v2312
  %v2371 = vmul.f32 %v2354, %v2222
  %v2372 = vmul.f32 %v2339, %v2370
  %v2373 = vadd.f32 %v2371, %v2372
  %v2374 = vtanh.pop %v2373
  %v2375 = vmul.f32 %v2369, %v2374
  %v2376 = vld [vmem:[%s806] sm:$0xff]
  %v2377 = vld [vmem:[%s806 + $0x8] sm:$0xff]
  %v2378 = vld [vmem:[%s806 + $0x10] sm:$0xff]
  %v2379 = vld [vmem:[%s806 + $0x18] sm:$0xff]
  %2380 = vmatpush.msra.mxu0 %v2070
  %2381 = vmatpush.msra.mxu0 %v2066
  %2382 = vmatpush.msra.mxu0 %v2062
  %2383 = vmatpush.msra.mxu0 %v2058
  %2384 = vmatpush.msra.mxu0 %v2054
  %2385 = vmatpush.msra.mxu0 %v2050
  %2386 = vmatpush.msra.mxu0 %v2046
  %2387 = vmatpush.msra.mxu0 %v2042
  %2388 = vmatpush.msra.mxu0 %v2038
  %2389 = vmatpush.msra.mxu0 %v2034
  %2390 = vmatpush.msra.mxu0 %v2030
  %2391 = vmatpush.msra.mxu0 %v2026
  %2392 = vmatpush.msra.mxu0 %v2022
  %2393 = vmatpush.msra.mxu0 %v2018
  %2394 = vmatpush.msra.mxu0 %v2014
  %2395 = vmatpush.msra.mxu0 %v2010
  %2396 = vmatmul.f32.gmra.mxu0 %v2375
  %v2397 = vpop.f32.mrf.mxu0
  %v2398 = vadd.f32 0.0, %v2397
  %2399 = vdwg.mxu0
  %2400 = vmatpush.msra.mxu0 %v2071
  %2401 = vmatpush.msra.mxu0 %v2067
  %2402 = vmatpush.msra.mxu0 %v2063
  %2403 = vmatpush.msra.mxu0 %v2059
  %2404 = vmatpush.msra.mxu0 %v2055
  %2405 = vmatpush.msra.mxu0 %v2051
  %2406 = vmatpush.msra.mxu0 %v2047
  %2407 = vmatpush.msra.mxu0 %v2043
  %2408 = vmatpush.msra.mxu0 %v2039
  %2409 = vmatpush.msra.mxu0 %v2035
  %2410 = vmatpush.msra.mxu0 %v2031
  %2411 = vmatpush.msra.mxu0 %v2027
  %2412 = vmatpush.msra.mxu0 %v2023
  %2413 = vmatpush.msra.mxu0 %v2019
  %2414 = vmatpush.msra.mxu0 %v2015
  %2415 = vmatpush.msra.mxu0 %v2011
  %2416 = vmatmul.f32.gmra.mxu0 %v2375
  %v2417 = vpop.f32.mrf.mxu0
  %v2418 = vadd.f32 0.0, %v2417
  %2419 = vdwg.mxu0
  %2420 = vmatpush.msra.mxu0 %v2072
  %2421 = vmatpush.msra.mxu0 %v2068
  %2422 = vmatpush.msra.mxu0 %v2064
  %2423 = vmatpush.msra.mxu0 %v2060
  %2424 = vmatpush.msra.mxu0 %v2056
  %2425 = vmatpush.msra.mxu0 %v2052
  %2426 = vmatpush.msra.mxu0 %v2048
  %2427 = vmatpush.msra.mxu0 %v2044
  %2428 = vmatpush.msra.mxu0 %v2040
  %2429 = vmatpush.msra.mxu0 %v2036
  %2430 = vmatpush.msra.mxu0 %v2032
  %2431 = vmatpush.msra.mxu0 %v2028
  %2432 = vmatpush.msra.mxu0 %v2024
  %2433 = vmatpush.msra.mxu0 %v2020
  %2434 = vmatpush.msra.mxu0 %v2016
  %2435 = vmatpush.msra.mxu0 %v2012
  %2436 = vmatmul.f32.gmra.mxu0 %v2375
  %v2437 = vpop.f32.mrf.mxu0
  %v2438 = vadd.f32 0.0, %v2437
  %2439 = vdwg.mxu0
  %2440 = vmatpush.msra.mxu0 %v2073
  %2441 = vmatpush.msra.mxu0 %v2069
  %2442 = vmatpush.msra.mxu0 %v2065
  %2443 = vmatpush.msra.mxu0 %v2061
  %2444 = vmatpush.msra.mxu0 %v2057
  %2445 = vmatpush.msra.mxu0 %v2053
  %2446 = vmatpush.msra.mxu0 %v2049
  %2447 = vmatpush.msra.mxu0 %v2045
  %2448 = vmatpush.msra.mxu0 %v2041
  %2449 = vmatpush.msra.mxu0 %v2037
  %2450 = vmatpush.msra.mxu0 %v2033
  %2451 = vmatpush.msra.mxu0 %v2029
  %2452 = vmatpush.msra.mxu0 %v2025
  %2453 = vmatpush.msra.mxu0 %v2021
  %2454 = vmatpush.msra.mxu0 %v2017
  %2455 = vmatpush.msra.mxu0 %v2013
  %2456 = vmatmul.f32.gmra.mxu0 %v2375
  %v2457 = vpop.f32.mrf.mxu0
  %v2458 = vadd.f32 0.0, %v2457
  %2459 = vdwg.mxu0
  %v2460 = vadd.f32 %v2376, %v2398
  %v2461 = vadd.f32 %v2377, %v2418
  %v2462 = vadd.f32 %v2378, %v2438
  %v2463 = vadd.f32 %v2379, %v2458
  %v2464 = vxor.u32 %v2460, 2147483648
  %v2465 = vxor.u32 %v2461, 2147483648
  %v2466 = vxor.u32 %v2462, 2147483648
  %v2467 = vmul.f32 %v2464, 1.442695
  %v2468 = vpow.pop %v2467
  %v2469 = vmul.f32 %v2465, 1.442695
  %v2470 = vpow.pop %v2469
  %v2471 = vmul.f32 %v2466, 1.442695
  %v2472 = vpow.pop %v2471
  %v2473 = vadd.f32 %v2468, 1.0
  %v2474 = vadd.f32 %v2470, 1.0
  %v2475 = vadd.f32 %v2472, 1.0
  %v2476 = vrcp.pop %v2473
  %v2477 = vmul.f32 %v2473, %v2476
  %v2478 = vsub.f32 1.0, %v2477
  %v2479 = vmul.f32 %v2476, %v2478
  %v2480 = vadd.f32 %v2476, %v2479
  %vm2481 = vweird.f32 %v2473
  %vm2482 = vweird.f32 %v2476
  %vm2483 = vmor %vm2481, %vm2482
  %v2484 = vsel %vm2483, %v2476, %v2480
  %v2485 = vand.u32 2147483647, %v2473
  %vm2486 = vcmp.eq.f32.partialorder %v2485, 8.507059e+37
  %v2487 = vand.u32 %v2473, 2147483648
  %v2488 = vor.u32 1.1754944e-38, %v2487
  %v2489 = vsel %vm2486, %v2488, %v2484
  %v2490 = vmul.f32 1.0, %v2489
  %v2491 = vrcp.pop %v2474
  %v2492 = vmul.f32 %v2474, %v2491
  %v2493 = vsub.f32 1.0, %v2492
  %v2494 = vmul.f32 %v2491, %v2493
  %v2495 = vadd.f32 %v2491, %v2494
  %vm2496 = vweird.f32 %v2474
  %vm2497 = vweird.f32 %v2491
  %vm2498 = vmor %vm2496, %vm2497
  %v2499 = vsel %vm2498, %v2491, %v2495
  %v2500 = vand.u32 2147483647, %v2474
  %vm2501 = vcmp.eq.f32.partialorder %v2500, 8.507059e+37
  %v2502 = vand.u32 %v2474, 2147483648
  %v2503 = vor.u32 1.1754944e-38, %v2502
  %v2504 = vsel %vm2501, %v2503, %v2499
  %v2505 = vmul.f32 1.0, %v2504
  %v2506 = vrcp.pop %v2475
  %v2507 = vmul.f32 %v2475, %v2506
  %v2508 = vsub.f32 1.0, %v2507
  %v2509 = vmul.f32 %v2506, %v2508
  %v2510 = vadd.f32 %v2506, %v2509
  %vm2511 = vweird.f32 %v2475
  %vm2512 = vweird.f32 %v2506
  %vm2513 = vmor %vm2511, %vm2512
  %v2514 = vsel %vm2513, %v2506, %v2510
  %v2515 = vand.u32 2147483647, %v2475
  %vm2516 = vcmp.eq.f32.partialorder %v2515, 8.507059e+37
  %v2517 = vand.u32 %v2475, 2147483648
  %v2518 = vor.u32 1.1754944e-38, %v2517
  %v2519 = vsel %vm2516, %v2518, %v2514
  %v2520 = vmul.f32 1.0, %v2519
  %v2521 = vtanh.pop %v2463
  %v2522 = vmul.f32 %v2505, %v2373
  %v2523 = vmul.f32 %v2490, %v2521
  %v2524 = vadd.f32 %v2522, %v2523
  %v2525 = vtanh.pop %v2524
  %v2526 = vmul.f32 %v2520, %v2525
  %v2527 = vld [vmem:[%s960] sm:$0xff]
  %v2528 = vld [vmem:[%s960 + $0x8] sm:$0xff]
  %v2529 = vld [vmem:[%s960 + $0x10] sm:$0xff]
  %v2530 = vld [vmem:[%s960 + $0x18] sm:$0xff]
  %2531 = vmatpush.msra.mxu0 %v2070
  %2532 = vmatpush.msra.mxu0 %v2066
  %2533 = vmatpush.msra.mxu0 %v2062
  %2534 = vmatpush.msra.mxu0 %v2058
  %2535 = vmatpush.msra.mxu0 %v2054
  %2536 = vmatpush.msra.mxu0 %v2050
  %2537 = vmatpush.msra.mxu0 %v2046
  %2538 = vmatpush.msra.mxu0 %v2042
  %2539 = vmatpush.msra.mxu0 %v2038
  %2540 = vmatpush.msra.mxu0 %v2034
  %2541 = vmatpush.msra.mxu0 %v2030
  %2542 = vmatpush.msra.mxu0 %v2026
  %2543 = vmatpush.msra.mxu0 %v2022
  %2544 = vmatpush.msra.mxu0 %v2018
  %2545 = vmatpush.msra.mxu0 %v2014
  %2546 = vmatpush.msra.mxu0 %v2010
  %2547 = vmatmul.f32.gmra.mxu0 %v2526
  %v2548 = vpop.f32.mrf.mxu0
  %v2549 = vadd.f32 0.0, %v2548
  %2550 = vdwg.mxu0
  %2551 = vmatpush.msra.mxu0 %v2071
  %2552 = vmatpush.msra.mxu0 %v2067
  %2553 = vmatpush.msra.mxu0 %v2063
  %2554 = vmatpush.msra.mxu0 %v2059
  %2555 = vmatpush.msra.mxu0 %v2055
  %2556 = vmatpush.msra.mxu0 %v2051
  %2557 = vmatpush.msra.mxu0 %v2047
  %2558 = vmatpush.msra.mxu0 %v2043
  %2559 = vmatpush.msra.mxu0 %v2039
  %2560 = vmatpush.msra.mxu0 %v2035
  %2561 = vmatpush.msra.mxu0 %v2031
  %2562 = vmatpush.msra.mxu0 %v2027
  %2563 = vmatpush.msra.mxu0 %v2023
  %2564 = vmatpush.msra.mxu0 %v2019
  %2565 = vmatpush.msra.mxu0 %v2015
  %2566 = vmatpush.msra.mxu0 %v2011
  %2567 = vmatmul.f32.gmra.mxu0 %v2526
  %v2568 = vpop.f32.mrf.mxu0
  %v2569 = vadd.f32 0.0, %v2568
  %2570 = vdwg.mxu0
  %2571 = vmatpush.msra.mxu0 %v2072
  %2572 = vmatpush.msra.mxu0 %v2068
  %2573 = vmatpush.msra.mxu0 %v2064
  %2574 = vmatpush.msra.mxu0 %v2060
  %2575 = vmatpush.msra.mxu0 %v2056
  %2576 = vmatpush.msra.mxu0 %v2052
  %2577 = vmatpush.msra.mxu0 %v2048
  %2578 = vmatpush.msra.mxu0 %v2044
  %2579 = vmatpush.msra.mxu0 %v2040
  %2580 = vmatpush.msra.mxu0 %v2036
  %2581 = vmatpush.msra.mxu0 %v2032
  %2582 = vmatpush.msra.mxu0 %v2028
  %2583 = vmatpush.msra.mxu0 %v2024
  %2584 = vmatpush.msra.mxu0 %v2020
  %2585 = vmatpush.msra.mxu0 %v2016
  %2586 = vmatpush.msra.mxu0 %v2012
  %2587 = vmatmul.f32.gmra.mxu0 %v2526
  %v2588 = vpop.f32.mrf.mxu0
  %v2589 = vadd.f32 0.0, %v2588
  %2590 = vdwg.mxu0
  %2591 = vmatpush.msra.mxu0 %v2073
  %2592 = vmatpush.msra.mxu0 %v2069
  %2593 = vmatpush.msra.mxu0 %v2065
  %2594 = vmatpush.msra.mxu0 %v2061
  %2595 = vmatpush.msra.mxu0 %v2057
  %2596 = vmatpush.msra.mxu0 %v2053
  %2597 = vmatpush.msra.mxu0 %v2049
  %2598 = vmatpush.msra.mxu0 %v2045
  %2599 = vmatpush.msra.mxu0 %v2041
  %2600 = vmatpush.msra.mxu0 %v2037
  %2601 = vmatpush.msra.mxu0 %v2033
  %2602 = vmatpush.msra.mxu0 %v2029
  %2603 = vmatpush.msra.mxu0 %v2025
  %2604 = vmatpush.msra.mxu0 %v2021
  %2605 = vmatpush.msra.mxu0 %v2017
  %2606 = vmatpush.msra.mxu0 %v2013
  %2607 = vmatmul.f32.gmra.mxu0 %v2526
  %v2608 = vpop.f32.mrf.mxu0
  %v2609 = vadd.f32 0.0, %v2608
  %2610 = vdwg.mxu0
  %v2611 = vadd.f32 %v2527, %v2549
  %v2612 = vadd.f32 %v2528, %v2569
  %v2613 = vadd.f32 %v2529, %v2589
  %v2614 = vadd.f32 %v2530, %v2609
  %v2615 = vxor.u32 %v2611, 2147483648
  %v2616 = vxor.u32 %v2612, 2147483648
  %v2617 = vxor.u32 %v2613, 2147483648
  %v2618 = vmul.f32 %v2615, 1.442695
  %v2619 = vpow.pop %v2618
  %v2620 = vmul.f32 %v2616, 1.442695
  %v2621 = vpow.pop %v2620
  %v2622 = vmul.f32 %v2617, 1.442695
  %v2623 = vpow.pop %v2622
  %v2624 = vadd.f32 %v2619, 1.0
  %v2625 = vadd.f32 %v2621, 1.0
  %v2626 = vadd.f32 %v2623, 1.0
  %v2627 = vrcp.pop %v2624
  %v2628 = vmul.f32 %v2624, %v2627
  %v2629 = vsub.f32 1.0, %v2628
  %v2630 = vmul.f32 %v2627, %v2629
  %v2631 = vadd.f32 %v2627, %v2630
  %vm2632 = vweird.f32 %v2624
  %vm2633 = vweird.f32 %v2627
  %vm2634 = vmor %vm2632, %vm2633
  %v2635 = vsel %vm2634, %v2627, %v2631
  %v2636 = vand.u32 2147483647, %v2624
  %vm2637 = vcmp.eq.f32.partialorder %v2636, 8.507059e+37
  %v2638 = vand.u32 %v2624, 2147483648
  %v2639 = vor.u32 1.1754944e-38, %v2638
  %v2640 = vsel %vm2637, %v2639, %v2635
  %v2641 = vmul.f32 1.0, %v2640
  %v2642 = vrcp.pop %v2625
  %v2643 = vmul.f32 %v2625, %v2642
  %v2644 = vsub.f32 1.0, %v2643
  %v2645 = vmul.f32 %v2642, %v2644
  %v2646 = vadd.f32 %v2642, %v2645
  %vm2647 = vweird.f32 %v2625
  %vm2648 = vweird.f32 %v2642
  %vm2649 = vmor %vm2647, %vm2648
  %v2650 = vsel %vm2649, %v2642, %v2646
  %v2651 = vand.u32 2147483647, %v2625
  %vm2652 = vcmp.eq.f32.partialorder %v2651, 8.507059e+37
  %v2653 = vand.u32 %v2625, 2147483648
  %v2654 = vor.u32 1.1754944e-38, %v2653
  %v2655 = vsel %vm2652, %v2654, %v2650
  %v2656 = vmul.f32 1.0, %v2655
  %v2657 = vrcp.pop %v2626
  %v2658 = vmul.f32 %v2626, %v2657
  %v2659 = vsub.f32 1.0, %v2658
  %v2660 = vmul.f32 %v2657, %v2659
  %v2661 = vadd.f32 %v2657, %v2660
  %vm2662 = vweird.f32 %v2626
  %vm2663 = vweird.f32 %v2657
  %vm2664 = vmor %vm2662, %vm2663
  %v2665 = vsel %vm2664, %v2657, %v2661
  %v2666 = vand.u32 2147483647, %v2626
  %vm2667 = vcmp.eq.f32.partialorder %v2666, 8.507059e+37
  %v2668 = vand.u32 %v2626, 2147483648
  %v2669 = vor.u32 1.1754944e-38, %v2668
  %v2670 = vsel %vm2667, %v2669, %v2665
  %v2671 = vmul.f32 1.0, %v2670
  %v2672 = vtanh.pop %v2614
  %v2673 = vmul.f32 %v2656, %v2524
  %v2674 = vmul.f32 %v2641, %v2672
  %v2675 = vadd.f32 %v2673, %v2674
  %v2676 = vtanh.pop %v2675
  %v2677 = vmul.f32 %v2671, %v2676
  %v2678 = vld [vmem:[%s1114] sm:$0xff]
  %v2679 = vld [vmem:[%s1114 + $0x8] sm:$0xff]
  %v2680 = vld [vmem:[%s1114 + $0x10] sm:$0xff]
  %v2681 = vld [vmem:[%s1114 + $0x18] sm:$0xff]
  %2682 = vmatpush.msra.mxu0 %v2070
  %2683 = vmatpush.msra.mxu0 %v2066
  %2684 = vmatpush.msra.mxu0 %v2062
  %2685 = vmatpush.msra.mxu0 %v2058
  %2686 = vmatpush.msra.mxu0 %v2054
  %2687 = vmatpush.msra.mxu0 %v2050
  %2688 = vmatpush.msra.mxu0 %v2046
  %2689 = vmatpush.msra.mxu0 %v2042
  %2690 = vmatpush.msra.mxu0 %v2038
  %2691 = vmatpush.msra.mxu0 %v2034
  %2692 = vmatpush.msra.mxu0 %v2030
  %2693 = vmatpush.msra.mxu0 %v2026
  %2694 = vmatpush.msra.mxu0 %v2022
  %2695 = vmatpush.msra.mxu0 %v2018
  %2696 = vmatpush.msra.mxu0 %v2014
  %2697 = vmatpush.msra.mxu0 %v2010
  %2698 = vmatmul.f32.gmra.mxu0 %v2677
  %v2699 = vpop.f32.mrf.mxu0
  %v2700 = vadd.f32 0.0, %v2699
  %2701 = vdwg.mxu0
  %2702 = vmatpush.msra.mxu0 %v2071
  %2703 = vmatpush.msra.mxu0 %v2067
  %2704 = vmatpush.msra.mxu0 %v2063
  %2705 = vmatpush.msra.mxu0 %v2059
  %2706 = vmatpush.msra.mxu0 %v2055
  %2707 = vmatpush.msra.mxu0 %v2051
  %2708 = vmatpush.msra.mxu0 %v2047
  %2709 = vmatpush.msra.mxu0 %v2043
  %2710 = vmatpush.msra.mxu0 %v2039
  %2711 = vmatpush.msra.mxu0 %v2035
  %2712 = vmatpush.msra.mxu0 %v2031
  %2713 = vmatpush.msra.mxu0 %v2027
  %2714 = vmatpush.msra.mxu0 %v2023
  %2715 = vmatpush.msra.mxu0 %v2019
  %2716 = vmatpush.msra.mxu0 %v2015
  %2717 = vmatpush.msra.mxu0 %v2011
  %2718 = vmatmul.f32.gmra.mxu0 %v2677
  %v2719 = vpop.f32.mrf.mxu0
  %v2720 = vadd.f32 0.0, %v2719
  %2721 = vdwg.mxu0
  %2722 = vmatpush.msra.mxu0 %v2072
  %2723 = vmatpush.msra.mxu0 %v2068
  %2724 = vmatpush.msra.mxu0 %v2064
  %2725 = vmatpush.msra.mxu0 %v2060
  %2726 = vmatpush.msra.mxu0 %v2056
  %2727 = vmatpush.msra.mxu0 %v2052
  %2728 = vmatpush.msra.mxu0 %v2048
  %2729 = vmatpush.msra.mxu0 %v2044
  %2730 = vmatpush.msra.mxu0 %v2040
  %2731 = vmatpush.msra.mxu0 %v2036
  %2732 = vmatpush.msra.mxu0 %v2032
  %2733 = vmatpush.msra.mxu0 %v2028
  %2734 = vmatpush.msra.mxu0 %v2024
  %2735 = vmatpush.msra.mxu0 %v2020
  %2736 = vmatpush.msra.mxu0 %v2016
  %2737 = vmatpush.msra.mxu0 %v2012
  %2738 = vmatmul.f32.gmra.mxu0 %v2677
  %v2739 = vpop.f32.mrf.mxu0
  %v2740 = vadd.f32 0.0, %v2739
  %2741 = vdwg.mxu0
  %2742 = vmatpush.msra.mxu0 %v2073
  %2743 = vmatpush.msra.mxu0 %v2069
  %2744 = vmatpush.msra.mxu0 %v2065
  %2745 = vmatpush.msra.mxu0 %v2061
  %2746 = vmatpush.msra.mxu0 %v2057
  %2747 = vmatpush.msra.mxu0 %v2053
  %2748 = vmatpush.msra.mxu0 %v2049
  %2749 = vmatpush.msra.mxu0 %v2045
  %2750 = vmatpush.msra.mxu0 %v2041
  %2751 = vmatpush.msra.mxu0 %v2037
  %2752 = vmatpush.msra.mxu0 %v2033
  %2753 = vmatpush.msra.mxu0 %v2029
  %2754 = vmatpush.msra.mxu0 %v2025
  %2755 = vmatpush.msra.mxu0 %v2021
  %2756 = vmatpush.msra.mxu0 %v2017
  %2757 = vmatpush.msra.mxu0 %v2013
  %2758 = vmatmul.f32.gmra.mxu0 %v2677
  %v2759 = vpop.f32.mrf.mxu0
  %v2760 = vadd.f32 0.0, %v2759
  %2761 = vdwg.mxu0
  %v2762 = vadd.f32 %v2678, %v2700
  %v2763 = vadd.f32 %v2679, %v2720
  %v2764 = vadd.f32 %v2680, %v2740
  %v2765 = vadd.f32 %v2681, %v2760
  %v2766 = vxor.u32 %v2762, 2147483648
  %v2767 = vxor.u32 %v2763, 2147483648
  %v2768 = vxor.u32 %v2764, 2147483648
  %v2769 = vmul.f32 %v2766, 1.442695
  %v2770 = vpow.pop %v2769
  %v2771 = vmul.f32 %v2767, 1.442695
  %v2772 = vpow.pop %v2771
  %v2773 = vmul.f32 %v2768, 1.442695
  %v2774 = vpow.pop %v2773
  %v2775 = vadd.f32 %v2770, 1.0
  %v2776 = vadd.f32 %v2772, 1.0
  %v2777 = vadd.f32 %v2774, 1.0
  %v2778 = vrcp.pop %v2775
  %v2779 = vmul.f32 %v2775, %v2778
  %v2780 = vsub.f32 1.0, %v2779
  %v2781 = vmul.f32 %v2778, %v2780
  %v2782 = vadd.f32 %v2778, %v2781
  %vm2783 = vweird.f32 %v2775
  %vm2784 = vweird.f32 %v2778
  %vm2785 = vmor %vm2783, %vm2784
  %v2786 = vsel %vm2785, %v2778, %v2782
  %v2787 = vand.u32 2147483647, %v2775
  %vm2788 = vcmp.eq.f32.partialorder %v2787, 8.507059e+37
  %v2789 = vand.u32 %v2775, 2147483648
  %v2790 = vor.u32 1.1754944e-38, %v2789
  %v2791 = vsel %vm2788, %v2790, %v2786
  %v2792 = vmul.f32 1.0, %v2791
  %v2793 = vrcp.pop %v2776
  %v2794 = vmul.f32 %v2776, %v2793
  %v2795 = vsub.f32 1.0, %v2794
  %v2796 = vmul.f32 %v2793, %v2795
  %v2797 = vadd.f32 %v2793, %v2796
  %vm2798 = vweird.f32 %v2776
  %vm2799 = vweird.f32 %v2793
  %vm2800 = vmor %vm2798, %vm2799
  %v2801 = vsel %vm2800, %v2793, %v2797
  %v2802 = vand.u32 2147483647, %v2776
  %vm2803 = vcmp.eq.f32.partialorder %v2802, 8.507059e+37
  %v2804 = vand.u32 %v2776, 2147483648
  %v2805 = vor.u32 1.1754944e-38, %v2804
  %v2806 = vsel %vm2803, %v2805, %v2801
  %v2807 = vmul.f32 1.0, %v2806
  %v2808 = vrcp.pop %v2777
  %v2809 = vmul.f32 %v2777, %v2808
  %v2810 = vsub.f32 1.0, %v2809
  %v2811 = vmul.f32 %v2808, %v2810
  %v2812 = vadd.f32 %v2808, %v2811
  %vm2813 = vweird.f32 %v2777
  %vm2814 = vweird.f32 %v2808
  %vm2815 = vmor %vm2813, %vm2814
  %v2816 = vsel %vm2815, %v2808, %v2812
  %v2817 = vand.u32 2147483647, %v2777
  %vm2818 = vcmp.eq.f32.partialorder %v2817, 8.507059e+37
  %v2819 = vand.u32 %v2777, 2147483648
  %v2820 = vor.u32 1.1754944e-38, %v2819
  %v2821 = vsel %vm2818, %v2820, %v2816
  %v2822 = vmul.f32 1.0, %v2821
  %v2823 = vtanh.pop %v2765
  %v2824 = vmul.f32 %v2807, %v2675
  %v2825 = vmul.f32 %v2792, %v2823
  %v2826 = vadd.f32 %v2824, %v2825
  %v2827 = vtanh.pop %v2826
  %v2828 = vmul.f32 %v2822, %v2827
  %v2829 = vld [vmem:[%s1268] sm:$0xff]
  %v2830 = vld [vmem:[%s1268 + $0x8] sm:$0xff]
  %v2831 = vld [vmem:[%s1268 + $0x10] sm:$0xff]
  %v2832 = vld [vmem:[%s1268 + $0x18] sm:$0xff]
  %2833 = vmatpush.msra.mxu0 %v2070
  %2834 = vmatpush.msra.mxu0 %v2066
  %2835 = vmatpush.msra.mxu0 %v2062
  %2836 = vmatpush.msra.mxu0 %v2058
  %2837 = vmatpush.msra.mxu0 %v2054
  %2838 = vmatpush.msra.mxu0 %v2050
  %2839 = vmatpush.msra.mxu0 %v2046
  %2840 = vmatpush.msra.mxu0 %v2042
  %2841 = vmatpush.msra.mxu0 %v2038
  %2842 = vmatpush.msra.mxu0 %v2034
  %2843 = vmatpush.msra.mxu0 %v2030
  %2844 = vmatpush.msra.mxu0 %v2026
  %2845 = vmatpush.msra.mxu0 %v2022
  %2846 = vmatpush.msra.mxu0 %v2018
  %2847 = vmatpush.msra.mxu0 %v2014
  %2848 = vmatpush.msra.mxu0 %v2010
  %2849 = vmatmul.f32.gmra.mxu0 %v2828
  %v2850 = vpop.f32.mrf.mxu0
  %v2851 = vadd.f32 0.0, %v2850
  %2852 = vdwg.mxu0
  %2853 = vmatpush.msra.mxu0 %v2071
  %2854 = vmatpush.msra.mxu0 %v2067
  %2855 = vmatpush.msra.mxu0 %v2063
  %2856 = vmatpush.msra.mxu0 %v2059
  %2857 = vmatpush.msra.mxu0 %v2055
  %2858 = vmatpush.msra.mxu0 %v2051
  %2859 = vmatpush.msra.mxu0 %v2047
  %2860 = vmatpush.msra.mxu0 %v2043
  %2861 = vmatpush.msra.mxu0 %v2039
  %2862 = vmatpush.msra.mxu0 %v2035
  %2863 = vmatpush.msra.mxu0 %v2031
  %2864 = vmatpush.msra.mxu0 %v2027
  %2865 = vmatpush.msra.mxu0 %v2023
  %2866 = vmatpush.msra.mxu0 %v2019
  %2867 = vmatpush.msra.mxu0 %v2015
  %2868 = vmatpush.msra.mxu0 %v2011
  %2869 = vmatmul.f32.gmra.mxu0 %v2828
  %v2870 = vpop.f32.mrf.mxu0
  %v2871 = vadd.f32 0.0, %v2870
  %2872 = vdwg.mxu0
  %2873 = vmatpush.msra.mxu0 %v2072
  %2874 = vmatpush.msra.mxu0 %v2068
  %2875 = vmatpush.msra.mxu0 %v2064
  %2876 = vmatpush.msra.mxu0 %v2060
  %2877 = vmatpush.msra.mxu0 %v2056
  %2878 = vmatpush.msra.mxu0 %v2052
  %2879 = vmatpush.msra.mxu0 %v2048
  %2880 = vmatpush.msra.mxu0 %v2044
  %2881 = vmatpush.msra.mxu0 %v2040
  %2882 = vmatpush.msra.mxu0 %v2036
  %2883 = vmatpush.msra.mxu0 %v2032
  %2884 = vmatpush.msra.mxu0 %v2028
  %2885 = vmatpush.msra.mxu0 %v2024
  %2886 = vmatpush.msra.mxu0 %v2020
  %2887 = vmatpush.msra.mxu0 %v2016
  %2888 = vmatpush.msra.mxu0 %v2012
  %2889 = vmatmul.f32.gmra.mxu0 %v2828
  %v2890 = vpop.f32.mrf.mxu0
  %v2891 = vadd.f32 0.0, %v2890
  %2892 = vdwg.mxu0
  %2893 = vmatpush.msra.mxu0 %v2073
  %2894 = vmatpush.msra.mxu0 %v2069
  %2895 = vmatpush.msra.mxu0 %v2065
  %2896 = vmatpush.msra.mxu0 %v2061
  %2897 = vmatpush.msra.mxu0 %v2057
  %2898 = vmatpush.msra.mxu0 %v2053
  %2899 = vmatpush.msra.mxu0 %v2049
  %2900 = vmatpush.msra.mxu0 %v2045
  %2901 = vmatpush.msra.mxu0 %v2041
  %2902 = vmatpush.msra.mxu0 %v2037
  %2903 = vmatpush.msra.mxu0 %v2033
  %2904 = vmatpush.msra.mxu0 %v2029
  %2905 = vmatpush.msra.mxu0 %v2025
  %2906 = vmatpush.msra.mxu0 %v2021
  %2907 = vmatpush.msra.mxu0 %v2017
  %2908 = vmatpush.msra.mxu0 %v2013
  %2909 = vmatmul.f32.gmra.mxu0 %v2828
  %v2910 = vpop.f32.mrf.mxu0
  %v2911 = vadd.f32 0.0, %v2910
  %2912 = vdwg.mxu0
  %v2913 = vadd.f32 %v2829, %v2851
  %v2914 = vadd.f32 %v2830, %v2871
  %v2915 = vadd.f32 %v2831, %v2891
  %v2916 = vadd.f32 %v2832, %v2911
  %v2917 = vxor.u32 %v2913, 2147483648
  %v2918 = vxor.u32 %v2914, 2147483648
  %v2919 = vxor.u32 %v2915, 2147483648
  %v2920 = vmul.f32 %v2917, 1.442695
  %v2921 = vpow.pop %v2920
  %v2922 = vmul.f32 %v2918, 1.442695
  %v2923 = vpow.pop %v2922
  %v2924 = vmul.f32 %v2919, 1.442695
  %v2925 = vpow.pop %v2924
  %v2926 = vadd.f32 %v2921, 1.0
  %v2927 = vadd.f32 %v2923, 1.0
  %v2928 = vadd.f32 %v2925, 1.0
  %v2929 = vrcp.pop %v2926
  %v2930 = vmul.f32 %v2926, %v2929
  %v2931 = vsub.f32 1.0, %v2930
  %v2932 = vmul.f32 %v2929, %v2931
  %v2933 = vadd.f32 %v2929, %v2932
  %vm2934 = vweird.f32 %v2926
  %vm2935 = vweird.f32 %v2929
  %vm2936 = vmor %vm2934, %vm2935
  %v2937 = vsel %vm2936, %v2929, %v2933
  %v2938 = vand.u32 2147483647, %v2926
  %vm2939 = vcmp.eq.f32.partialorder %v2938, 8.507059e+37
  %v2940 = vand.u32 %v2926, 2147483648
  %v2941 = vor.u32 1.1754944e-38, %v2940
  %v2942 = vsel %vm2939, %v2941, %v2937
  %v2943 = vmul.f32 1.0, %v2942
  %v2944 = vrcp.pop %v2927
  %v2945 = vmul.f32 %v2927, %v2944
  %v2946 = vsub.f32 1.0, %v2945
  %v2947 = vmul.f32 %v2944, %v2946
  %v2948 = vadd.f32 %v2944, %v2947
  %vm2949 = vweird.f32 %v2927
  %vm2950 = vweird.f32 %v2944
  %vm2951 = vmor %vm2949, %vm2950
  %v2952 = vsel %vm2951, %v2944, %v2948
  %v2953 = vand.u32 2147483647, %v2927
  %vm2954 = vcmp.eq.f32.partialorder %v2953, 8.507059e+37
  %v2955 = vand.u32 %v2927, 2147483648
  %v2956 = vor.u32 1.1754944e-38, %v2955
  %v2957 = vsel %vm2954, %v2956, %v2952
  %v2958 = vmul.f32 1.0, %v2957
  %v2959 = vrcp.pop %v2928
  %v2960 = vmul.f32 %v2928, %v2959
  %v2961 = vsub.f32 1.0, %v2960
  %v2962 = vmul.f32 %v2959, %v2961
  %v2963 = vadd.f32 %v2959, %v2962
  %vm2964 = vweird.f32 %v2928
  %vm2965 = vweird.f32 %v2959
  %vm2966 = vmor %vm2964, %vm2965
  %v2967 = vsel %vm2966, %v2959, %v2963
  %v2968 = vand.u32 2147483647, %v2928
  %vm2969 = vcmp.eq.f32.partialorder %v2968, 8.507059e+37
  %v2970 = vand.u32 %v2928, 2147483648
  %v2971 = vor.u32 1.1754944e-38, %v2970
  %v2972 = vsel %vm2969, %v2971, %v2967
  %v2973 = vmul.f32 1.0, %v2972
  %v2974 = vtanh.pop %v2916
  %v2975 = vmul.f32 %v2958, %v2826
  %v2976 = vmul.f32 %v2943, %v2974
  %v2977 = vadd.f32 %v2975, %v2976
  %v2978 = vtanh.pop %v2977
  %v2979 = vmul.f32 %v2973, %v2978
  %v2980 = vld [vmem:[%s1422] sm:$0xff]
  %v2981 = vld [vmem:[%s1422 + $0x8] sm:$0xff]
  %v2982 = vld [vmem:[%s1422 + $0x10] sm:$0xff]
  %v2983 = vld [vmem:[%s1422 + $0x18] sm:$0xff]
  %2984 = vmatpush.msra.mxu0 %v2070
  %2985 = vmatpush.msra.mxu0 %v2066
  %2986 = vmatpush.msra.mxu0 %v2062
  %2987 = vmatpush.msra.mxu0 %v2058
  %2988 = vmatpush.msra.mxu0 %v2054
  %2989 = vmatpush.msra.mxu0 %v2050
  %2990 = vmatpush.msra.mxu0 %v2046
  %2991 = vmatpush.msra.mxu0 %v2042
  %2992 = vmatpush.msra.mxu0 %v2038
  %2993 = vmatpush.msra.mxu0 %v2034
  %2994 = vmatpush.msra.mxu0 %v2030
  %2995 = vmatpush.msra.mxu0 %v2026
  %2996 = vmatpush.msra.mxu0 %v2022
  %2997 = vmatpush.msra.mxu0 %v2018
  %2998 = vmatpush.msra.mxu0 %v2014
  %2999 = vmatpush.msra.mxu0 %v2010
  %3000 = vmatmul.f32.gmra.mxu0 %v2979
  %v3001 = vpop.f32.mrf.mxu0
  %v3002 = vadd.f32 0.0, %v3001
  %3003 = vdwg.mxu0
  %3004 = vmatpush.msra.mxu0 %v2071
  %3005 = vmatpush.msra.mxu0 %v2067
  %3006 = vmatpush.msra.mxu0 %v2063
  %3007 = vmatpush.msra.mxu0 %v2059
  %3008 = vmatpush.msra.mxu0 %v2055
  %3009 = vmatpush.msra.mxu0 %v2051
  %3010 = vmatpush.msra.mxu0 %v2047
  %3011 = vmatpush.msra.mxu0 %v2043
  %3012 = vmatpush.msra.mxu0 %v2039
  %3013 = vmatpush.msra.mxu0 %v2035
  %3014 = vmatpush.msra.mxu0 %v2031
  %3015 = vmatpush.msra.mxu0 %v2027
  %3016 = vmatpush.msra.mxu0 %v2023
  %3017 = vmatpush.msra.mxu0 %v2019
  %3018 = vmatpush.msra.mxu0 %v2015
  %3019 = vmatpush.msra.mxu0 %v2011
  %3020 = vmatmul.f32.gmra.mxu0 %v2979
  %v3021 = vpop.f32.mrf.mxu0
  %v3022 = vadd.f32 0.0, %v3021
  %3023 = vdwg.mxu0
  %3024 = vmatpush.msra.mxu0 %v2072
  %3025 = vmatpush.msra.mxu0 %v2068
  %3026 = vmatpush.msra.mxu0 %v2064
  %3027 = vmatpush.msra.mxu0 %v2060
  %3028 = vmatpush.msra.mxu0 %v2056
  %3029 = vmatpush.msra.mxu0 %v2052
  %3030 = vmatpush.msra.mxu0 %v2048
  %3031 = vmatpush.msra.mxu0 %v2044
  %3032 = vmatpush.msra.mxu0 %v2040
  %3033 = vmatpush.msra.mxu0 %v2036
  %3034 = vmatpush.msra.mxu0 %v2032
  %3035 = vmatpush.msra.mxu0 %v2028
  %3036 = vmatpush.msra.mxu0 %v2024
  %3037 = vmatpush.msra.mxu0 %v2020
  %3038 = vmatpush.msra.mxu0 %v2016
  %3039 = vmatpush.msra.mxu0 %v2012
  %3040 = vmatmul.f32.gmra.mxu0 %v2979
  %v3041 = vpop.f32.mrf.mxu0
  %v3042 = vadd.f32 0.0, %v3041
  %3043 = vdwg.mxu0
  %3044 = vmatpush.msra.mxu0 %v2073
  %3045 = vmatpush.msra.mxu0 %v2069
  %3046 = vmatpush.msra.mxu0 %v2065
  %3047 = vmatpush.msra.mxu0 %v2061
  %3048 = vmatpush.msra.mxu0 %v2057
  %3049 = vmatpush.msra.mxu0 %v2053
  %3050 = vmatpush.msra.mxu0 %v2049
  %3051 = vmatpush.msra.mxu0 %v2045
  %3052 = vmatpush.msra.mxu0 %v2041
  %3053 = vmatpush.msra.mxu0 %v2037
  %3054 = vmatpush.msra.mxu0 %v2033
  %3055 = vmatpush.msra.mxu0 %v2029
  %3056 = vmatpush.msra.mxu0 %v2025
  %3057 = vmatpush.msra.mxu0 %v2021
  %3058 = vmatpush.msra.mxu0 %v2017
  %3059 = vmatpush.msra.mxu0 %v2013
  %3060 = vmatmul.f32.gmra.mxu0 %v2979
  %v3061 = vpop.f32.mrf.mxu0
  %v3062 = vadd.f32 0.0, %v3061
  %3063 = vdwg.mxu0
  %v3064 = vadd.f32 %v2980, %v3002
  %v3065 = vadd.f32 %v2981, %v3022
  %v3066 = vadd.f32 %v2982, %v3042
  %v3067 = vadd.f32 %v2983, %v3062
  %v3068 = vxor.u32 %v3064, 2147483648
  %v3069 = vxor.u32 %v3065, 2147483648
  %v3070 = vxor.u32 %v3066, 2147483648
  %v3071 = vmul.f32 %v3068, 1.442695
  %v3072 = vpow.pop %v3071
  %v3073 = vmul.f32 %v3069, 1.442695
  %v3074 = vpow.pop %v3073
  %v3075 = vmul.f32 %v3070, 1.442695
  %v3076 = vpow.pop %v3075
  %v3077 = vadd.f32 %v3072, 1.0
  %v3078 = vadd.f32 %v3074, 1.0
  %v3079 = vadd.f32 %v3076, 1.0
  %v3080 = vrcp.pop %v3077
  %v3081 = vmul.f32 %v3077, %v3080
  %v3082 = vsub.f32 1.0, %v3081
  %v3083 = vmul.f32 %v3080, %v3082
  %v3084 = vadd.f32 %v3080, %v3083
  %vm3085 = vweird.f32 %v3077
  %vm3086 = vweird.f32 %v3080
  %vm3087 = vmor %vm3085, %vm3086
  %v3088 = vsel %vm3087, %v3080, %v3084
  %v3089 = vand.u32 2147483647, %v3077
  %vm3090 = vcmp.eq.f32.partialorder %v3089, 8.507059e+37
  %v3091 = vand.u32 %v3077, 2147483648
  %v3092 = vor.u32 1.1754944e-38, %v3091
  %v3093 = vsel %vm3090, %v3092, %v3088
  %v3094 = vmul.f32 1.0, %v3093
  %v3095 = vrcp.pop %v3078
  %v3096 = vmul.f32 %v3078, %v3095
  %v3097 = vsub.f32 1.0, %v3096
  %v3098 = vmul.f32 %v3095, %v3097
  %v3099 = vadd.f32 %v3095, %v3098
  %vm3100 = vweird.f32 %v3078
  %vm3101 = vweird.f32 %v3095
  %vm3102 = vmor %vm3100, %vm3101
  %v3103 = vsel %vm3102, %v3095, %v3099
  %v3104 = vand.u32 2147483647, %v3078
  %vm3105 = vcmp.eq.f32.partialorder %v3104, 8.507059e+37
  %v3106 = vand.u32 %v3078, 2147483648
  %v3107 = vor.u32 1.1754944e-38, %v3106
  %v3108 = vsel %vm3105, %v3107, %v3103
  %v3109 = vmul.f32 1.0, %v3108
  %v3110 = vrcp.pop %v3079
  %v3111 = vmul.f32 %v3079, %v3110
  %v3112 = vsub.f32 1.0, %v3111
  %v3113 = vmul.f32 %v3110, %v3112
  %v3114 = vadd.f32 %v3110, %v3113
  %vm3115 = vweird.f32 %v3079
  %vm3116 = vweird.f32 %v3110
  %vm3117 = vmor %vm3115, %vm3116
  %v3118 = vsel %vm3117, %v3110, %v3114
  %v3119 = vand.u32 2147483647, %v3079
  %vm3120 = vcmp.eq.f32.partialorder %v3119, 8.507059e+37
  %v3121 = vand.u32 %v3079, 2147483648
  %v3122 = vor.u32 1.1754944e-38, %v3121
  %v3123 = vsel %vm3120, %v3122, %v3118
  %v3124 = vmul.f32 1.0, %v3123
  %v3125 = vtanh.pop %v3067
  %v3126 = vmul.f32 %v3109, %v2977
  %v3127 = vmul.f32 %v3094, %v3125
  %v3128 = vadd.f32 %v3126, %v3127
  %v3129 = vtanh.pop %v3128
  %v3130 = vmul.f32 %v3124, %v3129
  %v3131 = vld [vmem:[%s1576] sm:$0xff]
  %v3132 = vld [vmem:[%s1576 + $0x8] sm:$0xff]
  %v3133 = vld [vmem:[%s1576 + $0x10] sm:$0xff]
  %v3134 = vld [vmem:[%s1576 + $0x18] sm:$0xff]
  %3135 = vmatpush.msra.mxu0 %v2070
  %3136 = vmatpush.msra.mxu0 %v2066
  %3137 = vmatpush.msra.mxu0 %v2062
  %3138 = vmatpush.msra.mxu0 %v2058
  %3139 = vmatpush.msra.mxu0 %v2054
  %3140 = vmatpush.msra.mxu0 %v2050
  %3141 = vmatpush.msra.mxu0 %v2046
  %3142 = vmatpush.msra.mxu0 %v2042
  %3143 = vmatpush.msra.mxu0 %v2038
  %3144 = vmatpush.msra.mxu0 %v2034
  %3145 = vmatpush.msra.mxu0 %v2030
  %3146 = vmatpush.msra.mxu0 %v2026
  %3147 = vmatpush.msra.mxu0 %v2022
  %3148 = vmatpush.msra.mxu0 %v2018
  %3149 = vmatpush.msra.mxu0 %v2014
  %3150 = vmatpush.msra.mxu0 %v2010
  %3151 = vmatmul.f32.gmra.mxu0 %v3130
  %v3152 = vpop.f32.mrf.mxu0
  %v3153 = vadd.f32 0.0, %v3152
  %3154 = vdwg.mxu0
  %3155 = vmatpush.msra.mxu0 %v2071
  %3156 = vmatpush.msra.mxu0 %v2067
  %3157 = vmatpush.msra.mxu0 %v2063
  %3158 = vmatpush.msra.mxu0 %v2059
  %3159 = vmatpush.msra.mxu0 %v2055
  %3160 = vmatpush.msra.mxu0 %v2051
  %3161 = vmatpush.msra.mxu0 %v2047
  %3162 = vmatpush.msra.mxu0 %v2043
  %3163 = vmatpush.msra.mxu0 %v2039
  %3164 = vmatpush.msra.mxu0 %v2035
  %3165 = vmatpush.msra.mxu0 %v2031
  %3166 = vmatpush.msra.mxu0 %v2027
  %3167 = vmatpush.msra.mxu0 %v2023
  %3168 = vmatpush.msra.mxu0 %v2019
  %3169 = vmatpush.msra.mxu0 %v2015
  %3170 = vmatpush.msra.mxu0 %v2011
  %3171 = vmatmul.f32.gmra.mxu0 %v3130
  %v3172 = vpop.f32.mrf.mxu0
  %v3173 = vadd.f32 0.0, %v3172
  %3174 = vdwg.mxu0
  %3175 = vmatpush.msra.mxu0 %v2072
  %3176 = vmatpush.msra.mxu0 %v2068
  %3177 = vmatpush.msra.mxu0 %v2064
  %3178 = vmatpush.msra.mxu0 %v2060
  %3179 = vmatpush.msra.mxu0 %v2056
  %3180 = vmatpush.msra.mxu0 %v2052
  %3181 = vmatpush.msra.mxu0 %v2048
  %3182 = vmatpush.msra.mxu0 %v2044
  %3183 = vmatpush.msra.mxu0 %v2040
  %3184 = vmatpush.msra.mxu0 %v2036
  %3185 = vmatpush.msra.mxu0 %v2032
  %3186 = vmatpush.msra.mxu0 %v2028
  %3187 = vmatpush.msra.mxu0 %v2024
  %3188 = vmatpush.msra.mxu0 %v2020
  %3189 = vmatpush.msra.mxu0 %v2016
  %3190 = vmatpush.msra.mxu0 %v2012
  %3191 = vmatmul.f32.gmra.mxu0 %v3130
  %v3192 = vpop.f32.mrf.mxu0
  %v3193 = vadd.f32 0.0, %v3192
  %3194 = vdwg.mxu0
  %3195 = vmatpush.msra.mxu0 %v2073
  %3196 = vmatpush.msra.mxu0 %v2069
  %3197 = vmatpush.msra.mxu0 %v2065
  %3198 = vmatpush.msra.mxu0 %v2061
  %3199 = vmatpush.msra.mxu0 %v2057
  %3200 = vmatpush.msra.mxu0 %v2053
  %3201 = vmatpush.msra.mxu0 %v2049
  %3202 = vmatpush.msra.mxu0 %v2045
  %3203 = vmatpush.msra.mxu0 %v2041
  %3204 = vmatpush.msra.mxu0 %v2037
  %3205 = vmatpush.msra.mxu0 %v2033
  %3206 = vmatpush.msra.mxu0 %v2029
  %3207 = vmatpush.msra.mxu0 %v2025
  %3208 = vmatpush.msra.mxu0 %v2021
  %3209 = vmatpush.msra.mxu0 %v2017
  %3210 = vmatpush.msra.mxu0 %v2013
  %3211 = vmatmul.f32.gmra.mxu0 %v3130
  %v3212 = vpop.f32.mrf.mxu0
  %v3213 = vadd.f32 0.0, %v3212
  %3214 = vdwg.mxu0
  %v3215 = vadd.f32 %v3131, %v3153
  %v3216 = vadd.f32 %v3132, %v3173
  %v3217 = vadd.f32 %v3133, %v3193
  %v3218 = vadd.f32 %v3134, %v3213
  %v3219 = vxor.u32 %v3215, 2147483648
  %v3220 = vxor.u32 %v3216, 2147483648
  %v3221 = vxor.u32 %v3217, 2147483648
  %v3222 = vmul.f32 %v3219, 1.442695
  %v3223 = vpow.pop %v3222
  %v3224 = vmul.f32 %v3220, 1.442695
  %v3225 = vpow.pop %v3224
  %v3226 = vmul.f32 %v3221, 1.442695
  %v3227 = vpow.pop %v3226
  %v3228 = vadd.f32 %v3223, 1.0
  %v3229 = vadd.f32 %v3225, 1.0
  %v3230 = vadd.f32 %v3227, 1.0
  %v3231 = vrcp.pop %v3228
  %v3232 = vmul.f32 %v3228, %v3231
  %v3233 = vsub.f32 1.0, %v3232
  %v3234 = vmul.f32 %v3231, %v3233
  %v3235 = vadd.f32 %v3231, %v3234
  %vm3236 = vweird.f32 %v3228
  %vm3237 = vweird.f32 %v3231
  %vm3238 = vmor %vm3236, %vm3237
  %v3239 = vsel %vm3238, %v3231, %v3235
  %v3240 = vand.u32 2147483647, %v3228
  %vm3241 = vcmp.eq.f32.partialorder %v3240, 8.507059e+37
  %v3242 = vand.u32 %v3228, 2147483648
  %v3243 = vor.u32 1.1754944e-38, %v3242
  %v3244 = vsel %vm3241, %v3243, %v3239
  %v3245 = vmul.f32 1.0, %v3244
  %v3246 = vrcp.pop %v3229
  %v3247 = vmul.f32 %v3229, %v3246
  %v3248 = vsub.f32 1.0, %v3247
  %v3249 = vmul.f32 %v3246, %v3248
  %v3250 = vadd.f32 %v3246, %v3249
  %vm3251 = vweird.f32 %v3229
  %vm3252 = vweird.f32 %v3246
  %vm3253 = vmor %vm3251, %vm3252
  %v3254 = vsel %vm3253, %v3246, %v3250
  %v3255 = vand.u32 2147483647, %v3229
  %vm3256 = vcmp.eq.f32.partialorder %v3255, 8.507059e+37
  %v3257 = vand.u32 %v3229, 2147483648
  %v3258 = vor.u32 1.1754944e-38, %v3257
  %v3259 = vsel %vm3256, %v3258, %v3254
  %v3260 = vmul.f32 1.0, %v3259
  %v3261 = vrcp.pop %v3230
  %v3262 = vmul.f32 %v3230, %v3261
  %v3263 = vsub.f32 1.0, %v3262
  %v3264 = vmul.f32 %v3261, %v3263
  %v3265 = vadd.f32 %v3261, %v3264
  %vm3266 = vweird.f32 %v3230
  %vm3267 = vweird.f32 %v3261
  %vm3268 = vmor %vm3266, %vm3267
  %v3269 = vsel %vm3268, %v3261, %v3265
  %v3270 = vand.u32 2147483647, %v3230
  %vm3271 = vcmp.eq.f32.partialorder %v3270, 8.507059e+37
  %v3272 = vand.u32 %v3230, 2147483648
  %v3273 = vor.u32 1.1754944e-38, %v3272
  %v3274 = vsel %vm3271, %v3273, %v3269
  %v3275 = vmul.f32 1.0, %v3274
  %v3276 = vtanh.pop %v3218
  %v3277 = vmul.f32 %v3260, %v3128
  %v3278 = vmul.f32 %v3245, %v3276
  %v3279 = vadd.f32 %v3277, %v3278
  %v3280 = vtanh.pop %v3279
  %v3281 = vmul.f32 %v3275, %v3280
  %s3282 = scalar_lea.vmem %s8, 8
  %3283 = vst [vmem:[%s3282] sm:$0xff] %v3281
  %s3284 = scalar_lea.vmem %s9, 8
  %3285 = vst [vmem:[%s3284] sm:$0xff] %v3279
  // Predicated region
  $region34: #{encoder_forward.1} parent=0 // pred_check
    _
  $region35: #{encoder_forward.1} parent=0 // pred_check_branch
    %3287 = sbr.rel (0) target = $region37
  $region36: #{encoder_forward.1} parent=0 // pred_region
    _
  $region37: #{encoder_forward.1} parent=0 // pred_fallthru
    _
  // Predicated region
  $region38: #{encoder_forward.1} parent=0 // pred_check
    _
  $region39: #{encoder_forward.1} parent=0 // pred_check_branch
    %3289 = sbr.rel (0) target = $region41
  $region40: #{encoder_forward.1} parent=0 // pred_region
    _
  $region41: #{encoder_forward.1} parent=0 // pred_fallthru
    _
  // Predicated region
  $region42: #{encoder_forward.1} parent=0 // pred_check
    _
  $region43: #{encoder_forward.1} parent=0 // pred_check_branch
    %3291 = sbr.rel (0) target = $region45
  $region44: #{encoder_forward.1} parent=0 // pred_region
    _
  $region45: #{encoder_forward.1} parent=0 // pred_fallthru
    _
  // Predicated region
  $region46: #{encoder_forward.1} parent=0 // pred_check
    _
  $region47: #{encoder_forward.1} parent=0 // pred_check_branch
    %3293 = sbr.rel (0) target = $region49
  $region48: #{encoder_forward.1} parent=0 // pred_region
    _
  $region49: #{encoder_forward.1} parent=0 // pred_fallthru
    _

</llo_original>
